<compile_context>
chip_gen: v7x
topology: tpu7x:2x2x1
jax: 0.10.0
libtpu: 0.0.40
codegen_flags: <defaults>
</compile_context>

<pallas_src>
import jax
import jax.numpy as jnp
import numpy as np
from jax.experimental import pallas as pl
from jax.experimental.pallas import tpu as pltpu


_VMEM = pl.BlockSpec(memory_space=pltpu.MemorySpace.VMEM)


# ---------------------------------------------------------------------------
# Fused Pallas kernel: the whole Discriminator forward, VMEM resident.
# ---------------------------------------------------------------------------
def _bn_lrelu(y, gamma, beta, eps=1e-5, slope=0.2):
    """Training-mode BatchNorm (biased var, one-pass stats) + LeakyReLU, in f32."""
    # TODO(synk): BatchNorm2d running_mean/running_var buffer updates (a
    # training-time side effect) are not emulated.
    inv_m = 1.0 / y.shape[0]
    mean = jnp.sum(y, axis=0, keepdims=True) * inv_m
    ex2 = jnp.sum(y * y, axis=0, keepdims=True) * inv_m
    var = ex2 - mean * mean
    scale = gamma * jax.lax.rsqrt(var + eps)      # gamma folded into the scale
    shift = beta - mean * scale
    z = y * scale + shift
    return jnp.where(z >= 0.0, z, slope * z)


def _disc_fused_kernel(p1_ref, w1_ref, g1_ref, b1_ref,
                       gsel_ref, w2_ref, g2_ref, b2_ref,
                       w3_ref, gsum_ref, o_ref):
    # ---- block1: conv1 as im2col GEMM (bf16 MXU, f32 acc) + BN + LeakyReLU ----
    y1 = jnp.dot(p1_ref[...], w1_ref[...], preferred_element_type=jnp.float32)
    a1 = _bn_lrelu(y1, g1_ref[...], b1_ref[...])              # (M1, C1) f32
    a1b = a1.astype(jnp.bfloat16)

    # ---- block2: conv2 as a sum over the 16 (kh, kw) taps ----
    n_taps = w2_ref.shape[0]
    m2 = gsel_ref.shape[1]
    c2 = w2_ref.shape[2]
    acc = jnp.zeros((m2, c2), jnp.float32)
    for q in range(n_taps):
        # one-hot gather (exact in bf16) of this tap's input rows, on the MXU
        pq = jnp.dot(gsel_ref[q], a1b, preferred_element_type=jnp.float32)
        acc = acc + jnp.dot(pq.astype(jnp.bfloat16), w2_ref[q],
                            preferred_element_type=jnp.float32)
    a2 = _bn_lrelu(acc, g2_ref[...], b2_ref[...])             # (M2, C2) f32

    # ---- block3: 5x5 conv with 1x1 output == per-sample dot with the weight ----
    s = jnp.sum(a2 * w3_ref[...], axis=1, keepdims=True)      # (M2, 1)
    o_ref[...] = jnp.dot(gsum_ref[...], s,                    # (N, M2) @ (M2, 1)
                         preferred_element_type=jnp.float32)


# ---------------------------------------------------------------------------
# JAX-side data prep (tiny, constant-foldable / XLA-fused glue)
# ---------------------------------------------------------------------------
def _im2col(x_nchw, k, stride):
    """x: (N, C, H, W) -> patches (N*Ho*Wo, k*k*C); K order = (kh, kw, cin)."""
    N, C, H, W = x_nchw.shape
    Ho = (H - k) // stride + 1
    Wo = (W - k) // stride + 1
    cols = []
    for i in range(k):
        for j in range(k):
            cols.append(x_nchw[:, :, i:i + stride * Ho:stride,
                               j:j + stride * Wo:stride])     # (N, C, Ho, Wo)
    p = jnp.stack(cols, axis=1)                               # (N, k*k, C, Ho, Wo)
    p = p.transpose(0, 3, 4, 1, 2).reshape(N * Ho * Wo, k * k * C)
    return p, Ho, Wo


def _flat_weight(w_oihw):
    """PyTorch conv weight (Cout, Cin, kh, kw) -> (kh*kw*Cin, Cout)."""
    cout, cin, kh, kw = w_oihw.shape
    return w_oihw.transpose(2, 3, 1, 0).reshape(kh * kw * cin, cout)


def _tap_weight(w_oihw):
    """PyTorch conv weight (Cout, Cin, kh, kw) -> (kh*kw, Cin, Cout) tap slabs."""
    cout, cin, kh, kw = w_oihw.shape
    return w_oihw.transpose(2, 3, 1, 0).reshape(kh * kw, cin, cout)


def _tap_gather_onehot(N, Hi, Wi, k, stride, dtype):
    """(k*k, N*Ho*Wo, N*Hi*Wi) one-hot row-gather matrices, one per conv tap.

    Tap q=(i,j) maps output position (n,ho,wo) -> input row n*Hi*Wi +
    (stride*ho+i)*Wi + (stride*wo+j).  Shape-derived constant (XLA folds it).
    """
    Ho = (Hi - k) // stride + 1
    Wo = (Wi - k) // stride + 1
    n = jnp.arange(N)[:, None, None]
    ho = jnp.arange(Ho)[None, :, None]
    wo = jnp.arange(Wo)[None, None, :]
    base = ((n * Hi + stride * ho) * Wi + stride * wo).reshape(1, N * Ho * Wo)
    ii, jj = jnp.meshgrid(jnp.arange(k), jnp.arange(k), indexing="ij")
    off = (ii * Wi + jj).reshape(k * k, 1)
    rows = base + off                                         # (k*k, N*Ho*Wo)
    src = jnp.arange(N * Hi * Wi)[None, None, :]
    return (rows[..., None] == src).astype(dtype)


# ---------------------------------------------------------------------------
# Discriminator forward (single fused pallas_call)
# ---------------------------------------------------------------------------
def discriminator_forward(x, params):
    """x: (N, Cin, H, W) NCHW, matching PyTorch semantics.  Returns (N, 1)."""
    N = x.shape[0]

    # block1 im2col (the only XLA-side data prep) + bf16 cast for the MXU.
    p1, h1, w1sp = _im2col(x, k=4, stride=2)
    p1 = p1.astype(jnp.bfloat16)
    w1f = _flat_weight(params["w1"]).astype(jnp.bfloat16)

    # block2: per-tap weight slabs + constant one-hot gather matrices.
    w2t = _tap_weight(params["w2"]).astype(jnp.bfloat16)      # (16, C1, C2)
    gsel = _tap_gather_onehot(N, h1, w1sp, k=4, stride=2, dtype=jnp.bfloat16)
    h2 = (h1 - 4) // 2 + 1
    w2sp = (w1sp - 4) // 2 + 1

    # block3: the 5x5 conv collapses to a per-sample dot (1x1 spatial output).
    cout3, cin3, kh3, kw3 = params["w3"].shape
    assert cout3 == 1 and h2 == kh3 and w2sp == kw3, (
        "fused block3 epilogue assumes the final conv output is 1x1 "
        "(true for the reference 28x28 DC-GAN discriminator)")
    w3m = params["w3"].transpose(2, 3, 1, 0).reshape(kh3 * kw3, cin3)  # (25, C2)
    w3big = jnp.tile(w3m, (N, 1)).astype(jnp.float32)                  # (N*25, C2)
    m3 = h2 * w2sp
    gsum = (jnp.arange(N)[:, None] ==
            (jnp.arange(N * m3)[None, :] // m3)).astype(jnp.float32)   # (N, N*25)

    g1 = params["g1"][None, :].astype(jnp.float32)
    b1 = params["b1"][None, :].astype(jnp.float32)
    g2 = params["g2"][None, :].astype(jnp.float32)
    b2 = params["b2"][None, :].astype(jnp.float32)

    return pl.pallas_call(
        _disc_fused_kernel,
        out_shape=jax.ShapeDtypeStruct((N, 1), jnp.float32),
        in_specs=[_VMEM] * 10,
        out_specs=_VMEM,
    )(p1, w1f, g1, b1, gsel, w2t, g2, b2, w3big, gsum)


# ---------------------------------------------------------------------------
# Pure-JAX f32 reference (mirrors the PyTorch module, training-mode BN)
# ---------------------------------------------------------------------------
def _reference_forward(x, params):
    def conv(y, w, stride):
        return jax.lax.conv_general_dilated(
            y, w, window_strides=(stride, stride), padding="VALID",
            dimension_numbers=("NCHW", "OIHW", "NCHW"))

    def bn_lrelu(y, g, b):
        mean = jnp.mean(y, axis=(0, 2, 3), keepdims=True)
        var = jnp.mean((y - mean) ** 2, axis=(0, 2, 3), keepdims=True)
        z = ((y - mean) * jax.lax.rsqrt(var + 1e-5)
             * g[None, :, None, None] + b[None, :, None, None])
        return jnp.where(z >= 0.0, z, 0.2 * z)

    y = bn_lrelu(conv(x, params["w1"], 2), params["g1"], params["b1"])
    y = bn_lrelu(conv(y, params["w2"], 2), params["g2"], params["b2"])
    y = conv(y, params["w3"], 1)
    return y.reshape(y.shape[0], -1)


def init_params(key, input_dim=1, hidden_dim=16):
    ks = jax.random.split(key, 7)
    return {
        "w1": 0.02 * jax.random.normal(ks[0], (hidden_dim, input_dim, 4, 4), jnp.float32),
        "g1": 1.0 + 0.1 * jax.random.normal(ks[1], (hidden_dim,), jnp.float32),
        "b1": 0.1 * jax.random.normal(ks[2], (hidden_dim,), jnp.float32),
        "w2": 0.02 * jax.random.normal(ks[3], (hidden_dim * 2, hidden_dim, 4, 4), jnp.float32),
        "g2": 1.0 + 0.1 * jax.random.normal(ks[4], (hidden_dim * 2,), jnp.float32),
        "b2": 0.1 * jax.random.normal(ks[5], (hidden_dim * 2,), jnp.float32),
        "w3": 0.02 * jax.random.normal(ks[6], (1, hidden_dim * 2, 5, 5), jnp.float32),
    }


if __name__ == "__main__":
    key = jax.random.PRNGKey(0)
    kx, kp = jax.random.split(key)

    # MNIST-like DC-GAN input: batch=2, 1 channel, 28x28.
    # Spatial trace: 28 -> conv(k4,s2) 13 -> conv(k4,s2) 5 -> conv(k5,s1) 1.
    x = jax.random.normal(kx, (2, 1, 28, 28), jnp.float32)
    params = init_params(kp, input_dim=1, hidden_dim=16)

    out = jax.block_until_ready(jax.jit(discriminator_forward)(x, params))
    ref = jax.block_until_ready(jax.jit(_reference_forward)(x, params))

    assert out.shape == (2, 1), out.shape
    assert bool(jnp.all(jnp.isfinite(out)))
    # bf16 MXU inputs vs f32 reference: loose-but-meaningful tolerance.
    assert np.allclose(np.asarray(out), np.asarray(ref), rtol=5e-2, atol=5e-2), (out, ref)
    print("KERNEL_OK")
</pallas_src>

<mosaic_0001>
module attributes {stable_mosaic.version = 11 : i64} {
  func.func @_disc_fused_kernel(%arg0: memref<338x16xbf16, #tpu.memory_space<vmem>>, %arg1: memref<16x16xbf16, #tpu.memory_space<vmem>>, %arg2: memref<1x16xf32, #tpu.memory_space<vmem>>, %arg3: memref<1x16xf32, #tpu.memory_space<vmem>>, %arg4: memref<16x50x338xbf16, #tpu.memory_space<vmem>>, %arg5: memref<16x16x32xbf16, #tpu.memory_space<vmem>>, %arg6: memref<1x32xf32, #tpu.memory_space<vmem>>, %arg7: memref<1x32xf32, #tpu.memory_space<vmem>>, %arg8: memref<50x32xf32, #tpu.memory_space<vmem>>, %arg9: memref<2x50xf32, #tpu.memory_space<vmem>>, %arg10: memref<2x1xf32, #tpu.memory_space<vmem>>) attributes {dimension_semantics = [], scalar_prefetch = 0 : i64, scratch_operands = 0 : i64, tpu.core_type = #tpu.core_type<tc>} {
    %c0 = arith.constant 0 : index
    %c0_0 = arith.constant 0 : index
    %0 = vector.load %arg0[%c0, %c0_0] : memref<338x16xbf16, #tpu.memory_space<vmem>>, vector<338x16xbf16>
    %c0_1 = arith.constant 0 : index
    %c0_2 = arith.constant 0 : index
    %1 = vector.load %arg1[%c0_1, %c0_2] : memref<16x16xbf16, #tpu.memory_space<vmem>>, vector<16x16xbf16>
    %cst = arith.constant dense<0.000000e+00> : vector<338x16xf32>
    %2 = tpu.matmul %0, %1, %cst {dimension_numbers = #tpu.dot_dimension_numbers<[1], [0], [0], [1], [0, 0, 1, 1], [], []>} : vector<338x16xbf16>, vector<16x16xbf16>, vector<338x16xf32> -> vector<338x16xf32>
    %c0_3 = arith.constant 0 : index
    %c0_4 = arith.constant 0 : index
    %3 = vector.load %arg2[%c0_3, %c0_4] : memref<1x16xf32, #tpu.memory_space<vmem>>, vector<1x16xf32>
    %c0_5 = arith.constant 0 : index
    %c0_6 = arith.constant 0 : index
    %4 = vector.load %arg3[%c0_5, %c0_6] : memref<1x16xf32, #tpu.memory_space<vmem>>, vector<1x16xf32>
    %cst_7 = arith.constant dense<0.000000e+00> : vector<16xf32>
    %5 = vector.multi_reduction <add>, %2, %cst_7 [0] : vector<338x16xf32> to vector<16xf32>
    %6 = vector.shape_cast %5 : vector<16xf32> to vector<1x16xf32>
    %cst_8 = arith.constant 2.958580e-03 : f32
    %7 = vector.broadcast %cst_8 : f32 to vector<1x16xf32>
    %8 = arith.mulf %6, %7 : vector<1x16xf32>
    %9 = arith.mulf %2, %2 : vector<338x16xf32>
    %cst_9 = arith.constant dense<0.000000e+00> : vector<16xf32>
    %10 = vector.multi_reduction <add>, %9, %cst_9 [0] : vector<338x16xf32> to vector<16xf32>
    %11 = vector.shape_cast %10 : vector<16xf32> to vector<1x16xf32>
    %cst_10 = arith.constant 2.958580e-03 : f32
    %12 = vector.broadcast %cst_10 : f32 to vector<1x16xf32>
    %13 = arith.mulf %11, %12 : vector<1x16xf32>
    %14 = arith.mulf %8, %8 : vector<1x16xf32>
    %15 = arith.subf %13, %14 : vector<1x16xf32>
    %cst_11 = arith.constant 9.99999974E-6 : f32
    %16 = vector.broadcast %cst_11 : f32 to vector<1x16xf32>
    %17 = arith.addf %15, %16 : vector<1x16xf32>
    %18 = math.rsqrt %17 : vector<1x16xf32>
    %19 = arith.mulf %3, %18 : vector<1x16xf32>
    %20 = arith.mulf %8, %19 : vector<1x16xf32>
    %21 = arith.subf %4, %20 : vector<1x16xf32>
    %22 = vector.broadcast %19 : vector<1x16xf32> to vector<338x16xf32>
    %23 = arith.mulf %2, %22 : vector<338x16xf32>
    %24 = vector.broadcast %21 : vector<1x16xf32> to vector<338x16xf32>
    %25 = arith.addf %23, %24 : vector<338x16xf32>
    %cst_12 = arith.constant 0.000000e+00 : f32
    %26 = vector.broadcast %cst_12 : f32 to vector<338x16xf32>
    %27 = arith.cmpf oge, %25, %26 : vector<338x16xf32>
    %cst_13 = arith.constant 2.000000e-01 : f32
    %28 = vector.broadcast %cst_13 : f32 to vector<338x16xf32>
    %29 = arith.mulf %28, %25 : vector<338x16xf32>
    %30 = arith.select %27, %25, %29 : vector<338x16xi1>, vector<338x16xf32>
    %31 = arith.truncf %30 : vector<338x16xf32> to vector<338x16xbf16>
    %cst_14 = arith.constant 0.000000e+00 : f32
    %32 = vector.broadcast %cst_14 : f32 to vector<50x32xf32>
    %c0_15 = arith.constant 0 : index
    %c0_16 = arith.constant 0 : index
    %c0_17 = arith.constant 0 : index
    %33 = vector.load %arg4[%c0_15, %c0_16, %c0_17] : memref<16x50x338xbf16, #tpu.memory_space<vmem>>, vector<1x50x338xbf16>
    %34 = vector.shape_cast %33 : vector<1x50x338xbf16> to vector<50x338xbf16>
    %cst_18 = arith.constant dense<0.000000e+00> : vector<50x16xf32>
    %35 = tpu.matmul %34, %31, %cst_18 {dimension_numbers = #tpu.dot_dimension_numbers<[1], [0], [0], [1], [0, 0, 1, 1], [], []>} : vector<50x338xbf16>, vector<338x16xbf16>, vector<50x16xf32> -> vector<50x16xf32>
    %36 = arith.truncf %35 : vector<50x16xf32> to vector<50x16xbf16>
    %c0_19 = arith.constant 0 : index
    %c0_20 = arith.constant 0 : index
    %c0_21 = arith.constant 0 : index
    %37 = vector.load %arg5[%c0_19, %c0_20, %c0_21] : memref<16x16x32xbf16, #tpu.memory_space<vmem>>, vector<1x16x32xbf16>
    %38 = vector.shape_cast %37 : vector<1x16x32xbf16> to vector<16x32xbf16>
    %cst_22 = arith.constant dense<0.000000e+00> : vector<50x32xf32>
    %39 = tpu.matmul %36, %38, %cst_22 {dimension_numbers = #tpu.dot_dimension_numbers<[1], [0], [0], [1], [0, 0, 1, 1], [], []>} : vector<50x16xbf16>, vector<16x32xbf16>, vector<50x32xf32> -> vector<50x32xf32>
    %40 = arith.addf %32, %39 : vector<50x32xf32>
    %c1 = arith.constant 1 : index
    %c0_23 = arith.constant 0 : index
    %c0_24 = arith.constant 0 : index
    %41 = vector.load %arg4[%c1, %c0_23, %c0_24] : memref<16x50x338xbf16, #tpu.memory_space<vmem>>, vector<1x50x338xbf16>
    %42 = vector.shape_cast %41 : vector<1x50x338xbf16> to vector<50x338xbf16>
    %cst_25 = arith.constant dense<0.000000e+00> : vector<50x16xf32>
    %43 = tpu.matmul %42, %31, %cst_25 {dimension_numbers = #tpu.dot_dimension_numbers<[1], [0], [0], [1], [0, 0, 1, 1], [], []>} : vector<50x338xbf16>, vector<338x16xbf16>, vector<50x16xf32> -> vector<50x16xf32>
    %44 = arith.truncf %43 : vector<50x16xf32> to vector<50x16xbf16>
    %c1_26 = arith.constant 1 : index
    %c0_27 = arith.constant 0 : index
    %c0_28 = arith.constant 0 : index
    %45 = vector.load %arg5[%c1_26, %c0_27, %c0_28] : memref<16x16x32xbf16, #tpu.memory_space<vmem>>, vector<1x16x32xbf16>
    %46 = vector.shape_cast %45 : vector<1x16x32xbf16> to vector<16x32xbf16>
    %cst_29 = arith.constant dense<0.000000e+00> : vector<50x32xf32>
    %47 = tpu.matmul %44, %46, %cst_29 {dimension_numbers = #tpu.dot_dimension_numbers<[1], [0], [0], [1], [0, 0, 1, 1], [], []>} : vector<50x16xbf16>, vector<16x32xbf16>, vector<50x32xf32> -> vector<50x32xf32>
    %48 = arith.addf %40, %47 : vector<50x32xf32>
    %c2 = arith.constant 2 : index
    %c0_30 = arith.constant 0 : index
    %c0_31 = arith.constant 0 : index
    %49 = vector.load %arg4[%c2, %c0_30, %c0_31] : memref<16x50x338xbf16, #tpu.memory_space<vmem>>, vector<1x50x338xbf16>
    %50 = vector.shape_cast %49 : vector<1x50x338xbf16> to vector<50x338xbf16>
    %cst_32 = arith.constant dense<0.000000e+00> : vector<50x16xf32>
    %51 = tpu.matmul %50, %31, %cst_32 {dimension_numbers = #tpu.dot_dimension_numbers<[1], [0], [0], [1], [0, 0, 1, 1], [], []>} : vector<50x338xbf16>, vector<338x16xbf16>, vector<50x16xf32> -> vector<50x16xf32>
    %52 = arith.truncf %51 : vector<50x16xf32> to vector<50x16xbf16>
    %c2_33 = arith.constant 2 : index
    %c0_34 = arith.constant 0 : index
    %c0_35 = arith.constant 0 : index
    %53 = vector.load %arg5[%c2_33, %c0_34, %c0_35] : memref<16x16x32xbf16, #tpu.memory_space<vmem>>, vector<1x16x32xbf16>
    %54 = vector.shape_cast %53 : vector<1x16x32xbf16> to vector<16x32xbf16>
    %cst_36 = arith.constant dense<0.000000e+00> : vector<50x32xf32>
    %55 = tpu.matmul %52, %54, %cst_36 {dimension_numbers = #tpu.dot_dimension_numbers<[1], [0], [0], [1], [0, 0, 1, 1], [], []>} : vector<50x16xbf16>, vector<16x32xbf16>, vector<50x32xf32> -> vector<50x32xf32>
    %56 = arith.addf %48, %55 : vector<50x32xf32>
    %c3 = arith.constant 3 : index
    %c0_37 = arith.constant 0 : index
    %c0_38 = arith.constant 0 : index
    %57 = vector.load %arg4[%c3, %c0_37, %c0_38] : memref<16x50x338xbf16, #tpu.memory_space<vmem>>, vector<1x50x338xbf16>
    %58 = vector.shape_cast %57 : vector<1x50x338xbf16> to vector<50x338xbf16>
    %cst_39 = arith.constant dense<0.000000e+00> : vector<50x16xf32>
    %59 = tpu.matmul %58, %31, %cst_39 {dimension_numbers = #tpu.dot_dimension_numbers<[1], [0], [0], [1], [0, 0, 1, 1], [], []>} : vector<50x338xbf16>, vector<338x16xbf16>, vector<50x16xf32> -> vector<50x16xf32>
    %60 = arith.truncf %59 : vector<50x16xf32> to vector<50x16xbf16>
    %c3_40 = arith.constant 3 : index
    %c0_41 = arith.constant 0 : index
    %c0_42 = arith.constant 0 : index
    %61 = vector.load %arg5[%c3_40, %c0_41, %c0_42] : memref<16x16x32xbf16, #tpu.memory_space<vmem>>, vector<1x16x32xbf16>
    %62 = vector.shape_cast %61 : vector<1x16x32xbf16> to vector<16x32xbf16>
    %cst_43 = arith.constant dense<0.000000e+00> : vector<50x32xf32>
    %63 = tpu.matmul %60, %62, %cst_43 {dimension_numbers = #tpu.dot_dimension_numbers<[1], [0], [0], [1], [0, 0, 1, 1], [], []>} : vector<50x16xbf16>, vector<16x32xbf16>, vector<50x32xf32> -> vector<50x32xf32>
    %64 = arith.addf %56, %63 : vector<50x32xf32>
    %c4 = arith.constant 4 : index
    %c0_44 = arith.constant 0 : index
    %c0_45 = arith.constant 0 : index
    %65 = vector.load %arg4[%c4, %c0_44, %c0_45] : memref<16x50x338xbf16, #tpu.memory_space<vmem>>, vector<1x50x338xbf16>
    %66 = vector.shape_cast %65 : vector<1x50x338xbf16> to vector<50x338xbf16>
    %cst_46 = arith.constant dense<0.000000e+00> : vector<50x16xf32>
    %67 = tpu.matmul %66, %31, %cst_46 {dimension_numbers = #tpu.dot_dimension_numbers<[1], [0], [0], [1], [0, 0, 1, 1], [], []>} : vector<50x338xbf16>, vector<338x16xbf16>, vector<50x16xf32> -> vector<50x16xf32>
    %68 = arith.truncf %67 : vector<50x16xf32> to vector<50x16xbf16>
    %c4_47 = arith.constant 4 : index
    %c0_48 = arith.constant 0 : index
    %c0_49 = arith.constant 0 : index
    %69 = vector.load %arg5[%c4_47, %c0_48, %c0_49] : memref<16x16x32xbf16, #tpu.memory_space<vmem>>, vector<1x16x32xbf16>
    %70 = vector.shape_cast %69 : vector<1x16x32xbf16> to vector<16x32xbf16>
    %cst_50 = arith.constant dense<0.000000e+00> : vector<50x32xf32>
    %71 = tpu.matmul %68, %70, %cst_50 {dimension_numbers = #tpu.dot_dimension_numbers<[1], [0], [0], [1], [0, 0, 1, 1], [], []>} : vector<50x16xbf16>, vector<16x32xbf16>, vector<50x32xf32> -> vector<50x32xf32>
    %72 = arith.addf %64, %71 : vector<50x32xf32>
    %c5 = arith.constant 5 : index
    %c0_51 = arith.constant 0 : index
    %c0_52 = arith.constant 0 : index
    %73 = vector.load %arg4[%c5, %c0_51, %c0_52] : memref<16x50x338xbf16, #tpu.memory_space<vmem>>, vector<1x50x338xbf16>
    %74 = vector.shape_cast %73 : vector<1x50x338xbf16> to vector<50x338xbf16>
    %cst_53 = arith.constant dense<0.000000e+00> : vector<50x16xf32>
    %75 = tpu.matmul %74, %31, %cst_53 {dimension_numbers = #tpu.dot_dimension_numbers<[1], [0], [0], [1], [0, 0, 1, 1], [], []>} : vector<50x338xbf16>, vector<338x16xbf16>, vector<50x16xf32> -> vector<50x16xf32>
    %76 = arith.truncf %75 : vector<50x16xf32> to vector<50x16xbf16>
    %c5_54 = arith.constant 5 : index
    %c0_55 = arith.constant 0 : index
    %c0_56 = arith.constant 0 : index
    %77 = vector.load %arg5[%c5_54, %c0_55, %c0_56] : memref<16x16x32xbf16, #tpu.memory_space<vmem>>, vector<1x16x32xbf16>
    %78 = vector.shape_cast %77 : vector<1x16x32xbf16> to vector<16x32xbf16>
    %cst_57 = arith.constant dense<0.000000e+00> : vector<50x32xf32>
    %79 = tpu.matmul %76, %78, %cst_57 {dimension_numbers = #tpu.dot_dimension_numbers<[1], [0], [0], [1], [0, 0, 1, 1], [], []>} : vector<50x16xbf16>, vector<16x32xbf16>, vector<50x32xf32> -> vector<50x32xf32>
    %80 = arith.addf %72, %79 : vector<50x32xf32>
    %c6 = arith.constant 6 : index
    %c0_58 = arith.constant 0 : index
    %c0_59 = arith.constant 0 : index
    %81 = vector.load %arg4[%c6, %c0_58, %c0_59] : memref<16x50x338xbf16, #tpu.memory_space<vmem>>, vector<1x50x338xbf16>
    %82 = vector.shape_cast %81 : vector<1x50x338xbf16> to vector<50x338xbf16>
    %cst_60 = arith.constant dense<0.000000e+00> : vector<50x16xf32>
    %83 = tpu.matmul %82, %31, %cst_60 {dimension_numbers = #tpu.dot_dimension_numbers<[1], [0], [0], [1], [0, 0, 1, 1], [], []>} : vector<50x338xbf16>, vector<338x16xbf16>, vector<50x16xf32> -> vector<50x16xf32>
    %84 = arith.truncf %83 : vector<50x16xf32> to vector<50x16xbf16>
    %c6_61 = arith.constant 6 : index
    %c0_62 = arith.constant 0 : index
    %c0_63 = arith.constant 0 : index
    %85 = vector.load %arg5[%c6_61, %c0_62, %c0_63] : memref<16x16x32xbf16, #tpu.memory_space<vmem>>, vector<1x16x32xbf16>
    %86 = vector.shape_cast %85 : vector<1x16x32xbf16> to vector<16x32xbf16>
    %cst_64 = arith.constant dense<0.000000e+00> : vector<50x32xf32>
    %87 = tpu.matmul %84, %86, %cst_64 {dimension_numbers = #tpu.dot_dimension_numbers<[1], [0], [0], [1], [0, 0, 1, 1], [], []>} : vector<50x16xbf16>, vector<16x32xbf16>, vector<50x32xf32> -> vector<50x32xf32>
    %88 = arith.addf %80, %87 : vector<50x32xf32>
    %c7 = arith.constant 7 : index
    %c0_65 = arith.constant 0 : index
    %c0_66 = arith.constant 0 : index
    %89 = vector.load %arg4[%c7, %c0_65, %c0_66] : memref<16x50x338xbf16, #tpu.memory_space<vmem>>, vector<1x50x338xbf16>
    %90 = vector.shape_cast %89 : vector<1x50x338xbf16> to vector<50x338xbf16>
    %cst_67 = arith.constant dense<0.000000e+00> : vector<50x16xf32>
    %91 = tpu.matmul %90, %31, %cst_67 {dimension_numbers = #tpu.dot_dimension_numbers<[1], [0], [0], [1], [0, 0, 1, 1], [], []>} : vector<50x338xbf16>, vector<338x16xbf16>, vector<50x16xf32> -> vector<50x16xf32>
    %92 = arith.truncf %91 : vector<50x16xf32> to vector<50x16xbf16>
    %c7_68 = arith.constant 7 : index
    %c0_69 = arith.constant 0 : index
    %c0_70 = arith.constant 0 : index
    %93 = vector.load %arg5[%c7_68, %c0_69, %c0_70] : memref<16x16x32xbf16, #tpu.memory_space<vmem>>, vector<1x16x32xbf16>
    %94 = vector.shape_cast %93 : vector<1x16x32xbf16> to vector<16x32xbf16>
    %cst_71 = arith.constant dense<0.000000e+00> : vector<50x32xf32>
    %95 = tpu.matmul %92, %94, %cst_71 {dimension_numbers = #tpu.dot_dimension_numbers<[1], [0], [0], [1], [0, 0, 1, 1], [], []>} : vector<50x16xbf16>, vector<16x32xbf16>, vector<50x32xf32> -> vector<50x32xf32>
    %96 = arith.addf %88, %95 : vector<50x32xf32>
    %c8 = arith.constant 8 : index
    %c0_72 = arith.constant 0 : index
    %c0_73 = arith.constant 0 : index
    %97 = vector.load %arg4[%c8, %c0_72, %c0_73] : memref<16x50x338xbf16, #tpu.memory_space<vmem>>, vector<1x50x338xbf16>
    %98 = vector.shape_cast %97 : vector<1x50x338xbf16> to vector<50x338xbf16>
    %cst_74 = arith.constant dense<0.000000e+00> : vector<50x16xf32>
    %99 = tpu.matmul %98, %31, %cst_74 {dimension_numbers = #tpu.dot_dimension_numbers<[1], [0], [0], [1], [0, 0, 1, 1], [], []>} : vector<50x338xbf16>, vector<338x16xbf16>, vector<50x16xf32> -> vector<50x16xf32>
    %100 = arith.truncf %99 : vector<50x16xf32> to vector<50x16xbf16>
    %c8_75 = arith.constant 8 : index
    %c0_76 = arith.constant 0 : index
    %c0_77 = arith.constant 0 : index
    %101 = vector.load %arg5[%c8_75, %c0_76, %c0_77] : memref<16x16x32xbf16, #tpu.memory_space<vmem>>, vector<1x16x32xbf16>
    %102 = vector.shape_cast %101 : vector<1x16x32xbf16> to vector<16x32xbf16>
    %cst_78 = arith.constant dense<0.000000e+00> : vector<50x32xf32>
    %103 = tpu.matmul %100, %102, %cst_78 {dimension_numbers = #tpu.dot_dimension_numbers<[1], [0], [0], [1], [0, 0, 1, 1], [], []>} : vector<50x16xbf16>, vector<16x32xbf16>, vector<50x32xf32> -> vector<50x32xf32>
    %104 = arith.addf %96, %103 : vector<50x32xf32>
    %c9 = arith.constant 9 : index
    %c0_79 = arith.constant 0 : index
    %c0_80 = arith.constant 0 : index
    %105 = vector.load %arg4[%c9, %c0_79, %c0_80] : memref<16x50x338xbf16, #tpu.memory_space<vmem>>, vector<1x50x338xbf16>
    %106 = vector.shape_cast %105 : vector<1x50x338xbf16> to vector<50x338xbf16>
    %cst_81 = arith.constant dense<0.000000e+00> : vector<50x16xf32>
    %107 = tpu.matmul %106, %31, %cst_81 {dimension_numbers = #tpu.dot_dimension_numbers<[1], [0], [0], [1], [0, 0, 1, 1], [], []>} : vector<50x338xbf16>, vector<338x16xbf16>, vector<50x16xf32> -> vector<50x16xf32>
    %108 = arith.truncf %107 : vector<50x16xf32> to vector<50x16xbf16>
    %c9_82 = arith.constant 9 : index
    %c0_83 = arith.constant 0 : index
    %c0_84 = arith.constant 0 : index
    %109 = vector.load %arg5[%c9_82, %c0_83, %c0_84] : memref<16x16x32xbf16, #tpu.memory_space<vmem>>, vector<1x16x32xbf16>
    %110 = vector.shape_cast %109 : vector<1x16x32xbf16> to vector<16x32xbf16>
    %cst_85 = arith.constant dense<0.000000e+00> : vector<50x32xf32>
    %111 = tpu.matmul %108, %110, %cst_85 {dimension_numbers = #tpu.dot_dimension_numbers<[1], [0], [0], [1], [0, 0, 1, 1], [], []>} : vector<50x16xbf16>, vector<16x32xbf16>, vector<50x32xf32> -> vector<50x32xf32>
    %112 = arith.addf %104, %111 : vector<50x32xf32>
    %c10 = arith.constant 10 : index
    %c0_86 = arith.constant 0 : index
    %c0_87 = arith.constant 0 : index
    %113 = vector.load %arg4[%c10, %c0_86, %c0_87] : memref<16x50x338xbf16, #tpu.memory_space<vmem>>, vector<1x50x338xbf16>
    %114 = vector.shape_cast %113 : vector<1x50x338xbf16> to vector<50x338xbf16>
    %cst_88 = arith.constant dense<0.000000e+00> : vector<50x16xf32>
    %115 = tpu.matmul %114, %31, %cst_88 {dimension_numbers = #tpu.dot_dimension_numbers<[1], [0], [0], [1], [0, 0, 1, 1], [], []>} : vector<50x338xbf16>, vector<338x16xbf16>, vector<50x16xf32> -> vector<50x16xf32>
    %116 = arith.truncf %115 : vector<50x16xf32> to vector<50x16xbf16>
    %c10_89 = arith.constant 10 : index
    %c0_90 = arith.constant 0 : index
    %c0_91 = arith.constant 0 : index
    %117 = vector.load %arg5[%c10_89, %c0_90, %c0_91] : memref<16x16x32xbf16, #tpu.memory_space<vmem>>, vector<1x16x32xbf16>
    %118 = vector.shape_cast %117 : vector<1x16x32xbf16> to vector<16x32xbf16>
    %cst_92 = arith.constant dense<0.000000e+00> : vector<50x32xf32>
    %119 = tpu.matmul %116, %118, %cst_92 {dimension_numbers = #tpu.dot_dimension_numbers<[1], [0], [0], [1], [0, 0, 1, 1], [], []>} : vector<50x16xbf16>, vector<16x32xbf16>, vector<50x32xf32> -> vector<50x32xf32>
    %120 = arith.addf %112, %119 : vector<50x32xf32>
    %c11 = arith.constant 11 : index
    %c0_93 = arith.constant 0 : index
    %c0_94 = arith.constant 0 : index
    %121 = vector.load %arg4[%c11, %c0_93, %c0_94] : memref<16x50x338xbf16, #tpu.memory_space<vmem>>, vector<1x50x338xbf16>
    %122 = vector.shape_cast %121 : vector<1x50x338xbf16> to vector<50x338xbf16>
    %cst_95 = arith.constant dense<0.000000e+00> : vector<50x16xf32>
    %123 = tpu.matmul %122, %31, %cst_95 {dimension_numbers = #tpu.dot_dimension_numbers<[1], [0], [0], [1], [0, 0, 1, 1], [], []>} : vector<50x338xbf16>, vector<338x16xbf16>, vector<50x16xf32> -> vector<50x16xf32>
    %124 = arith.truncf %123 : vector<50x16xf32> to vector<50x16xbf16>
    %c11_96 = arith.constant 11 : index
    %c0_97 = arith.constant 0 : index
    %c0_98 = arith.constant 0 : index
    %125 = vector.load %arg5[%c11_96, %c0_97, %c0_98] : memref<16x16x32xbf16, #tpu.memory_space<vmem>>, vector<1x16x32xbf16>
    %126 = vector.shape_cast %125 : vector<1x16x32xbf16> to vector<16x32xbf16>
    %cst_99 = arith.constant dense<0.000000e+00> : vector<50x32xf32>
    %127 = tpu.matmul %124, %126, %cst_99 {dimension_numbers = #tpu.dot_dimension_numbers<[1], [0], [0], [1], [0, 0, 1, 1], [], []>} : vector<50x16xbf16>, vector<16x32xbf16>, vector<50x32xf32> -> vector<50x32xf32>
    %128 = arith.addf %120, %127 : vector<50x32xf32>
    %c12 = arith.constant 12 : index
    %c0_100 = arith.constant 0 : index
    %c0_101 = arith.constant 0 : index
    %129 = vector.load %arg4[%c12, %c0_100, %c0_101] : memref<16x50x338xbf16, #tpu.memory_space<vmem>>, vector<1x50x338xbf16>
    %130 = vector.shape_cast %129 : vector<1x50x338xbf16> to vector<50x338xbf16>
    %cst_102 = arith.constant dense<0.000000e+00> : vector<50x16xf32>
    %131 = tpu.matmul %130, %31, %cst_102 {dimension_numbers = #tpu.dot_dimension_numbers<[1], [0], [0], [1], [0, 0, 1, 1], [], []>} : vector<50x338xbf16>, vector<338x16xbf16>, vector<50x16xf32> -> vector<50x16xf32>
    %132 = arith.truncf %131 : vector<50x16xf32> to vector<50x16xbf16>
    %c12_103 = arith.constant 12 : index
    %c0_104 = arith.constant 0 : index
    %c0_105 = arith.constant 0 : index
    %133 = vector.load %arg5[%c12_103, %c0_104, %c0_105] : memref<16x16x32xbf16, #tpu.memory_space<vmem>>, vector<1x16x32xbf16>
    %134 = vector.shape_cast %133 : vector<1x16x32xbf16> to vector<16x32xbf16>
    %cst_106 = arith.constant dense<0.000000e+00> : vector<50x32xf32>
    %135 = tpu.matmul %132, %134, %cst_106 {dimension_numbers = #tpu.dot_dimension_numbers<[1], [0], [0], [1], [0, 0, 1, 1], [], []>} : vector<50x16xbf16>, vector<16x32xbf16>, vector<50x32xf32> -> vector<50x32xf32>
    %136 = arith.addf %128, %135 : vector<50x32xf32>
    %c13 = arith.constant 13 : index
    %c0_107 = arith.constant 0 : index
    %c0_108 = arith.constant 0 : index
    %137 = vector.load %arg4[%c13, %c0_107, %c0_108] : memref<16x50x338xbf16, #tpu.memory_space<vmem>>, vector<1x50x338xbf16>
    %138 = vector.shape_cast %137 : vector<1x50x338xbf16> to vector<50x338xbf16>
    %cst_109 = arith.constant dense<0.000000e+00> : vector<50x16xf32>
    %139 = tpu.matmul %138, %31, %cst_109 {dimension_numbers = #tpu.dot_dimension_numbers<[1], [0], [0], [1], [0, 0, 1, 1], [], []>} : vector<50x338xbf16>, vector<338x16xbf16>, vector<50x16xf32> -> vector<50x16xf32>
    %140 = arith.truncf %139 : vector<50x16xf32> to vector<50x16xbf16>
    %c13_110 = arith.constant 13 : index
    %c0_111 = arith.constant 0 : index
    %c0_112 = arith.constant 0 : index
    %141 = vector.load %arg5[%c13_110, %c0_111, %c0_112] : memref<16x16x32xbf16, #tpu.memory_space<vmem>>, vector<1x16x32xbf16>
    %142 = vector.shape_cast %141 : vector<1x16x32xbf16> to vector<16x32xbf16>
    %cst_113 = arith.constant dense<0.000000e+00> : vector<50x32xf32>
    %143 = tpu.matmul %140, %142, %cst_113 {dimension_numbers = #tpu.dot_dimension_numbers<[1], [0], [0], [1], [0, 0, 1, 1], [], []>} : vector<50x16xbf16>, vector<16x32xbf16>, vector<50x32xf32> -> vector<50x32xf32>
    %144 = arith.addf %136, %143 : vector<50x32xf32>
    %c14 = arith.constant 14 : index
    %c0_114 = arith.constant 0 : index
    %c0_115 = arith.constant 0 : index
    %145 = vector.load %arg4[%c14, %c0_114, %c0_115] : memref<16x50x338xbf16, #tpu.memory_space<vmem>>, vector<1x50x338xbf16>
    %146 = vector.shape_cast %145 : vector<1x50x338xbf16> to vector<50x338xbf16>
    %cst_116 = arith.constant dense<0.000000e+00> : vector<50x16xf32>
    %147 = tpu.matmul %146, %31, %cst_116 {dimension_numbers = #tpu.dot_dimension_numbers<[1], [0], [0], [1], [0, 0, 1, 1], [], []>} : vector<50x338xbf16>, vector<338x16xbf16>, vector<50x16xf32> -> vector<50x16xf32>
    %148 = arith.truncf %147 : vector<50x16xf32> to vector<50x16xbf16>
    %c14_117 = arith.constant 14 : index
    %c0_118 = arith.constant 0 : index
    %c0_119 = arith.constant 0 : index
    %149 = vector.load %arg5[%c14_117, %c0_118, %c0_119] : memref<16x16x32xbf16, #tpu.memory_space<vmem>>, vector<1x16x32xbf16>
    %150 = vector.shape_cast %149 : vector<1x16x32xbf16> to vector<16x32xbf16>
    %cst_120 = arith.constant dense<0.000000e+00> : vector<50x32xf32>
    %151 = tpu.matmul %148, %150, %cst_120 {dimension_numbers = #tpu.dot_dimension_numbers<[1], [0], [0], [1], [0, 0, 1, 1], [], []>} : vector<50x16xbf16>, vector<16x32xbf16>, vector<50x32xf32> -> vector<50x32xf32>
    %152 = arith.addf %144, %151 : vector<50x32xf32>
    %c15 = arith.constant 15 : index
    %c0_121 = arith.constant 0 : index
    %c0_122 = arith.constant 0 : index
    %153 = vector.load %arg4[%c15, %c0_121, %c0_122] : memref<16x50x338xbf16, #tpu.memory_space<vmem>>, vector<1x50x338xbf16>
    %154 = vector.shape_cast %153 : vector<1x50x338xbf16> to vector<50x338xbf16>
    %cst_123 = arith.constant dense<0.000000e+00> : vector<50x16xf32>
    %155 = tpu.matmul %154, %31, %cst_123 {dimension_numbers = #tpu.dot_dimension_numbers<[1], [0], [0], [1], [0, 0, 1, 1], [], []>} : vector<50x338xbf16>, vector<338x16xbf16>, vector<50x16xf32> -> vector<50x16xf32>
    %156 = arith.truncf %155 : vector<50x16xf32> to vector<50x16xbf16>
    %c15_124 = arith.constant 15 : index
    %c0_125 = arith.constant 0 : index
    %c0_126 = arith.constant 0 : index
    %157 = vector.load %arg5[%c15_124, %c0_125, %c0_126] : memref<16x16x32xbf16, #tpu.memory_space<vmem>>, vector<1x16x32xbf16>
    %158 = vector.shape_cast %157 : vector<1x16x32xbf16> to vector<16x32xbf16>
    %cst_127 = arith.constant dense<0.000000e+00> : vector<50x32xf32>
    %159 = tpu.matmul %156, %158, %cst_127 {dimension_numbers = #tpu.dot_dimension_numbers<[1], [0], [0], [1], [0, 0, 1, 1], [], []>} : vector<50x16xbf16>, vector<16x32xbf16>, vector<50x32xf32> -> vector<50x32xf32>
    %160 = arith.addf %152, %159 : vector<50x32xf32>
    %c0_128 = arith.constant 0 : index
    %c0_129 = arith.constant 0 : index
    %161 = vector.load %arg6[%c0_128, %c0_129] : memref<1x32xf32, #tpu.memory_space<vmem>>, vector<1x32xf32>
    %c0_130 = arith.constant 0 : index
    %c0_131 = arith.constant 0 : index
    %162 = vector.load %arg7[%c0_130, %c0_131] : memref<1x32xf32, #tpu.memory_space<vmem>>, vector<1x32xf32>
    %cst_132 = arith.constant dense<0.000000e+00> : vector<32xf32>
    %163 = vector.multi_reduction <add>, %160, %cst_132 [0] : vector<50x32xf32> to vector<32xf32>
    %164 = vector.shape_cast %163 : vector<32xf32> to vector<1x32xf32>
    %cst_133 = arith.constant 2.000000e-02 : f32
    %165 = vector.broadcast %cst_133 : f32 to vector<1x32xf32>
    %166 = arith.mulf %164, %165 : vector<1x32xf32>
    %167 = arith.mulf %160, %160 : vector<50x32xf32>
    %cst_134 = arith.constant dense<0.000000e+00> : vector<32xf32>
    %168 = vector.multi_reduction <add>, %167, %cst_134 [0] : vector<50x32xf32> to vector<32xf32>
    %169 = vector.shape_cast %168 : vector<32xf32> to vector<1x32xf32>
    %cst_135 = arith.constant 2.000000e-02 : f32
    %170 = vector.broadcast %cst_135 : f32 to vector<1x32xf32>
    %171 = arith.mulf %169, %170 : vector<1x32xf32>
    %172 = arith.mulf %166, %166 : vector<1x32xf32>
    %173 = arith.subf %171, %172 : vector<1x32xf32>
    %cst_136 = arith.constant 9.99999974E-6 : f32
    %174 = vector.broadcast %cst_136 : f32 to vector<1x32xf32>
    %175 = arith.addf %173, %174 : vector<1x32xf32>
    %176 = math.rsqrt %175 : vector<1x32xf32>
    %177 = arith.mulf %161, %176 : vector<1x32xf32>
    %178 = arith.mulf %166, %177 : vector<1x32xf32>
    %179 = arith.subf %162, %178 : vector<1x32xf32>
    %180 = vector.broadcast %177 : vector<1x32xf32> to vector<50x32xf32>
    %181 = arith.mulf %160, %180 : vector<50x32xf32>
    %182 = vector.broadcast %179 : vector<1x32xf32> to vector<50x32xf32>
    %183 = arith.addf %181, %182 : vector<50x32xf32>
    %cst_137 = arith.constant 0.000000e+00 : f32
    %184 = vector.broadcast %cst_137 : f32 to vector<50x32xf32>
    %185 = arith.cmpf oge, %183, %184 : vector<50x32xf32>
    %cst_138 = arith.constant 2.000000e-01 : f32
    %186 = vector.broadcast %cst_138 : f32 to vector<50x32xf32>
    %187 = arith.mulf %186, %183 : vector<50x32xf32>
    %188 = arith.select %185, %183, %187 : vector<50x32xi1>, vector<50x32xf32>
    %c0_139 = arith.constant 0 : index
    %c0_140 = arith.constant 0 : index
    %189 = vector.load %arg8[%c0_139, %c0_140] : memref<50x32xf32, #tpu.memory_space<vmem>>, vector<50x32xf32>
    %190 = arith.mulf %188, %189 : vector<50x32xf32>
    %cst_141 = arith.constant dense<0.000000e+00> : vector<50xf32>
    %191 = vector.multi_reduction <add>, %190, %cst_141 [1] : vector<50x32xf32> to vector<50xf32>
    %192 = vector.shape_cast %191 : vector<50xf32> to vector<50x1xf32>
    %c0_142 = arith.constant 0 : index
    %c0_143 = arith.constant 0 : index
    %193 = vector.load %arg9[%c0_142, %c0_143] : memref<2x50xf32, #tpu.memory_space<vmem>>, vector<2x50xf32>
    %cst_144 = arith.constant dense<0.000000e+00> : vector<2x1xf32>
    %194 = tpu.matmul %193, %192, %cst_144 {dimension_numbers = #tpu.dot_dimension_numbers<[1], [0], [0], [1], [0, 0, 1, 1], [], []>} : vector<2x50xf32>, vector<50x1xf32>, vector<2x1xf32> -> vector<2x1xf32>
    %c0_145 = arith.constant 0 : index
    %c0_146 = arith.constant 0 : index
    %195 = vector.load %arg10[%c0_145, %c0_146] : memref<2x1xf32, #tpu.memory_space<vmem>>, vector<2x1xf32>
    tpu.vector_store %arg10[%c0_145, %c0_146], %194 {strides = array<i32>} : memref<2x1xf32, #tpu.memory_space<vmem>>, vector<2x1xf32>,
    return
  }
}

</mosaic_0001>

<llo_original>
// kernel: tile.7
$region0: #{tile.7}
  %s0 = inlined_call_operand.vmem [shape: f32[2,25,32], index: 0, kind: input, shape index: {}]
  %s1 = inlined_call_operand.vmem [shape: f32[50,32], index: 1, kind: output, shape index: {}]
  $region1: #{tile.7} parent=0
    #allocation0 [shape = 'u8[131072]{0}', space=vmem, size = 0x20000, scoped, tag = 'scoped mem for input reshape']
    %s3 = sshllo.u32 0, 2
    %s4 = smul.addr 2, 31
    %s5 = scalar_lea.vmem %s0, %s4
    %v6 = vld [vmem:[%s5] sm:%s3]
    %s7 = scalar_lea.vmem [#allocation0], 248
    %8 = vst [vmem:[%s7] sm:%s3] %v6
    %s9 = smul.addr 2, 30
    %s10 = scalar_lea.vmem %s0, %s9
    %v11 = vld [vmem:[%s10] sm:%s3]
    %s12 = scalar_lea.vmem [#allocation0], 240
    %13 = vst [vmem:[%s12] sm:%s3] %v11
    %s14 = smul.addr 2, 29
    %s15 = scalar_lea.vmem %s0, %s14
    %v16 = vld [vmem:[%s15] sm:%s3]
    %s17 = scalar_lea.vmem [#allocation0], 232
    %18 = vst [vmem:[%s17] sm:%s3] %v16
    %s19 = smul.addr 2, 28
    %s20 = scalar_lea.vmem %s0, %s19
    %v21 = vld [vmem:[%s20] sm:%s3]
    %s22 = scalar_lea.vmem [#allocation0], 224
    %23 = vst [vmem:[%s22] sm:%s3] %v21
    %s24 = smul.addr 2, 27
    %s25 = scalar_lea.vmem %s0, %s24
    %v26 = vld [vmem:[%s25] sm:%s3]
    %s27 = scalar_lea.vmem [#allocation0], 216
    %28 = vst [vmem:[%s27] sm:%s3] %v26
    %s29 = smul.addr 2, 26
    %s30 = scalar_lea.vmem %s0, %s29
    %v31 = vld [vmem:[%s30] sm:%s3]
    %s32 = scalar_lea.vmem [#allocation0], 208
    %33 = vst [vmem:[%s32] sm:%s3] %v31
    %s34 = smul.addr 2, 25
    %s35 = scalar_lea.vmem %s0, %s34
    %v36 = vld [vmem:[%s35] sm:%s3]
    %s37 = scalar_lea.vmem [#allocation0], 200
    %38 = vst [vmem:[%s37] sm:%s3] %v36
    %s39 = smul.addr 2, 24
    %s40 = scalar_lea.vmem %s0, %s39
    %v41 = vld [vmem:[%s40] sm:%s3]
    %s42 = scalar_lea.vmem [#allocation0], 192
    %43 = vst [vmem:[%s42] sm:%s3] %v41
    %s44 = smul.addr 2, 23
    %s45 = scalar_lea.vmem %s0, %s44
    %v46 = vld [vmem:[%s45] sm:%s3]
    %s47 = scalar_lea.vmem [#allocation0], 184
    %48 = vst [vmem:[%s47] sm:%s3] %v46
    %s49 = smul.addr 2, 22
    %s50 = scalar_lea.vmem %s0, %s49
    %v51 = vld [vmem:[%s50] sm:%s3]
    %s52 = scalar_lea.vmem [#allocation0], 176
    %53 = vst [vmem:[%s52] sm:%s3] %v51
    %s54 = smul.addr 2, 21
    %s55 = scalar_lea.vmem %s0, %s54
    %v56 = vld [vmem:[%s55] sm:%s3]
    %s57 = scalar_lea.vmem [#allocation0], 168
    %58 = vst [vmem:[%s57] sm:%s3] %v56
    %s59 = smul.addr 2, 20
    %s60 = scalar_lea.vmem %s0, %s59
    %v61 = vld [vmem:[%s60] sm:%s3]
    %s62 = scalar_lea.vmem [#allocation0], 160
    %63 = vst [vmem:[%s62] sm:%s3] %v61
    %s64 = smul.addr 2, 19
    %s65 = scalar_lea.vmem %s0, %s64
    %v66 = vld [vmem:[%s65] sm:%s3]
    %s67 = scalar_lea.vmem [#allocation0], 152
    %68 = vst [vmem:[%s67] sm:%s3] %v66
    %s69 = smul.addr 2, 18
    %s70 = scalar_lea.vmem %s0, %s69
    %v71 = vld [vmem:[%s70] sm:%s3]
    %s72 = scalar_lea.vmem [#allocation0], 144
    %73 = vst [vmem:[%s72] sm:%s3] %v71
    %s74 = smul.addr 2, 17
    %s75 = scalar_lea.vmem %s0, %s74
    %v76 = vld [vmem:[%s75] sm:%s3]
    %s77 = scalar_lea.vmem [#allocation0], 136
    %78 = vst [vmem:[%s77] sm:%s3] %v76
    %s79 = smul.addr 2, 16
    %s80 = scalar_lea.vmem %s0, %s79
    %v81 = vld [vmem:[%s80] sm:%s3]
    %s82 = scalar_lea.vmem [#allocation0], 128
    %83 = vst [vmem:[%s82] sm:%s3] %v81
    %s84 = smul.addr 2, 15
    %s85 = scalar_lea.vmem %s0, %s84
    %v86 = vld [vmem:[%s85] sm:%s3]
    %s87 = scalar_lea.vmem [#allocation0], 120
    %88 = vst [vmem:[%s87] sm:%s3] %v86
    %s89 = smul.addr 2, 14
    %s90 = scalar_lea.vmem %s0, %s89
    %v91 = vld [vmem:[%s90] sm:%s3]
    %s92 = scalar_lea.vmem [#allocation0], 112
    %93 = vst [vmem:[%s92] sm:%s3] %v91
    %s94 = smul.addr 2, 13
    %s95 = scalar_lea.vmem %s0, %s94
    %v96 = vld [vmem:[%s95] sm:%s3]
    %s97 = scalar_lea.vmem [#allocation0], 104
    %98 = vst [vmem:[%s97] sm:%s3] %v96
    %s99 = smul.addr 2, 12
    %s100 = scalar_lea.vmem %s0, %s99
    %v101 = vld [vmem:[%s100] sm:%s3]
    %s102 = scalar_lea.vmem [#allocation0], 96
    %103 = vst [vmem:[%s102] sm:%s3] %v101
    %s104 = smul.addr 2, 11
    %s105 = scalar_lea.vmem %s0, %s104
    %v106 = vld [vmem:[%s105] sm:%s3]
    %s107 = scalar_lea.vmem [#allocation0], 88
    %108 = vst [vmem:[%s107] sm:%s3] %v106
    %s109 = smul.addr 2, 10
    %s110 = scalar_lea.vmem %s0, %s109
    %v111 = vld [vmem:[%s110] sm:%s3]
    %s112 = scalar_lea.vmem [#allocation0], 80
    %113 = vst [vmem:[%s112] sm:%s3] %v111
    %s114 = smul.addr 2, 9
    %s115 = scalar_lea.vmem %s0, %s114
    %v116 = vld [vmem:[%s115] sm:%s3]
    %s117 = scalar_lea.vmem [#allocation0], 72
    %118 = vst [vmem:[%s117] sm:%s3] %v116
    %s119 = smul.addr 2, 8
    %s120 = scalar_lea.vmem %s0, %s119
    %v121 = vld [vmem:[%s120] sm:%s3]
    %s122 = scalar_lea.vmem [#allocation0], 64
    %123 = vst [vmem:[%s122] sm:%s3] %v121
    %s124 = smul.addr 2, 7
    %s125 = scalar_lea.vmem %s0, %s124
    %v126 = vld [vmem:[%s125] sm:%s3]
    %s127 = scalar_lea.vmem [#allocation0], 56
    %128 = vst [vmem:[%s127] sm:%s3] %v126
    %s129 = smul.addr 2, 6
    %s130 = scalar_lea.vmem %s0, %s129
    %v131 = vld [vmem:[%s130] sm:%s3]
    %s132 = scalar_lea.vmem [#allocation0], 48
    %133 = vst [vmem:[%s132] sm:%s3] %v131
    %s134 = smul.addr 2, 5
    %s135 = scalar_lea.vmem %s0, %s134
    %v136 = vld [vmem:[%s135] sm:%s3]
    %s137 = scalar_lea.vmem [#allocation0], 40
    %138 = vst [vmem:[%s137] sm:%s3] %v136
    %s139 = smul.addr 2, 4
    %s140 = scalar_lea.vmem %s0, %s139
    %v141 = vld [vmem:[%s140] sm:%s3]
    %s142 = scalar_lea.vmem [#allocation0], 32
    %143 = vst [vmem:[%s142] sm:%s3] %v141
    %s144 = smul.addr 2, 3
    %s145 = scalar_lea.vmem %s0, %s144
    %v146 = vld [vmem:[%s145] sm:%s3]
    %s147 = scalar_lea.vmem [#allocation0], 24
    %148 = vst [vmem:[%s147] sm:%s3] %v146
    %s149 = smul.addr 2, 2
    %s150 = scalar_lea.vmem %s0, %s149
    %v151 = vld [vmem:[%s150] sm:%s3]
    %s152 = scalar_lea.vmem [#allocation0], 16
    %153 = vst [vmem:[%s152] sm:%s3] %v151
    %s154 = scalar_lea.vmem %s0, 2
    %v155 = vld [vmem:[%s154] sm:%s3]
    %s156 = scalar_lea.vmem [#allocation0], 8
    %157 = vst [vmem:[%s156] sm:%s3] %v155
    %v158 = vld [vmem:[%s0] sm:%s3]
    %159 = vst [vmem:[#allocation0] sm:%s3] %v158
    %v160 = vld [vmem:[#allocation0] ss:$8 sm:$0xf]
    %v161 = vld [vmem:[#allocation0] ss:$8 sm:$0xf0]
    %vm162 = vcmask 1047556
    %v163 = vsel %vm162, %v161, %v160
    %vm164 = vcmask 203776
    %165 = vst.msk [vmem:[%s1] sm:$0xff] %vm164, %v163
    %s166 = scalar_lea.vmem [#allocation0], 64
    %v167 = vld [vmem:[%s166] ss:$8 sm:$0xf]
    %s168 = scalar_lea.vmem [#allocation0], 64
    %v169 = vld [vmem:[%s168] ss:$8 sm:$0xf0]
    %vm170 = vcmask 1047556
    %v171 = vsel %vm170, %v169, %v167
    %vm172 = vcmask 203776
    %s173 = scalar_lea.vmem %s1, 8
    %174 = vst.msk [vmem:[%s173] sm:$0xff] %vm172, %v171
    %s175 = scalar_lea.vmem [#allocation0], 128
    %v176 = vld [vmem:[%s175] ss:$8 sm:$0xf]
    %s177 = scalar_lea.vmem [#allocation0], 128
    %v178 = vld [vmem:[%s177] ss:$8 sm:$0xf0]
    %vm179 = vcmask 1047556
    %v180 = vsel %vm179, %v178, %v176
    %vm181 = vcmask 203776
    %s182 = scalar_lea.vmem %s1, 16
    %183 = vst.msk [vmem:[%s182] sm:$0xff] %vm181, %v180
    %s184 = scalar_lea.vmem [#allocation0], 192
    %v185 = vld [vmem:[%s184] ss:$8 sm:$0xf]
    %s186 = scalar_lea.vmem [#allocation0], 192
    %v187 = vld [vmem:[%s186] ss:$8 sm:$0xf0]
    %vm188 = vcmask 1047556
    %v189 = vsel %vm188, %v187, %v185
    %vm190 = vcmask 203776
    %s191 = scalar_lea.vmem %s1, 24
    %192 = vst.msk [vmem:[%s191] sm:$0xff] %vm190, %v189
    %s193 = scalar_lea.vmem [#allocation0], 1
    %v194 = vld [vmem:[%s193] ss:$8 sm:$0xf]
    %s195 = scalar_lea.vmem [#allocation0], 1
    %v196 = vld [vmem:[%s195] ss:$8 sm:$0xf0]
    %vm197 = vcmask 1047556
    %v198 = vsel %vm197, %v196, %v194
    %199 = vrot.lane.b32.xlu0 %v198, 25
    %v200 = vpop.permute.xlu0 %199
    %vm201 = vcmask 408776
    %202 = vst.msk [vmem:[%s1] sm:$0xff] %vm201, %v200
    %s203 = scalar_lea.vmem [#allocation0], 65
    %v204 = vld [vmem:[%s203] ss:$8 sm:$0xf]
    %s205 = scalar_lea.vmem [#allocation0], 65
    %v206 = vld [vmem:[%s205] ss:$8 sm:$0xf0]
    %vm207 = vcmask 1047556
    %v208 = vsel %vm207, %v206, %v204
    %209 = vrot.lane.b32.xlu0 %v208, 25
    %v210 = vpop.permute.xlu0 %209
    %vm211 = vcmask 408776
    %s212 = scalar_lea.vmem %s1, 8
    %213 = vst.msk [vmem:[%s212] sm:$0xff] %vm211, %v210
    %s214 = scalar_lea.vmem [#allocation0], 129
    %v215 = vld [vmem:[%s214] ss:$8 sm:$0xf]
    %s216 = scalar_lea.vmem [#allocation0], 129
    %v217 = vld [vmem:[%s216] ss:$8 sm:$0xf0]
    %vm218 = vcmask 1047556
    %v219 = vsel %vm218, %v217, %v215
    %220 = vrot.lane.b32.xlu0 %v219, 25
    %v221 = vpop.permute.xlu0 %220
    %vm222 = vcmask 408776
    %s223 = scalar_lea.vmem %s1, 16
    %224 = vst.msk [vmem:[%s223] sm:$0xff] %vm222, %v221
    %s225 = scalar_lea.vmem [#allocation0], 193
    %v226 = vld [vmem:[%s225] ss:$8 sm:$0xf]
    %s227 = scalar_lea.vmem [#allocation0], 193
    %v228 = vld [vmem:[%s227] ss:$8 sm:$0xf0]
    %vm229 = vcmask 1047556
    %v230 = vsel %vm229, %v228, %v226
    %231 = vrot.lane.b32.xlu0 %v230, 25
    %v232 = vpop.permute.xlu0 %231
    %vm233 = vcmask 408776
    %s234 = scalar_lea.vmem %s1, 24
    %235 = vst.msk [vmem:[%s234] sm:$0xff] %vm233, %v232

// kernel: discriminator_forward.1
$region0: #{discriminator_forward.1}
  #allocation0 [shape = 'u32[]', space=smem, size = 0x4, offset = 0x4, fixed_abs, tag = 'smem constant byte address 0x4 - core index']
  #allocation1 [shape = 'u32[144,128]{1,0:T(1,128)}', space=vmem, size = 0x12000, scoped, tag = 'internal scratch']
  %s0 = inlined_call_operand.vmem [shape: bf16[338,16], index: 0, kind: input, shape index: {}]
  %s1 = inlined_call_operand.vmem [shape: bf16[16,16], index: 1, kind: input, shape index: {}]
  %s2 = inlined_call_operand.vmem [shape: f32[1,16], index: 2, kind: input, shape index: {}]
  %s3 = inlined_call_operand.vmem [shape: f32[1,16], index: 3, kind: input, shape index: {}]
  %s4 = inlined_call_operand.vmem [shape: bf16[16,50,338], index: 4, kind: input, shape index: {}]
  %s5 = inlined_call_operand.vmem [shape: bf16[16,16,32], index: 5, kind: input, shape index: {}]
  %s6 = inlined_call_operand.vmem [shape: f32[1,32], index: 6, kind: input, shape index: {}]
  %s7 = inlined_call_operand.vmem [shape: f32[1,32], index: 7, kind: input, shape index: {}]
  %s8 = inlined_call_operand.vmem [shape: f32[50,32], index: 8, kind: input, shape index: {}]
  %s9 = inlined_call_operand.vmem [shape: f32[2,50], index: 9, kind: input, shape index: {}]
  %s10 = inlined_call_operand.vmem [shape: f32[2,1], index: 10, kind: output, shape index: {}]
  %s11 = sld [smem:[#allocation0]]
  $region50: #{discriminator_forward.1} parent=0
    _
  %s13 = ssub.s32 1, %s11
  %s14 = scalar_select 0, %s13, %s11
  // Predicated region
  $region2: #{discriminator_forward.1} parent=0 // pred_check
    _
  $region3: #{discriminator_forward.1} parent=0 // pred_check_branch
    %16 = sbr.rel (0) target = $region5
  $region4: #{discriminator_forward.1} parent=0 // pred_region
    _
  $region5: #{discriminator_forward.1} parent=0 // pred_fallthru
    _
  // Predicated region
  $region6: #{discriminator_forward.1} parent=0 // pred_check
    _
  $region7: #{discriminator_forward.1} parent=0 // pred_check_branch
    %18 = sbr.rel (0) target = $region9
  $region8: #{discriminator_forward.1} parent=0 // pred_region
    _
  $region9: #{discriminator_forward.1} parent=0 // pred_fallthru
    _
  // Predicated region
  $region10: #{discriminator_forward.1} parent=0 // pred_check
    _
  $region11: #{discriminator_forward.1} parent=0 // pred_check_branch
    %20 = sbr.rel (0) target = $region13
  $region12: #{discriminator_forward.1} parent=0 // pred_region
    _
  $region13: #{discriminator_forward.1} parent=0 // pred_fallthru
    _
  // Predicated region
  $region14: #{discriminator_forward.1} parent=0 // pred_check
    _
  $region15: #{discriminator_forward.1} parent=0 // pred_check_branch
    %22 = sbr.rel (0) target = $region17
  $region16: #{discriminator_forward.1} parent=0 // pred_region
    _
  $region17: #{discriminator_forward.1} parent=0 // pred_fallthru
    _
  // Predicated region
  $region18: #{discriminator_forward.1} parent=0 // pred_check
    _
  $region19: #{discriminator_forward.1} parent=0 // pred_check_branch
    %24 = sbr.rel (0) target = $region21
  $region20: #{discriminator_forward.1} parent=0 // pred_region
    _
  $region21: #{discriminator_forward.1} parent=0 // pred_fallthru
    _
  // Predicated region
  $region22: #{discriminator_forward.1} parent=0 // pred_check
    _
  $region23: #{discriminator_forward.1} parent=0 // pred_check_branch
    %26 = sbr.rel (0) target = $region25
  $region24: #{discriminator_forward.1} parent=0 // pred_region
    _
  $region25: #{discriminator_forward.1} parent=0 // pred_fallthru
    _
  // Predicated region
  $region26: #{discriminator_forward.1} parent=0 // pred_check
    _
  $region27: #{discriminator_forward.1} parent=0 // pred_check_branch
    %28 = sbr.rel (0) target = $region29
  $region28: #{discriminator_forward.1} parent=0 // pred_region
    _
  $region29: #{discriminator_forward.1} parent=0 // pred_fallthru
    _
  // Predicated region
  $region30: #{discriminator_forward.1} parent=0 // pred_check
    _
  $region31: #{discriminator_forward.1} parent=0 // pred_check_branch
    %30 = sbr.rel (0) target = $region33
  $region32: #{discriminator_forward.1} parent=0 // pred_region
    _
  $region33: #{discriminator_forward.1} parent=0 // pred_fallthru
    _
  // Predicated region
  $region34: #{discriminator_forward.1} parent=0 // pred_check
    _
  $region35: #{discriminator_forward.1} parent=0 // pred_check_branch
    %32 = sbr.rel (0) target = $region37
  $region36: #{discriminator_forward.1} parent=0 // pred_region
    _
  $region37: #{discriminator_forward.1} parent=0 // pred_fallthru
    _
  // Predicated region
  $region38: #{discriminator_forward.1} parent=0 // pred_check
    _
  $region39: #{discriminator_forward.1} parent=0 // pred_check_branch
    %34 = sbr.rel (0) target = $region41
  $region40: #{discriminator_forward.1} parent=0 // pred_region
    _
  $region41: #{discriminator_forward.1} parent=0 // pred_fallthru
    _
  %v36 = vld [vmem:[%s0] sm:$0xf]
  %v37 = vld [vmem:[%s0 + $0x4] sm:$0xf]
  %v38 = vld [vmem:[%s0 + $0x8] sm:$0xf]
  %v39 = vld [vmem:[%s0 + $0xc] sm:$0xf]
  %v40 = vld [vmem:[%s0 + $0x10] sm:$0xf]
  %v41 = vld [vmem:[%s0 + $0x14] sm:$0xf]
  %v42 = vld [vmem:[%s0 + $0x18] sm:$0xf]
  %v43 = vld [vmem:[%s0 + $0x1c] sm:$0xf]
  %v44 = vld [vmem:[%s0 + $0x20] sm:$0xf]
  %v45 = vld [vmem:[%s0 + $0x24] sm:$0xf]
  %v46 = vld [vmem:[%s0 + $0x28] sm:$0xf]
  %v47 = vld [vmem:[%s0 + $0x2c] sm:$0xf]
  %v48 = vld [vmem:[%s0 + $0x30] sm:$0xf]
  %v49 = vld [vmem:[%s0 + $0x34] sm:$0xf]
  %v50 = vld [vmem:[%s0 + $0x38] sm:$0xf]
  %v51 = vld [vmem:[%s0 + $0x3c] sm:$0xf]
  %v52 = vld [vmem:[%s0 + $0x40] sm:$0xf]
  %v53 = vld [vmem:[%s0 + $0x44] sm:$0xf]
  %v54 = vld [vmem:[%s0 + $0x48] sm:$0xf]
  %v55 = vld [vmem:[%s0 + $0x4c] sm:$0xf]
  %v56 = vld [vmem:[%s0 + $0x50] sm:$0xf]
  %v57 = vld [vmem:[%s0 + $0x54] sm:$0xf]
  %v58 = vld [vmem:[%s0 + $0x58] sm:$0xf]
  %v59 = vld [vmem:[%s0 + $0x5c] sm:$0xf]
  %v60 = vld [vmem:[%s0 + $0x60] sm:$0xf]
  %v61 = vld [vmem:[%s0 + $0x64] sm:$0xf]
  %v62 = vld [vmem:[%s0 + $0x68] sm:$0xf]
  %v63 = vld [vmem:[%s0 + $0x6c] sm:$0xf]
  %v64 = vld [vmem:[%s0 + $0x70] sm:$0xf]
  %v65 = vld [vmem:[%s0 + $0x74] sm:$0xf]
  %v66 = vld [vmem:[%s0 + $0x78] sm:$0xf]
  %v67 = vld [vmem:[%s0 + $0x7c] sm:$0xf]
  %v68 = vld [vmem:[%s0 + $0x80] sm:$0xf]
  %v69 = vld [vmem:[%s0 + $0x84] sm:$0xf]
  %v70 = vld [vmem:[%s0 + $0x88] sm:$0xf]
  %v71 = vld [vmem:[%s0 + $0x8c] sm:$0xf]
  %v72 = vld [vmem:[%s0 + $0x90] sm:$0xf]
  %v73 = vld [vmem:[%s0 + $0x94] sm:$0xf]
  %v74 = vld [vmem:[%s0 + $0x98] sm:$0xf]
  %v75 = vld [vmem:[%s0 + $0x9c] sm:$0xf]
  %v76 = vld [vmem:[%s0 + $0xa0] sm:$0xf]
  %v77 = vld [vmem:[%s0 + $0xa4] sm:$0xf]
  %v78 = vld [vmem:[%s0 + $0xa8] sm:$0x1]
  %v79 = vld [vmem:[%s1] sm:$0xf]
  %v80 = vld [vmem:[%s1 + $0x4] sm:$0xf]
  %v124 = vunpack.c.l.b16 %v36
  %v125 = vunpack.c.l.b16 %v37
  %v126 = vunpack.c.l.b16 %v38
  %v127 = vunpack.c.l.b16 %v39
  %v128 = vunpack.c.l.b16 %v40
  %v129 = vunpack.c.l.b16 %v41
  %v130 = vunpack.c.l.b16 %v42
  %v131 = vunpack.c.l.b16 %v43
  %v132 = vunpack.c.l.b16 %v44
  %v133 = vunpack.c.l.b16 %v45
  %v134 = vunpack.c.l.b16 %v46
  %v135 = vunpack.c.l.b16 %v47
  %v136 = vunpack.c.l.b16 %v48
  %v137 = vunpack.c.l.b16 %v49
  %v138 = vunpack.c.l.b16 %v50
  %v139 = vunpack.c.l.b16 %v51
  %v140 = vunpack.c.l.b16 %v52
  %v141 = vunpack.c.l.b16 %v53
  %v142 = vunpack.c.l.b16 %v54
  %v143 = vunpack.c.l.b16 %v55
  %v144 = vunpack.c.l.b16 %v56
  %v145 = vunpack.c.l.b16 %v57
  %v146 = vunpack.c.l.b16 %v58
  %v147 = vunpack.c.l.b16 %v59
  %v148 = vunpack.c.l.b16 %v60
  %v149 = vunpack.c.l.b16 %v61
  %v150 = vunpack.c.l.b16 %v62
  %v151 = vunpack.c.l.b16 %v63
  %v152 = vunpack.c.l.b16 %v64
  %v153 = vunpack.c.l.b16 %v65
  %v154 = vunpack.c.l.b16 %v66
  %v155 = vunpack.c.l.b16 %v67
  %v156 = vunpack.c.l.b16 %v68
  %v157 = vunpack.c.l.b16 %v69
  %v158 = vunpack.c.l.b16 %v70
  %v159 = vunpack.c.l.b16 %v71
  %v160 = vunpack.c.l.b16 %v72
  %v161 = vunpack.c.l.b16 %v73
  %v162 = vunpack.c.l.b16 %v74
  %v163 = vunpack.c.l.b16 %v75
  %v164 = vunpack.c.l.b16 %v76
  %v165 = vunpack.c.l.b16 %v77
  %v166 = vunpack.c.l.b16 %v78
  %v167 = vpack.c.b16 %v125, %v124
  %v168 = vpack.c.b16 %v127, %v126
  %v169 = vpack.c.b16 %v129, %v128
  %v170 = vpack.c.b16 %v131, %v130
  %v171 = vpack.c.b16 %v133, %v132
  %v172 = vpack.c.b16 %v135, %v134
  %v173 = vpack.c.b16 %v137, %v136
  %v174 = vpack.c.b16 %v139, %v138
  %v175 = vpack.c.b16 %v141, %v140
  %v176 = vpack.c.b16 %v143, %v142
  %v177 = vpack.c.b16 %v145, %v144
  %v178 = vpack.c.b16 %v147, %v146
  %v179 = vpack.c.b16 %v149, %v148
  %v180 = vpack.c.b16 %v151, %v150
  %v181 = vpack.c.b16 %v153, %v152
  %v182 = vpack.c.b16 %v155, %v154
  %v183 = vpack.c.b16 %v157, %v156
  %v184 = vpack.c.b16 %v159, %v158
  %v185 = vpack.c.b16 %v161, %v160
  %v186 = vpack.c.b16 %v163, %v162
  %v187 = vpack.c.b16 %v165, %v164
  %v188 = vpack.c.b16 %v166, %v166
  %v191 = vunpack.c.l.b16 %v79
  %v192 = vunpack.c.l.b16 %v80
  %v193 = vpack.c.b16 %v192, %v191
  %vm195 = vcmask 130048
  %v197 = vsel %vm195, %v167, 0
  %v200 = vsel %vm195, %v168, 0
  %v203 = vsel %vm195, %v169, 0
  %v206 = vsel %vm195, %v170, 0
  %v209 = vsel %vm195, %v171, 0
  %v212 = vsel %vm195, %v172, 0
  %v215 = vsel %vm195, %v173, 0
  %v218 = vsel %vm195, %v174, 0
  %v221 = vsel %vm195, %v175, 0
  %v224 = vsel %vm195, %v176, 0
  %v227 = vsel %vm195, %v177, 0
  %v230 = vsel %vm195, %v178, 0
  %v233 = vsel %vm195, %v179, 0
  %v236 = vsel %vm195, %v180, 0
  %v239 = vsel %vm195, %v181, 0
  %v242 = vsel %vm195, %v182, 0
  %v245 = vsel %vm195, %v183, 0
  %v248 = vsel %vm195, %v184, 0
  %v251 = vsel %vm195, %v185, 0
  %v254 = vsel %vm195, %v186, 0
  %v257 = vsel %vm195, %v187, 0
  %v260 = vsel %vm195, %v188, 0
  %262 = vmatprep.subr.bf16.mxu0 0
  %263 = vmatpush1.bf16.msra.mxu0 %v193
  %264 = vmatprep.subr.bf16.mxu0 0
  %265 = vmatpush1.bf16.msra.mxu0 0
  %266 = vmatprep.subr.bf16.mxu0 0
  %267 = vmatpush1.bf16.msra.mxu0 0
  %268 = vmatprep.subr.bf16.mxu0 0
  %269 = vmatpush1.bf16.msra.mxu0 0
  %270 = vmatprep.subr.bf16.mxu0 0
  %271 = vmatpush1.bf16.msra.mxu0 0
  %272 = vmatprep.subr.bf16.mxu0 0
  %273 = vmatpush1.bf16.msra.mxu0 0
  %274 = vmatprep.subr.bf16.mxu0 0
  %275 = vmatpush1.bf16.msra.mxu0 0
  %276 = vmatprep.subr.bf16.mxu0 0
  %277 = vmatpush1.bf16.msra.mxu0 0
  %278 = vmatprep.subr.bf16.mxu0 0
  %279 = vmatpush1.bf16.msra.mxu0 0
  %280 = vmatprep.subr.bf16.mxu0 0
  %281 = vmatpush1.bf16.msra.mxu0 0
  %282 = vmatprep.subr.bf16.mxu0 0
  %283 = vmatpush1.bf16.msra.mxu0 0
  %284 = vmatprep.subr.bf16.mxu0 0
  %285 = vmatpush1.bf16.msra.mxu0 0
  %286 = vmatprep.subr.bf16.mxu0 0
  %287 = vmatpush1.bf16.msra.mxu0 0
  %288 = vmatprep.subr.bf16.mxu0 0
  %289 = vmatpush1.bf16.msra.mxu0 0
  %290 = vmatprep.subr.bf16.mxu0 0
  %291 = vmatpush1.bf16.msra.mxu0 0
  %292 = vmatprep.subr.bf16.mxu0 0
  %293 = vmatpush1.bf16.msra.mxu0 0
  %294 = vmatprep.mubr.bf16.mxu0 0
  %295 = vmatmul.mubr.bf16.gmra.mrb[0].mxu0 %v197
  %v296 = vpop.f32.mrb[0].mxu0
  %v297 = vadd.f32 0.0, %v296
  %v298 = vpop.f32.mrb[0].mxu0
  %v299 = vpop.f32.mrb[0].mxu0
  %v300 = vadd.f32 0.0, %v299
  %v301 = vpop.f32.mrb[0].mxu0
  %302 = vmatprep.mubr.bf16.mxu0 0
  %303 = vmatmul.mubr.bf16.gmra.mrb[0].mxu0 %v200
  %v304 = vpop.f32.mrb[0].mxu0
  %v305 = vadd.f32 0.0, %v304
  %v306 = vpop.f32.mrb[0].mxu0
  %v307 = vpop.f32.mrb[0].mxu0
  %v308 = vadd.f32 0.0, %v307
  %v309 = vpop.f32.mrb[0].mxu0
  %310 = vmatprep.mubr.bf16.mxu0 0
  %311 = vmatmul.mubr.bf16.gmra.mrb[0].mxu0 %v203
  %v312 = vpop.f32.mrb[0].mxu0
  %v313 = vadd.f32 0.0, %v312
  %v314 = vpop.f32.mrb[0].mxu0
  %v315 = vpop.f32.mrb[0].mxu0
  %v316 = vadd.f32 0.0, %v315
  %v317 = vpop.f32.mrb[0].mxu0
  %318 = vmatprep.mubr.bf16.mxu0 0
  %319 = vmatmul.mubr.bf16.gmra.mrb[0].mxu0 %v206
  %v320 = vpop.f32.mrb[0].mxu0
  %v321 = vadd.f32 0.0, %v320
  %v322 = vpop.f32.mrb[0].mxu0
  %v323 = vpop.f32.mrb[0].mxu0
  %v324 = vadd.f32 0.0, %v323
  %v325 = vpop.f32.mrb[0].mxu0
  %326 = vmatprep.mubr.bf16.mxu0 0
  %327 = vmatmul.mubr.bf16.gmra.mrb[0].mxu0 %v209
  %v328 = vpop.f32.mrb[0].mxu0
  %v329 = vadd.f32 0.0, %v328
  %v330 = vpop.f32.mrb[0].mxu0
  %v331 = vpop.f32.mrb[0].mxu0
  %v332 = vadd.f32 0.0, %v331
  %v333 = vpop.f32.mrb[0].mxu0
  %334 = vmatprep.mubr.bf16.mxu0 0
  %335 = vmatmul.mubr.bf16.gmra.mrb[0].mxu0 %v212
  %v336 = vpop.f32.mrb[0].mxu0
  %v337 = vadd.f32 0.0, %v336
  %v338 = vpop.f32.mrb[0].mxu0
  %v339 = vpop.f32.mrb[0].mxu0
  %v340 = vadd.f32 0.0, %v339
  %v341 = vpop.f32.mrb[0].mxu0
  %342 = vmatprep.mubr.bf16.mxu0 0
  %343 = vmatmul.mubr.bf16.gmra.mrb[0].mxu0 %v215
  %v344 = vpop.f32.mrb[0].mxu0
  %v345 = vadd.f32 0.0, %v344
  %v346 = vpop.f32.mrb[0].mxu0
  %v347 = vpop.f32.mrb[0].mxu0
  %v348 = vadd.f32 0.0, %v347
  %v349 = vpop.f32.mrb[0].mxu0
  %350 = vmatprep.mubr.bf16.mxu0 0
  %351 = vmatmul.mubr.bf16.gmra.mrb[0].mxu0 %v218
  %v352 = vpop.f32.mrb[0].mxu0
  %v353 = vadd.f32 0.0, %v352
  %v354 = vpop.f32.mrb[0].mxu0
  %v355 = vpop.f32.mrb[0].mxu0
  %v356 = vadd.f32 0.0, %v355
  %v357 = vpop.f32.mrb[0].mxu0
  %358 = vmatprep.mubr.bf16.mxu0 0
  %359 = vmatmul.mubr.bf16.gmra.mrb[0].mxu0 %v221
  %v360 = vpop.f32.mrb[0].mxu0
  %v361 = vadd.f32 0.0, %v360
  %v362 = vpop.f32.mrb[0].mxu0
  %v363 = vpop.f32.mrb[0].mxu0
  %v364 = vadd.f32 0.0, %v363
  %v365 = vpop.f32.mrb[0].mxu0
  %366 = vmatprep.mubr.bf16.mxu0 0
  %367 = vmatmul.mubr.bf16.gmra.mrb[0].mxu0 %v224
  %v368 = vpop.f32.mrb[0].mxu0
  %v369 = vadd.f32 0.0, %v368
  %v370 = vpop.f32.mrb[0].mxu0
  %v371 = vpop.f32.mrb[0].mxu0
  %v372 = vadd.f32 0.0, %v371
  %v373 = vpop.f32.mrb[0].mxu0
  %374 = vmatprep.mubr.bf16.mxu0 0
  %375 = vmatmul.mubr.bf16.gmra.mrb[0].mxu0 %v227
  %v376 = vpop.f32.mrb[0].mxu0
  %v377 = vadd.f32 0.0, %v376
  %v378 = vpop.f32.mrb[0].mxu0
  %v379 = vpop.f32.mrb[0].mxu0
  %v380 = vadd.f32 0.0, %v379
  %v381 = vpop.f32.mrb[0].mxu0
  %382 = vmatprep.mubr.bf16.mxu0 0
  %383 = vmatmul.mubr.bf16.gmra.mrb[0].mxu0 %v230
  %v384 = vpop.f32.mrb[0].mxu0
  %v385 = vadd.f32 0.0, %v384
  %v386 = vpop.f32.mrb[0].mxu0
  %v387 = vpop.f32.mrb[0].mxu0
  %v388 = vadd.f32 0.0, %v387
  %v389 = vpop.f32.mrb[0].mxu0
  %390 = vmatprep.mubr.bf16.mxu0 0
  %391 = vmatmul.mubr.bf16.gmra.mrb[0].mxu0 %v233
  %v392 = vpop.f32.mrb[0].mxu0
  %v393 = vadd.f32 0.0, %v392
  %v394 = vpop.f32.mrb[0].mxu0
  %v395 = vpop.f32.mrb[0].mxu0
  %v396 = vadd.f32 0.0, %v395
  %v397 = vpop.f32.mrb[0].mxu0
  %398 = vmatprep.mubr.bf16.mxu0 0
  %399 = vmatmul.mubr.bf16.gmra.mrb[0].mxu0 %v236
  %v400 = vpop.f32.mrb[0].mxu0
  %v401 = vadd.f32 0.0, %v400
  %v402 = vpop.f32.mrb[0].mxu0
  %v403 = vpop.f32.mrb[0].mxu0
  %v404 = vadd.f32 0.0, %v403
  %v405 = vpop.f32.mrb[0].mxu0
  %406 = vmatprep.mubr.bf16.mxu0 0
  %407 = vmatmul.mubr.bf16.gmra.mrb[0].mxu0 %v239
  %v408 = vpop.f32.mrb[0].mxu0
  %v409 = vadd.f32 0.0, %v408
  %v410 = vpop.f32.mrb[0].mxu0
  %v411 = vpop.f32.mrb[0].mxu0
  %v412 = vadd.f32 0.0, %v411
  %v413 = vpop.f32.mrb[0].mxu0
  %414 = vmatprep.mubr.bf16.mxu0 0
  %415 = vmatmul.mubr.bf16.gmra.mrb[0].mxu0 %v242
  %v416 = vpop.f32.mrb[0].mxu0
  %v417 = vadd.f32 0.0, %v416
  %v418 = vpop.f32.mrb[0].mxu0
  %v419 = vpop.f32.mrb[0].mxu0
  %v420 = vadd.f32 0.0, %v419
  %v421 = vpop.f32.mrb[0].mxu0
  %422 = vmatprep.mubr.bf16.mxu0 0
  %423 = vmatmul.mubr.bf16.gmra.mrb[0].mxu0 %v245
  %v424 = vpop.f32.mrb[0].mxu0
  %v425 = vadd.f32 0.0, %v424
  %v426 = vpop.f32.mrb[0].mxu0
  %v427 = vpop.f32.mrb[0].mxu0
  %v428 = vadd.f32 0.0, %v427
  %v429 = vpop.f32.mrb[0].mxu0
  %430 = vmatprep.mubr.bf16.mxu0 0
  %431 = vmatmul.mubr.bf16.gmra.mrb[0].mxu0 %v248
  %v432 = vpop.f32.mrb[0].mxu0
  %v433 = vadd.f32 0.0, %v432
  %v434 = vpop.f32.mrb[0].mxu0
  %v435 = vpop.f32.mrb[0].mxu0
  %v436 = vadd.f32 0.0, %v435
  %v437 = vpop.f32.mrb[0].mxu0
  %438 = vmatprep.mubr.bf16.mxu0 0
  %439 = vmatmul.mubr.bf16.gmra.mrb[0].mxu0 %v251
  %v440 = vpop.f32.mrb[0].mxu0
  %v441 = vadd.f32 0.0, %v440
  %v442 = vpop.f32.mrb[0].mxu0
  %v443 = vpop.f32.mrb[0].mxu0
  %v444 = vadd.f32 0.0, %v443
  %v445 = vpop.f32.mrb[0].mxu0
  %446 = vmatprep.mubr.bf16.mxu0 0
  %447 = vmatmul.mubr.bf16.gmra.mrb[0].mxu0 %v254
  %v448 = vpop.f32.mrb[0].mxu0
  %v449 = vadd.f32 0.0, %v448
  %v450 = vpop.f32.mrb[0].mxu0
  %v451 = vpop.f32.mrb[0].mxu0
  %v452 = vadd.f32 0.0, %v451
  %v453 = vpop.f32.mrb[0].mxu0
  %454 = vmatprep.mubr.bf16.mxu0 0
  %455 = vmatmul.mubr.bf16.gmra.mrb[0].mxu0 %v257
  %v456 = vpop.f32.mrb[0].mxu0
  %v457 = vadd.f32 0.0, %v456
  %v458 = vpop.f32.mrb[0].mxu0
  %v459 = vpop.f32.mrb[0].mxu0
  %v460 = vadd.f32 0.0, %v459
  %v461 = vpop.f32.mrb[0].mxu0
  %462 = vmatprep.mubr.bf16.mxu0 0
  %463 = vmatmul.mubr.bf16.gmra.mrb[0].mxu0 %v260
  %v464 = vpop.f32.mrb[0].mxu0
  %v465 = vadd.f32 0.0, %v464
  %v466 = vpop.f32.mrb[0].mxu0
  %v467 = vpop.f32.mrb[0].mxu0
  %v468 = vpop.f32.mrb[0].mxu0
  %469 = vdwg.mxu0
  %v470 = vld [vmem:[%s2] sm:$0x1]
  %v471 = vld [vmem:[%s3] sm:$0x1]
  %v472 = vsel %vm195, %v297, 0.0
  %v473 = vsel %vm195, %v300, 0.0
  %v474 = vadd.f32 %v472, %v473
  %v475 = vsel %vm195, %v305, 0.0
  %v476 = vadd.f32 %v474, %v475
  %v477 = vsel %vm195, %v308, 0.0
  %v478 = vadd.f32 %v476, %v477
  %v479 = vsel %vm195, %v313, 0.0
  %v480 = vadd.f32 %v478, %v479
  %v481 = vsel %vm195, %v316, 0.0
  %v482 = vadd.f32 %v480, %v481
  %v483 = vsel %vm195, %v321, 0.0
  %v484 = vadd.f32 %v482, %v483
  %v485 = vsel %vm195, %v324, 0.0
  %v486 = vadd.f32 %v484, %v485
  %v487 = vsel %vm195, %v329, 0.0
  %v488 = vadd.f32 %v486, %v487
  %v489 = vsel %vm195, %v332, 0.0
  %v490 = vadd.f32 %v488, %v489
  %v491 = vsel %vm195, %v337, 0.0
  %v492 = vadd.f32 %v490, %v491
  %v493 = vsel %vm195, %v340, 0.0
  %v494 = vadd.f32 %v492, %v493
  %v495 = vsel %vm195, %v345, 0.0
  %v496 = vadd.f32 %v494, %v495
  %v497 = vsel %vm195, %v348, 0.0
  %v498 = vadd.f32 %v496, %v497
  %v499 = vsel %vm195, %v353, 0.0
  %v500 = vadd.f32 %v498, %v499
  %v501 = vsel %vm195, %v356, 0.0
  %v502 = vadd.f32 %v500, %v501
  %v503 = vsel %vm195, %v361, 0.0
  %v504 = vadd.f32 %v502, %v503
  %v505 = vsel %vm195, %v364, 0.0
  %v506 = vadd.f32 %v504, %v505
  %v507 = vsel %vm195, %v369, 0.0
  %v508 = vadd.f32 %v506, %v507
  %v509 = vsel %vm195, %v372, 0.0
  %v510 = vadd.f32 %v508, %v509
  %v511 = vsel %vm195, %v377, 0.0
  %v512 = vadd.f32 %v510, %v511
  %v513 = vsel %vm195, %v380, 0.0
  %v514 = vadd.f32 %v512, %v513
  %v515 = vsel %vm195, %v385, 0.0
  %v516 = vadd.f32 %v514, %v515
  %v517 = vsel %vm195, %v388, 0.0
  %v518 = vadd.f32 %v516, %v517
  %v519 = vsel %vm195, %v393, 0.0
  %v520 = vadd.f32 %v518, %v519
  %v521 = vsel %vm195, %v396, 0.0
  %v522 = vadd.f32 %v520, %v521
  %v523 = vsel %vm195, %v401, 0.0
  %v524 = vadd.f32 %v522, %v523
  %v525 = vsel %vm195, %v404, 0.0
  %v526 = vadd.f32 %v524, %v525
  %v527 = vsel %vm195, %v409, 0.0
  %v528 = vadd.f32 %v526, %v527
  %v529 = vsel %vm195, %v412, 0.0
  %v530 = vadd.f32 %v528, %v529
  %v531 = vsel %vm195, %v417, 0.0
  %v532 = vadd.f32 %v530, %v531
  %v533 = vsel %vm195, %v420, 0.0
  %v534 = vadd.f32 %v532, %v533
  %v535 = vsel %vm195, %v425, 0.0
  %v536 = vadd.f32 %v534, %v535
  %v537 = vsel %vm195, %v428, 0.0
  %v538 = vadd.f32 %v536, %v537
  %v539 = vsel %vm195, %v433, 0.0
  %v540 = vadd.f32 %v538, %v539
  %v541 = vsel %vm195, %v436, 0.0
  %v542 = vadd.f32 %v540, %v541
  %v543 = vsel %vm195, %v441, 0.0
  %v544 = vadd.f32 %v542, %v543
  %v545 = vsel %vm195, %v444, 0.0
  %v546 = vadd.f32 %v544, %v545
  %v547 = vsel %vm195, %v449, 0.0
  %v548 = vadd.f32 %v546, %v547
  %v549 = vsel %vm195, %v452, 0.0
  %v550 = vadd.f32 %v548, %v549
  %v551 = vsel %vm195, %v457, 0.0
  %v552 = vadd.f32 %v550, %v551
  %v553 = vsel %vm195, %v460, 0.0
  %v554 = vadd.f32 %v552, %v553
  %vm555 = vcmask 123904
  %v556 = vsel %vm555, %v465, 0.0
  %v557 = vadd.f32 %v554, %v556
  %v558 = vrot.slane %v557, 4
  %v559 = vadd.f32 %v557, %v558
  %v560 = vrot.slane %v559, 2
  %v561 = vadd.f32 %v559, %v560
  %v562 = vrot.slane %v561, 1
  %v563 = vadd.f32 %v561, %v562
  %v564 = vmul.f32 %v563, 0.00295858
  %v565 = vmul.f32 %v297, %v297
  %v566 = vmul.f32 %v300, %v300
  %v567 = vmul.f32 %v305, %v305
  %v568 = vmul.f32 %v308, %v308
  %v569 = vmul.f32 %v313, %v313
  %v570 = vmul.f32 %v316, %v316
  %v571 = vmul.f32 %v321, %v321
  %v572 = vmul.f32 %v324, %v324
  %v573 = vmul.f32 %v329, %v329
  %v574 = vmul.f32 %v332, %v332
  %v575 = vmul.f32 %v337, %v337
  %v576 = vmul.f32 %v340, %v340
  %v577 = vmul.f32 %v345, %v345
  %v578 = vmul.f32 %v348, %v348
  %v579 = vmul.f32 %v353, %v353
  %v580 = vmul.f32 %v356, %v356
  %v581 = vmul.f32 %v361, %v361
  %v582 = vmul.f32 %v364, %v364
  %v583 = vmul.f32 %v369, %v369
  %v584 = vmul.f32 %v372, %v372
  %v585 = vmul.f32 %v377, %v377
  %v586 = vmul.f32 %v380, %v380
  %v587 = vmul.f32 %v385, %v385
  %v588 = vmul.f32 %v388, %v388
  %v589 = vmul.f32 %v393, %v393
  %v590 = vmul.f32 %v396, %v396
  %v591 = vmul.f32 %v401, %v401
  %v592 = vmul.f32 %v404, %v404
  %v593 = vmul.f32 %v409, %v409
  %v594 = vmul.f32 %v412, %v412
  %v595 = vmul.f32 %v417, %v417
  %v596 = vmul.f32 %v420, %v420
  %v597 = vmul.f32 %v425, %v425
  %v598 = vmul.f32 %v428, %v428
  %v599 = vmul.f32 %v433, %v433
  %v600 = vmul.f32 %v436, %v436
  %v601 = vmul.f32 %v441, %v441
  %v602 = vmul.f32 %v444, %v444
  %v603 = vmul.f32 %v449, %v449
  %v604 = vmul.f32 %v452, %v452
  %v605 = vmul.f32 %v457, %v457
  %v606 = vmul.f32 %v460, %v460
  %v607 = vmul.f32 %v465, %v465
  %v608 = vsel %vm195, %v565, 0.0
  %v609 = vsel %vm195, %v566, 0.0
  %v610 = vadd.f32 %v608, %v609
  %v611 = vsel %vm195, %v567, 0.0
  %v612 = vadd.f32 %v610, %v611
  %v613 = vsel %vm195, %v568, 0.0
  %v614 = vadd.f32 %v612, %v613
  %v615 = vsel %vm195, %v569, 0.0
  %v616 = vadd.f32 %v614, %v615
  %v617 = vsel %vm195, %v570, 0.0
  %v618 = vadd.f32 %v616, %v617
  %v619 = vsel %vm195, %v571, 0.0
  %v620 = vadd.f32 %v618, %v619
  %v621 = vsel %vm195, %v572, 0.0
  %v622 = vadd.f32 %v620, %v621
  %v623 = vsel %vm195, %v573, 0.0
  %v624 = vadd.f32 %v622, %v623
  %v625 = vsel %vm195, %v574, 0.0
  %v626 = vadd.f32 %v624, %v625
  %v627 = vsel %vm195, %v575, 0.0
  %v628 = vadd.f32 %v626, %v627
  %v629 = vsel %vm195, %v576, 0.0
  %v630 = vadd.f32 %v628, %v629
  %v631 = vsel %vm195, %v577, 0.0
  %v632 = vadd.f32 %v630, %v631
  %v633 = vsel %vm195, %v578, 0.0
  %v634 = vadd.f32 %v632, %v633
  %v635 = vsel %vm195, %v579, 0.0
  %v636 = vadd.f32 %v634, %v635
  %v637 = vsel %vm195, %v580, 0.0
  %v638 = vadd.f32 %v636, %v637
  %v639 = vsel %vm195, %v581, 0.0
  %v640 = vadd.f32 %v638, %v639
  %v641 = vsel %vm195, %v582, 0.0
  %v642 = vadd.f32 %v640, %v641
  %v643 = vsel %vm195, %v583, 0.0
  %v644 = vadd.f32 %v642, %v643
  %v645 = vsel %vm195, %v584, 0.0
  %v646 = vadd.f32 %v644, %v645
  %v647 = vsel %vm195, %v585, 0.0
  %v648 = vadd.f32 %v646, %v647
  %v649 = vsel %vm195, %v586, 0.0
  %v650 = vadd.f32 %v648, %v649
  %v651 = vsel %vm195, %v587, 0.0
  %v652 = vadd.f32 %v650, %v651
  %v653 = vsel %vm195, %v588, 0.0
  %v654 = vadd.f32 %v652, %v653
  %v655 = vsel %vm195, %v589, 0.0
  %v656 = vadd.f32 %v654, %v655
  %v657 = vsel %vm195, %v590, 0.0
  %v658 = vadd.f32 %v656, %v657
  %v659 = vsel %vm195, %v591, 0.0
  %v660 = vadd.f32 %v658, %v659
  %v661 = vsel %vm195, %v592, 0.0
  %v662 = vadd.f32 %v660, %v661
  %v663 = vsel %vm195, %v593, 0.0
  %v664 = vadd.f32 %v662, %v663
  %v665 = vsel %vm195, %v594, 0.0
  %v666 = vadd.f32 %v664, %v665
  %v667 = vsel %vm195, %v595, 0.0
  %v668 = vadd.f32 %v666, %v667
  %v669 = vsel %vm195, %v596, 0.0
  %v670 = vadd.f32 %v668, %v669
  %v671 = vsel %vm195, %v597, 0.0
  %v672 = vadd.f32 %v670, %v671
  %v673 = vsel %vm195, %v598, 0.0
  %v674 = vadd.f32 %v672, %v673
  %v675 = vsel %vm195, %v599, 0.0
  %v676 = vadd.f32 %v674, %v675
  %v677 = vsel %vm195, %v600, 0.0
  %v678 = vadd.f32 %v676, %v677
  %v679 = vsel %vm195, %v601, 0.0
  %v680 = vadd.f32 %v678, %v679
  %v681 = vsel %vm195, %v602, 0.0
  %v682 = vadd.f32 %v680, %v681
  %v683 = vsel %vm195, %v603, 0.0
  %v684 = vadd.f32 %v682, %v683
  %v685 = vsel %vm195, %v604, 0.0
  %v686 = vadd.f32 %v684, %v685
  %v687 = vsel %vm195, %v605, 0.0
  %v688 = vadd.f32 %v686, %v687
  %v689 = vsel %vm195, %v606, 0.0
  %v690 = vadd.f32 %v688, %v689
  %v691 = vsel %vm555, %v607, 0.0
  %v692 = vadd.f32 %v690, %v691
  %v693 = vrot.slane %v692, 4
  %v694 = vadd.f32 %v692, %v693
  %v695 = vrot.slane %v694, 2
  %v696 = vadd.f32 %v694, %v695
  %v697 = vrot.slane %v696, 1
  %v698 = vadd.f32 %v696, %v697
  %v699 = vmul.f32 %v698, 0.00295858
  %v700 = vmul.f32 %v564, %v564
  %v701 = vsub.f32 %v699, %v700
  %v702 = vadd.f32 %v701, 1e-05
  %v703 = vrsqrt.pop %v702
  %v704 = vmul.f32 %v470, %v703
  %v705 = vmul.f32 %v564, %v704
  %v706 = vsub.f32 %v471, %v705
  %v708 = vlaneseq
  %v709 = vshrl.u32 %v708, 7
  %v710 = vsub.s32 0, %v709
  %v711 = vrot.slane %v704, %v710
  %v713 = vmul.f32 %v297, %v711
  %v714 = vmul.f32 %v300, %v711
  %v715 = vmul.f32 %v305, %v711
  %v716 = vmul.f32 %v308, %v711
  %v717 = vmul.f32 %v313, %v711
  %v718 = vmul.f32 %v316, %v711
  %v719 = vmul.f32 %v321, %v711
  %v720 = vmul.f32 %v324, %v711
  %v721 = vmul.f32 %v329, %v711
  %v722 = vmul.f32 %v332, %v711
  %v723 = vmul.f32 %v337, %v711
  %v724 = vmul.f32 %v340, %v711
  %v725 = vmul.f32 %v345, %v711
  %v726 = vmul.f32 %v348, %v711
  %v727 = vmul.f32 %v353, %v711
  %v728 = vmul.f32 %v356, %v711
  %v729 = vmul.f32 %v361, %v711
  %v730 = vmul.f32 %v364, %v711
  %v731 = vmul.f32 %v369, %v711
  %v732 = vmul.f32 %v372, %v711
  %v733 = vmul.f32 %v377, %v711
  %v734 = vmul.f32 %v380, %v711
  %v735 = vmul.f32 %v385, %v711
  %v736 = vmul.f32 %v388, %v711
  %v737 = vmul.f32 %v393, %v711
  %v738 = vmul.f32 %v396, %v711
  %v739 = vmul.f32 %v401, %v711
  %v740 = vmul.f32 %v404, %v711
  %v741 = vmul.f32 %v409, %v711
  %v742 = vmul.f32 %v412, %v711
  %v743 = vmul.f32 %v417, %v711
  %v744 = vmul.f32 %v420, %v711
  %v745 = vmul.f32 %v425, %v711
  %v746 = vmul.f32 %v428, %v711
  %v747 = vmul.f32 %v433, %v711
  %v748 = vmul.f32 %v436, %v711
  %v749 = vmul.f32 %v441, %v711
  %v750 = vmul.f32 %v444, %v711
  %v751 = vmul.f32 %v449, %v711
  %v752 = vmul.f32 %v452, %v711
  %v753 = vmul.f32 %v457, %v711
  %v754 = vmul.f32 %v460, %v711
  %v755 = vmul.f32 %v465, %v711
  %v757 = vlaneseq
  %v758 = vshrl.u32 %v757, 7
  %v759 = vsub.s32 0, %v758
  %v760 = vrot.slane %v706, %v759
  %v762 = vadd.f32 %v713, %v760
  %v763 = vadd.f32 %v714, %v760
  %v764 = vadd.f32 %v715, %v760
  %v765 = vadd.f32 %v716, %v760
  %v766 = vadd.f32 %v717, %v760
  %v767 = vadd.f32 %v718, %v760
  %v768 = vadd.f32 %v719, %v760
  %v769 = vadd.f32 %v720, %v760
  %v770 = vadd.f32 %v721, %v760
  %v771 = vadd.f32 %v722, %v760
  %v772 = vadd.f32 %v723, %v760
  %v773 = vadd.f32 %v724, %v760
  %v774 = vadd.f32 %v725, %v760
  %v775 = vadd.f32 %v726, %v760
  %v776 = vadd.f32 %v727, %v760
  %v777 = vadd.f32 %v728, %v760
  %v778 = vadd.f32 %v729, %v760
  %v779 = vadd.f32 %v730, %v760
  %v780 = vadd.f32 %v731, %v760
  %v781 = vadd.f32 %v732, %v760
  %v782 = vadd.f32 %v733, %v760
  %v783 = vadd.f32 %v734, %v760
  %v784 = vadd.f32 %v735, %v760
  %v785 = vadd.f32 %v736, %v760
  %v786 = vadd.f32 %v737, %v760
  %v787 = vadd.f32 %v738, %v760
  %v788 = vadd.f32 %v739, %v760
  %v789 = vadd.f32 %v740, %v760
  %v790 = vadd.f32 %v741, %v760
  %v791 = vadd.f32 %v742, %v760
  %v792 = vadd.f32 %v743, %v760
  %v793 = vadd.f32 %v744, %v760
  %v794 = vadd.f32 %v745, %v760
  %v795 = vadd.f32 %v746, %v760
  %v796 = vadd.f32 %v747, %v760
  %v797 = vadd.f32 %v748, %v760
  %v798 = vadd.f32 %v749, %v760
  %v799 = vadd.f32 %v750, %v760
  %v800 = vadd.f32 %v751, %v760
  %v801 = vadd.f32 %v752, %v760
  %v802 = vadd.f32 %v753, %v760
  %v803 = vadd.f32 %v754, %v760
  %v804 = vadd.f32 %v755, %v760
  %vm805 = vcmp.ge.f32.partialorder %v762, 0.0
  %vm806 = vcmp.ge.f32.partialorder %v763, 0.0
  %vm807 = vcmp.ge.f32.partialorder %v764, 0.0
  %vm808 = vcmp.ge.f32.partialorder %v765, 0.0
  %vm809 = vcmp.ge.f32.partialorder %v766, 0.0
  %vm810 = vcmp.ge.f32.partialorder %v767, 0.0
  %vm811 = vcmp.ge.f32.partialorder %v768, 0.0
  %vm812 = vcmp.ge.f32.partialorder %v769, 0.0
  %vm813 = vcmp.ge.f32.partialorder %v770, 0.0
  %vm814 = vcmp.ge.f32.partialorder %v771, 0.0
  %vm815 = vcmp.ge.f32.partialorder %v772, 0.0
  %vm816 = vcmp.ge.f32.partialorder %v773, 0.0
  %vm817 = vcmp.ge.f32.partialorder %v774, 0.0
  %vm818 = vcmp.ge.f32.partialorder %v775, 0.0
  %vm819 = vcmp.ge.f32.partialorder %v776, 0.0
  %vm820 = vcmp.ge.f32.partialorder %v777, 0.0
  %vm821 = vcmp.ge.f32.partialorder %v778, 0.0
  %vm822 = vcmp.ge.f32.partialorder %v779, 0.0
  %vm823 = vcmp.ge.f32.partialorder %v780, 0.0
  %vm824 = vcmp.ge.f32.partialorder %v781, 0.0
  %vm825 = vcmp.ge.f32.partialorder %v782, 0.0
  %vm826 = vcmp.ge.f32.partialorder %v783, 0.0
  %vm827 = vcmp.ge.f32.partialorder %v784, 0.0
  %vm828 = vcmp.ge.f32.partialorder %v785, 0.0
  %vm829 = vcmp.ge.f32.partialorder %v786, 0.0
  %vm830 = vcmp.ge.f32.partialorder %v787, 0.0
  %vm831 = vcmp.ge.f32.partialorder %v788, 0.0
  %vm832 = vcmp.ge.f32.partialorder %v789, 0.0
  %vm833 = vcmp.ge.f32.partialorder %v790, 0.0
  %vm834 = vcmp.ge.f32.partialorder %v791, 0.0
  %vm835 = vcmp.ge.f32.partialorder %v792, 0.0
  %vm836 = vcmp.ge.f32.partialorder %v793, 0.0
  %vm837 = vcmp.ge.f32.partialorder %v794, 0.0
  %vm838 = vcmp.ge.f32.partialorder %v795, 0.0
  %vm839 = vcmp.ge.f32.partialorder %v796, 0.0
  %vm840 = vcmp.ge.f32.partialorder %v797, 0.0
  %vm841 = vcmp.ge.f32.partialorder %v798, 0.0
  %vm842 = vcmp.ge.f32.partialorder %v799, 0.0
  %vm843 = vcmp.ge.f32.partialorder %v800, 0.0
  %vm844 = vcmp.ge.f32.partialorder %v801, 0.0
  %vm845 = vcmp.ge.f32.partialorder %v802, 0.0
  %vm846 = vcmp.ge.f32.partialorder %v803, 0.0
  %vm847 = vcmp.ge.f32.partialorder %v804, 0.0
  %v848 = vmul.f32 %v762, 0.2
  %v849 = vmul.f32 %v763, 0.2
  %v850 = vmul.f32 %v764, 0.2
  %v851 = vmul.f32 %v765, 0.2
  %v852 = vmul.f32 %v766, 0.2
  %v853 = vmul.f32 %v767, 0.2
  %v854 = vmul.f32 %v768, 0.2
  %v855 = vmul.f32 %v769, 0.2
  %v856 = vmul.f32 %v770, 0.2
  %v857 = vmul.f32 %v771, 0.2
  %v858 = vmul.f32 %v772, 0.2
  %v859 = vmul.f32 %v773, 0.2
  %v860 = vmul.f32 %v774, 0.2
  %v861 = vmul.f32 %v775, 0.2
  %v862 = vmul.f32 %v776, 0.2
  %v863 = vmul.f32 %v777, 0.2
  %v864 = vmul.f32 %v778, 0.2
  %v865 = vmul.f32 %v779, 0.2
  %v866 = vmul.f32 %v780, 0.2
  %v867 = vmul.f32 %v781, 0.2
  %v868 = vmul.f32 %v782, 0.2
  %v869 = vmul.f32 %v783, 0.2
  %v870 = vmul.f32 %v784, 0.2
  %v871 = vmul.f32 %v785, 0.2
  %v872 = vmul.f32 %v786, 0.2
  %v873 = vmul.f32 %v787, 0.2
  %v874 = vmul.f32 %v788, 0.2
  %v875 = vmul.f32 %v789, 0.2
  %v876 = vmul.f32 %v790, 0.2
  %v877 = vmul.f32 %v791, 0.2
  %v878 = vmul.f32 %v792, 0.2
  %v879 = vmul.f32 %v793, 0.2
  %v880 = vmul.f32 %v794, 0.2
  %v881 = vmul.f32 %v795, 0.2
  %v882 = vmul.f32 %v796, 0.2
  %v883 = vmul.f32 %v797, 0.2
  %v884 = vmul.f32 %v798, 0.2
  %v885 = vmul.f32 %v799, 0.2
  %v886 = vmul.f32 %v800, 0.2
  %v887 = vmul.f32 %v801, 0.2
  %v888 = vmul.f32 %v802, 0.2
  %v889 = vmul.f32 %v803, 0.2
  %v890 = vmul.f32 %v804, 0.2
  %v891 = vsel %vm805, %v762, %v848
  %v892 = vsel %vm806, %v763, %v849
  %v893 = vsel %vm807, %v764, %v850
  %v894 = vsel %vm808, %v765, %v851
  %v895 = vsel %vm809, %v766, %v852
  %v896 = vsel %vm810, %v767, %v853
  %v897 = vsel %vm811, %v768, %v854
  %v898 = vsel %vm812, %v769, %v855
  %v899 = vsel %vm813, %v770, %v856
  %v900 = vsel %vm814, %v771, %v857
  %v901 = vsel %vm815, %v772, %v858
  %v902 = vsel %vm816, %v773, %v859
  %v903 = vsel %vm817, %v774, %v860
  %v904 = vsel %vm818, %v775, %v861
  %v905 = vsel %vm819, %v776, %v862
  %v906 = vsel %vm820, %v777, %v863
  %v907 = vsel %vm821, %v778, %v864
  %v908 = vsel %vm822, %v779, %v865
  %v909 = vsel %vm823, %v780, %v866
  %v910 = vsel %vm824, %v781, %v867
  %v911 = vsel %vm825, %v782, %v868
  %v912 = vsel %vm826, %v783, %v869
  %v913 = vsel %vm827, %v784, %v870
  %v914 = vsel %vm828, %v785, %v871
  %v915 = vsel %vm829, %v786, %v872
  %v916 = vsel %vm830, %v787, %v873
  %v917 = vsel %vm831, %v788, %v874
  %v918 = vsel %vm832, %v789, %v875
  %v919 = vsel %vm833, %v790, %v876
  %v920 = vsel %vm834, %v791, %v877
  %v921 = vsel %vm835, %v792, %v878
  %v922 = vsel %vm836, %v793, %v879
  %v923 = vsel %vm837, %v794, %v880
  %v924 = vsel %vm838, %v795, %v881
  %v925 = vsel %vm839, %v796, %v882
  %v926 = vsel %vm840, %v797, %v883
  %v927 = vsel %vm841, %v798, %v884
  %v928 = vsel %vm842, %v799, %v885
  %v929 = vsel %vm843, %v800, %v886
  %v930 = vsel %vm844, %v801, %v887
  %v931 = vsel %vm845, %v802, %v888
  %v932 = vsel %vm846, %v803, %v889
  %v933 = vsel %vm847, %v804, %v890
  %v934 = vpack.c.bf16 %v892, %v891
  %v935 = vpack.c.bf16 %v894, %v893
  %v936 = vpack.c.bf16 %v896, %v895
  %v937 = vpack.c.bf16 %v898, %v897
  %v938 = vpack.c.bf16 %v900, %v899
  %v939 = vpack.c.bf16 %v902, %v901
  %v940 = vpack.c.bf16 %v904, %v903
  %v941 = vpack.c.bf16 %v906, %v905
  %v942 = vpack.c.bf16 %v908, %v907
  %v943 = vpack.c.bf16 %v910, %v909
  %v944 = vpack.c.bf16 %v912, %v911
  %v945 = vpack.c.bf16 %v914, %v913
  %v946 = vpack.c.bf16 %v916, %v915
  %v947 = vpack.c.bf16 %v918, %v917
  %v948 = vpack.c.bf16 %v920, %v919
  %v949 = vpack.c.bf16 %v922, %v921
  %v950 = vpack.c.bf16 %v924, %v923
  %v951 = vpack.c.bf16 %v926, %v925
  %v952 = vpack.c.bf16 %v928, %v927
  %v953 = vpack.c.bf16 %v930, %v929
  %v954 = vpack.c.bf16 %v932, %v931
  %v955 = vpack.c.bf16 %v933, %v933
  %v956 = vld [vmem:[%s4] sm:$0xff]
  %v957 = vld [vmem:[%s4 + $0x8] sm:$0xf]
  %v958 = vld [vmem:[%s4 + $0xc] sm:$0xff]
  %v959 = vld [vmem:[%s4 + $0x14] sm:$0xf]
  %v960 = vld [vmem:[%s4 + $0x18] sm:$0xff]
  %v961 = vld [vmem:[%s4 + $0x20] sm:$0xf]
  %v962 = vld [vmem:[%s4 + $0x24] sm:$0xff]
  %v963 = vld [vmem:[%s4 + $0x2c] sm:$0xf]
  %v964 = vld [vmem:[%s4 + $0x30] sm:$0xff]
  %v965 = vld [vmem:[%s4 + $0x38] sm:$0xf]
  %v966 = vld [vmem:[%s4 + $0x3c] sm:$0xff]
  %v967 = vld [vmem:[%s4 + $0x44] sm:$0xf]
  %v968 = vld [vmem:[%s4 + $0x48] sm:$0x11]
  %v969 = vld [vmem:[%s4 + $0x50] sm:$0x1]
  %v984 = vunpack.c.l.b16 %v956
  %v985 = vunpack.c.h.b16 %v956
  %v986 = vunpack.c.l.b16 %v957
  %v987 = vunpack.c.l.b16 %v958
  %v988 = vunpack.c.h.b16 %v958
  %v989 = vunpack.c.l.b16 %v959
  %v990 = vunpack.c.l.b16 %v960
  %v991 = vunpack.c.h.b16 %v960
  %v992 = vunpack.c.l.b16 %v961
  %v993 = vunpack.c.l.b16 %v962
  %v994 = vunpack.c.h.b16 %v962
  %v995 = vunpack.c.l.b16 %v963
  %v996 = vunpack.c.l.b16 %v964
  %v997 = vunpack.c.h.b16 %v964
  %v998 = vunpack.c.l.b16 %v965
  %v999 = vunpack.c.l.b16 %v966
  %v1000 = vunpack.c.h.b16 %v966
  %v1001 = vunpack.c.l.b16 %v967
  %v1002 = vunpack.c.l.b16 %v968
  %v1003 = vunpack.c.h.b16 %v968
  %v1004 = vunpack.c.l.b16 %v969
  %v1005 = vpack.c.b16 %v987, %v984
  %v1006 = vpack.c.b16 %v988, %v985
  %v1007 = vpack.c.b16 %v989, %v986
  %v1008 = vpack.c.b16 %v993, %v990
  %v1009 = vpack.c.b16 %v994, %v991
  %v1010 = vpack.c.b16 %v995, %v992
  %v1011 = vpack.c.b16 %v999, %v996
  %v1012 = vpack.c.b16 %v1000, %v997
  %v1013 = vpack.c.b16 %v1001, %v998
  %v1014 = vpack.c.b16 %v1002, %v1002
  %v1015 = vpack.c.b16 %v1003, %v1003
  %v1016 = vpack.c.b16 %v1004, %v1004
  %vm1025 = vcmask 670720
  %v1027 = vsel %vm1025, %v1007, 0
  %v1030 = vsel %vm1025, %v1010, 0
  %v1033 = vsel %vm1025, %v1013, 0
  %v1036 = vsel %vm1025, %v1016, 0
  %vm1038 = vcmask 1040384
  %v1040 = vsel %vm1038, %v955, 0
  %1042 = vmatprep.subr.bf16.mxu0 0
  %1043 = vmatpush1.bf16.msra.mxu0 %v934
  %1044 = vmatprep.subr.bf16.mxu0 0
  %1045 = vmatpush1.bf16.msra.mxu0 %v935
  %1046 = vmatprep.subr.bf16.mxu0 0
  %1047 = vmatpush1.bf16.msra.mxu0 %v936
  %1048 = vmatprep.subr.bf16.mxu0 0
  %1049 = vmatpush1.bf16.msra.mxu0 %v937
  %1050 = vmatprep.subr.bf16.mxu0 0
  %1051 = vmatpush1.bf16.msra.mxu0 %v938
  %1052 = vmatprep.subr.bf16.mxu0 0
  %1053 = vmatpush1.bf16.msra.mxu0 %v939
  %1054 = vmatprep.subr.bf16.mxu0 0
  %1055 = vmatpush1.bf16.msra.mxu0 %v940
  %1056 = vmatprep.subr.bf16.mxu0 0
  %1057 = vmatpush1.bf16.msra.mxu0 %v941
  %1058 = vmatprep.subr.bf16.mxu0 0
  %1059 = vmatpush1.bf16.msra.mxu0 %v942
  %1060 = vmatprep.subr.bf16.mxu0 0
  %1061 = vmatpush1.bf16.msra.mxu0 %v943
  %1062 = vmatprep.subr.bf16.mxu0 0
  %1063 = vmatpush1.bf16.msra.mxu0 %v944
  %1064 = vmatprep.subr.bf16.mxu0 0
  %1065 = vmatpush1.bf16.msra.mxu0 %v945
  %1066 = vmatprep.subr.bf16.mxu0 0
  %1067 = vmatpush1.bf16.msra.mxu0 %v946
  %1068 = vmatprep.subr.bf16.mxu0 0
  %1069 = vmatpush1.bf16.msra.mxu0 %v947
  %1070 = vmatprep.subr.bf16.mxu0 0
  %1071 = vmatpush1.bf16.msra.mxu0 %v948
  %1072 = vmatprep.subr.bf16.mxu0 0
  %1073 = vmatpush1.bf16.msra.mxu0 %v949
  %1074 = vmatprep.mubr.bf16.mxu0 %v1006
  %1075 = vmatmul.mubr.bf16.gmra.mrb[0].mxu0 %v1005
  %v1076 = vpop.f32.mrb[0].mxu0
  %v1077 = vadd.f32 0.0, %v1076
  %v1078 = vpop.f32.mrb[0].mxu0
  %v1079 = vpop.f32.mrb[0].mxu0
  %v1080 = vadd.f32 0.0, %v1079
  %v1081 = vpop.f32.mrb[0].mxu0
  %1082 = vmatprep.mubr.bf16.mxu0 %v1009
  %1083 = vmatmul.mubr.bf16.gmra.mrb[0].mxu0 %v1008
  %v1084 = vpop.f32.mrb[0].mxu0
  %v1085 = vadd.f32 0.0, %v1084
  %v1086 = vpop.f32.mrb[0].mxu0
  %v1087 = vpop.f32.mrb[0].mxu0
  %v1088 = vadd.f32 0.0, %v1087
  %v1089 = vpop.f32.mrb[0].mxu0
  %1090 = vmatprep.mubr.bf16.mxu0 %v1012
  %1091 = vmatmul.mubr.bf16.gmra.mrb[0].mxu0 %v1011
  %v1092 = vpop.f32.mrb[0].mxu0
  %v1093 = vadd.f32 0.0, %v1092
  %v1094 = vpop.f32.mrb[0].mxu0
  %v1095 = vpop.f32.mrb[0].mxu0
  %v1096 = vadd.f32 0.0, %v1095
  %v1097 = vpop.f32.mrb[0].mxu0
  %1098 = vmatprep.mubr.bf16.mxu0 %v1015
  %1099 = vmatmul.mubr.bf16.gmra.mrb[0].mxu0 %v1014
  %v1100 = vpop.f32.mrb[0].mxu0
  %v1101 = vadd.f32 0.0, %v1100
  %v1102 = vpop.f32.mrb[0].mxu0
  %v1103 = vpop.f32.mrb[0].mxu0
  %v1104 = vpop.f32.mrb[0].mxu0
  %1105 = vdwg.mxu0
  %1106 = vmatprep.subr.bf16.mxu0 0
  %1107 = vmatpush1.bf16.msra.mxu0 %v950
  %1108 = vmatprep.subr.bf16.mxu0 0
  %1109 = vmatpush1.bf16.msra.mxu0 %v951
  %1110 = vmatprep.subr.bf16.mxu0 0
  %1111 = vmatpush1.bf16.msra.mxu0 %v952
  %1112 = vmatprep.subr.bf16.mxu0 0
  %1113 = vmatpush1.bf16.msra.mxu0 %v953
  %1114 = vmatprep.subr.bf16.mxu0 0
  %1115 = vmatpush1.bf16.msra.mxu0 %v954
  %1116 = vmatprep.subr.bf16.mxu0 0
  %1117 = vmatpush1.bf16.msra.mxu0 %v1040
  %1118 = vmatprep.subr.bf16.mxu0 0
  %1119 = vmatpush1.bf16.msra.mxu0 0
  %1120 = vmatprep.subr.bf16.mxu0 0
  %1121 = vmatpush1.bf16.msra.mxu0 0
  %1122 = vmatprep.subr.bf16.mxu0 0
  %1123 = vmatpush1.bf16.msra.mxu0 0
  %1124 = vmatprep.subr.bf16.mxu0 0
  %1125 = vmatpush1.bf16.msra.mxu0 0
  %1126 = vmatprep.subr.bf16.mxu0 0
  %1127 = vmatpush1.bf16.msra.mxu0 0
  %1128 = vmatprep.subr.bf16.mxu0 0
  %1129 = vmatpush1.bf16.msra.mxu0 0
  %1130 = vmatprep.subr.bf16.mxu0 0
  %1131 = vmatpush1.bf16.msra.mxu0 0
  %1132 = vmatprep.subr.bf16.mxu0 0
  %1133 = vmatpush1.bf16.msra.mxu0 0
  %1134 = vmatprep.subr.bf16.mxu0 0
  %1135 = vmatpush1.bf16.msra.mxu0 0
  %1136 = vmatprep.subr.bf16.mxu0 0
  %1137 = vmatpush1.bf16.msra.mxu0 0
  %1138 = vmatprep.mubr.bf16.mxu0 0
  %1139 = vmatmul.mubr.bf16.gmra.mrb[0].mxu0 %v1027
  %v1140 = vpop.f32.mrb[0].mxu0
  %v1141 = vadd.f32 %v1077, %v1140
  %v1142 = vpop.f32.mrb[0].mxu0
  %v1143 = vpop.f32.mrb[0].mxu0
  %v1144 = vadd.f32 %v1080, %v1143
  %v1145 = vpop.f32.mrb[0].mxu0
  %1146 = vmatprep.mubr.bf16.mxu0 0
  %1147 = vmatmul.mubr.bf16.gmra.mrb[0].mxu0 %v1030
  %v1148 = vpop.f32.mrb[0].mxu0
  %v1149 = vadd.f32 %v1085, %v1148
  %v1150 = vpop.f32.mrb[0].mxu0
  %v1151 = vpop.f32.mrb[0].mxu0
  %v1152 = vadd.f32 %v1088, %v1151
  %v1153 = vpop.f32.mrb[0].mxu0
  %1154 = vmatprep.mubr.bf16.mxu0 0
  %1155 = vmatmul.mubr.bf16.gmra.mrb[0].mxu0 %v1033
  %v1156 = vpop.f32.mrb[0].mxu0
  %v1157 = vadd.f32 %v1093, %v1156
  %v1158 = vpop.f32.mrb[0].mxu0
  %v1159 = vpop.f32.mrb[0].mxu0
  %v1160 = vadd.f32 %v1096, %v1159
  %v1161 = vpop.f32.mrb[0].mxu0
  %1162 = vmatprep.mubr.bf16.mxu0 0
  %1163 = vmatmul.mubr.bf16.gmra.mrb[0].mxu0 %v1036
  %v1164 = vpop.f32.mrb[0].mxu0
  %v1165 = vadd.f32 %v1101, %v1164
  %v1166 = vpop.f32.mrb[0].mxu0
  %v1167 = vpop.f32.mrb[0].mxu0
  %v1168 = vpop.f32.mrb[0].mxu0
  %1169 = vdwg.mxu0
  %v1170 = vpack.c.bf16 %v1144, %v1141
  %v1171 = vpack.c.bf16 %v1152, %v1149
  %v1172 = vpack.c.bf16 %v1160, %v1157
  %v1173 = vpack.c.bf16 %v1165, %v1165
  %v1174 = vld [vmem:[%s5] sm:$0xf]
  %v1175 = vld [vmem:[%s5 + $0x4] sm:$0xf]
  %s1176 = scalar_lea.vmem %s4, 84
  %v1177 = vld [vmem:[%s1176] sm:$0xff]
  %v1178 = vld [vmem:[%s1176 + $0x8] sm:$0xf]
  %v1179 = vld [vmem:[%s1176 + $0xc] sm:$0xff]
  %v1180 = vld [vmem:[%s1176 + $0x14] sm:$0xf]
  %v1181 = vld [vmem:[%s1176 + $0x18] sm:$0xff]
  %v1182 = vld [vmem:[%s1176 + $0x20] sm:$0xf]
  %v1183 = vld [vmem:[%s1176 + $0x24] sm:$0xff]
  %v1184 = vld [vmem:[%s1176 + $0x2c] sm:$0xf]
  %v1185 = vld [vmem:[%s1176 + $0x30] sm:$0xff]
  %v1186 = vld [vmem:[%s1176 + $0x38] sm:$0xf]
  %v1187 = vld [vmem:[%s1176 + $0x3c] sm:$0xff]
  %v1188 = vld [vmem:[%s1176 + $0x44] sm:$0xf]
  %v1189 = vld [vmem:[%s1176 + $0x48] sm:$0x11]
  %v1190 = vld [vmem:[%s1176 + $0x50] sm:$0x1]
  %v1205 = vunpack.c.l.b16 %v1177
  %v1206 = vunpack.c.h.b16 %v1177
  %v1207 = vunpack.c.l.b16 %v1178
  %v1208 = vunpack.c.l.b16 %v1179
  %v1209 = vunpack.c.h.b16 %v1179
  %v1210 = vunpack.c.l.b16 %v1180
  %v1211 = vunpack.c.l.b16 %v1181
  %v1212 = vunpack.c.h.b16 %v1181
  %v1213 = vunpack.c.l.b16 %v1182
  %v1214 = vunpack.c.l.b16 %v1183
  %v1215 = vunpack.c.h.b16 %v1183
  %v1216 = vunpack.c.l.b16 %v1184
  %v1217 = vunpack.c.l.b16 %v1185
  %v1218 = vunpack.c.h.b16 %v1185
  %v1219 = vunpack.c.l.b16 %v1186
  %v1220 = vunpack.c.l.b16 %v1187
  %v1221 = vunpack.c.h.b16 %v1187
  %v1222 = vunpack.c.l.b16 %v1188
  %v1223 = vunpack.c.l.b16 %v1189
  %v1224 = vunpack.c.h.b16 %v1189
  %v1225 = vunpack.c.l.b16 %v1190
  %v1226 = vpack.c.b16 %v1208, %v1205
  %v1227 = vpack.c.b16 %v1209, %v1206
  %v1228 = vpack.c.b16 %v1210, %v1207
  %v1229 = vpack.c.b16 %v1214, %v1211
  %v1230 = vpack.c.b16 %v1215, %v1212
  %v1231 = vpack.c.b16 %v1216, %v1213
  %v1232 = vpack.c.b16 %v1220, %v1217
  %v1233 = vpack.c.b16 %v1221, %v1218
  %v1234 = vpack.c.b16 %v1222, %v1219
  %v1235 = vpack.c.b16 %v1223, %v1223
  %v1236 = vpack.c.b16 %v1224, %v1224
  %v1237 = vpack.c.b16 %v1225, %v1225
  %v1247 = vsel %vm1025, %v1228, 0
  %v1250 = vsel %vm1025, %v1231, 0
  %v1253 = vsel %vm1025, %v1234, 0
  %v1256 = vsel %vm1025, %v1237, 0
  %1258 = vmatprep.subr.bf16.mxu0 0
  %1259 = vmatpush1.bf16.msra.mxu0 %v934
  %1260 = vmatprep.subr.bf16.mxu0 0
  %1261 = vmatpush1.bf16.msra.mxu0 %v935
  %1262 = vmatprep.subr.bf16.mxu0 0
  %1263 = vmatpush1.bf16.msra.mxu0 %v936
  %1264 = vmatprep.subr.bf16.mxu0 0
  %1265 = vmatpush1.bf16.msra.mxu0 %v937
  %1266 = vmatprep.subr.bf16.mxu0 0
  %1267 = vmatpush1.bf16.msra.mxu0 %v938
  %1268 = vmatprep.subr.bf16.mxu0 0
  %1269 = vmatpush1.bf16.msra.mxu0 %v939
  %1270 = vmatprep.subr.bf16.mxu0 0
  %1271 = vmatpush1.bf16.msra.mxu0 %v940
  %1272 = vmatprep.subr.bf16.mxu0 0
  %1273 = vmatpush1.bf16.msra.mxu0 %v941
  %1274 = vmatprep.subr.bf16.mxu0 0
  %1275 = vmatpush1.bf16.msra.mxu0 %v942
  %1276 = vmatprep.subr.bf16.mxu0 0
  %1277 = vmatpush1.bf16.msra.mxu0 %v943
  %1278 = vmatprep.subr.bf16.mxu0 0
  %1279 = vmatpush1.bf16.msra.mxu0 %v944
  %1280 = vmatprep.subr.bf16.mxu0 0
  %1281 = vmatpush1.bf16.msra.mxu0 %v945
  %1282 = vmatprep.subr.bf16.mxu0 0
  %1283 = vmatpush1.bf16.msra.mxu0 %v946
  %1284 = vmatprep.subr.bf16.mxu0 0
  %1285 = vmatpush1.bf16.msra.mxu0 %v947
  %1286 = vmatprep.subr.bf16.mxu0 0
  %1287 = vmatpush1.bf16.msra.mxu0 %v948
  %1288 = vmatprep.subr.bf16.mxu0 0
  %1289 = vmatpush1.bf16.msra.mxu0 %v949
  %1290 = vmatprep.mubr.bf16.mxu0 %v1227
  %1291 = vmatmul.mubr.bf16.gmra.mrb[0].mxu0 %v1226
  %v1292 = vpop.f32.mrb[0].mxu0
  %v1293 = vadd.f32 0.0, %v1292
  %v1294 = vpop.f32.mrb[0].mxu0
  %v1295 = vpop.f32.mrb[0].mxu0
  %v1296 = vadd.f32 0.0, %v1295
  %v1297 = vpop.f32.mrb[0].mxu0
  %1298 = vmatprep.mubr.bf16.mxu0 %v1230
  %1299 = vmatmul.mubr.bf16.gmra.mrb[0].mxu0 %v1229
  %v1300 = vpop.f32.mrb[0].mxu0
  %v1301 = vadd.f32 0.0, %v1300
  %v1302 = vpop.f32.mrb[0].mxu0
  %v1303 = vpop.f32.mrb[0].mxu0
  %v1304 = vadd.f32 0.0, %v1303
  %v1305 = vpop.f32.mrb[0].mxu0
  %1306 = vmatprep.mubr.bf16.mxu0 %v1233
  %1307 = vmatmul.mubr.bf16.gmra.mrb[0].mxu0 %v1232
  %v1308 = vpop.f32.mrb[0].mxu0
  %v1309 = vadd.f32 0.0, %v1308
  %v1310 = vpop.f32.mrb[0].mxu0
  %v1311 = vpop.f32.mrb[0].mxu0
  %v1312 = vadd.f32 0.0, %v1311
  %v1313 = vpop.f32.mrb[0].mxu0
  %1314 = vmatprep.mubr.bf16.mxu0 %v1236
  %1315 = vmatmul.mubr.bf16.gmra.mrb[0].mxu0 %v1235
  %v1316 = vpop.f32.mrb[0].mxu0
  %v1317 = vadd.f32 0.0, %v1316
  %v1318 = vpop.f32.mrb[0].mxu0
  %v1319 = vpop.f32.mrb[0].mxu0
  %v1320 = vpop.f32.mrb[0].mxu0
  %1321 = vdwg.mxu0
  %1322 = vmatprep.subr.bf16.mxu0 0
  %1323 = vmatpush1.bf16.msra.mxu0 %v950
  %1324 = vmatprep.subr.bf16.mxu0 0
  %1325 = vmatpush1.bf16.msra.mxu0 %v951
  %1326 = vmatprep.subr.bf16.mxu0 0
  %1327 = vmatpush1.bf16.msra.mxu0 %v952
  %1328 = vmatprep.subr.bf16.mxu0 0
  %1329 = vmatpush1.bf16.msra.mxu0 %v953
  %1330 = vmatprep.subr.bf16.mxu0 0
  %1331 = vmatpush1.bf16.msra.mxu0 %v954
  %1332 = vmatprep.subr.bf16.mxu0 0
  %1333 = vmatpush1.bf16.msra.mxu0 %v1040
  %1334 = vmatprep.subr.bf16.mxu0 0
  %1335 = vmatpush1.bf16.msra.mxu0 0
  %1336 = vmatprep.subr.bf16.mxu0 0
  %1337 = vmatpush1.bf16.msra.mxu0 0
  %1338 = vmatprep.subr.bf16.mxu0 0
  %1339 = vmatpush1.bf16.msra.mxu0 0
  %1340 = vmatprep.subr.bf16.mxu0 0
  %1341 = vmatpush1.bf16.msra.mxu0 0
  %1342 = vmatprep.subr.bf16.mxu0 0
  %1343 = vmatpush1.bf16.msra.mxu0 0
  %1344 = vmatprep.subr.bf16.mxu0 0
  %1345 = vmatpush1.bf16.msra.mxu0 0
  %1346 = vmatprep.subr.bf16.mxu0 0
  %1347 = vmatpush1.bf16.msra.mxu0 0
  %1348 = vmatprep.subr.bf16.mxu0 0
  %1349 = vmatpush1.bf16.msra.mxu0 0
  %1350 = vmatprep.subr.bf16.mxu0 0
  %1351 = vmatpush1.bf16.msra.mxu0 0
  %1352 = vmatprep.subr.bf16.mxu0 0
  %1353 = vmatpush1.bf16.msra.mxu0 0
  %1354 = vmatprep.mubr.bf16.mxu0 0
  %1355 = vmatmul.mubr.bf16.gmra.mrb[0].mxu0 %v1247
  %v1356 = vpop.f32.mrb[0].mxu0
  %v1357 = vadd.f32 %v1293, %v1356
  %v1358 = vpop.f32.mrb[0].mxu0
  %v1359 = vpop.f32.mrb[0].mxu0
  %v1360 = vadd.f32 %v1296, %v1359
  %v1361 = vpop.f32.mrb[0].mxu0
  %1362 = vmatprep.mubr.bf16.mxu0 0
  %1363 = vmatmul.mubr.bf16.gmra.mrb[0].mxu0 %v1250
  %v1364 = vpop.f32.mrb[0].mxu0
  %v1365 = vadd.f32 %v1301, %v1364
  %v1366 = vpop.f32.mrb[0].mxu0
  %v1367 = vpop.f32.mrb[0].mxu0
  %v1368 = vadd.f32 %v1304, %v1367
  %v1369 = vpop.f32.mrb[0].mxu0
  %1370 = vmatprep.mubr.bf16.mxu0 0
  %1371 = vmatmul.mubr.bf16.gmra.mrb[0].mxu0 %v1253
  %v1372 = vpop.f32.mrb[0].mxu0
  %v1373 = vadd.f32 %v1309, %v1372
  %v1374 = vpop.f32.mrb[0].mxu0
  %v1375 = vpop.f32.mrb[0].mxu0
  %v1376 = vadd.f32 %v1312, %v1375
  %v1377 = vpop.f32.mrb[0].mxu0
  %1378 = vmatprep.mubr.bf16.mxu0 0
  %1379 = vmatmul.mubr.bf16.gmra.mrb[0].mxu0 %v1256
  %v1380 = vpop.f32.mrb[0].mxu0
  %v1381 = vadd.f32 %v1317, %v1380
  %v1382 = vpop.f32.mrb[0].mxu0
  %v1383 = vpop.f32.mrb[0].mxu0
  %v1384 = vpop.f32.mrb[0].mxu0
  %1385 = vdwg.mxu0
  %v1386 = vpack.c.bf16 %v1360, %v1357
  %v1387 = vpack.c.bf16 %v1368, %v1365
  %v1388 = vpack.c.bf16 %v1376, %v1373
  %v1389 = vpack.c.bf16 %v1381, %v1381
  %s1390 = scalar_lea.vmem %s5, 8
  %v1391 = vld [vmem:[%s1390] sm:$0xf]
  %v1392 = vld [vmem:[%s1390 + $0x4] sm:$0xf]
  %v1395 = vunpack.c.l.b16 %v1391
  %v1396 = vunpack.c.l.b16 %v1392
  %v1397 = vpack.c.b16 %v1396, %v1395
  %v1400 = vsel %vm195, %v1386, 0
  %v1403 = vsel %vm195, %v1387, 0
  %v1406 = vsel %vm195, %v1388, 0
  %v1409 = vsel %vm195, %v1389, 0
  %1411 = vmatprep.subr.bf16.mxu0 0
  %1412 = vmatpush1.bf16.msra.mxu0 %v1397
  %1413 = vmatprep.subr.bf16.mxu0 0
  %1414 = vmatpush1.bf16.msra.mxu0 0
  %1415 = vmatprep.subr.bf16.mxu0 0
  %1416 = vmatpush1.bf16.msra.mxu0 0
  %1417 = vmatprep.subr.bf16.mxu0 0
  %1418 = vmatpush1.bf16.msra.mxu0 0
  %1419 = vmatprep.subr.bf16.mxu0 0
  %1420 = vmatpush1.bf16.msra.mxu0 0
  %1421 = vmatprep.subr.bf16.mxu0 0
  %1422 = vmatpush1.bf16.msra.mxu0 0
  %1423 = vmatprep.subr.bf16.mxu0 0
  %1424 = vmatpush1.bf16.msra.mxu0 0
  %1425 = vmatprep.subr.bf16.mxu0 0
  %1426 = vmatpush1.bf16.msra.mxu0 0
  %1427 = vmatprep.subr.bf16.mxu0 0
  %1428 = vmatpush1.bf16.msra.mxu0 0
  %1429 = vmatprep.subr.bf16.mxu0 0
  %1430 = vmatpush1.bf16.msra.mxu0 0
  %1431 = vmatprep.subr.bf16.mxu0 0
  %1432 = vmatpush1.bf16.msra.mxu0 0
  %1433 = vmatprep.subr.bf16.mxu0 0
  %1434 = vmatpush1.bf16.msra.mxu0 0
  %1435 = vmatprep.subr.bf16.mxu0 0
  %1436 = vmatpush1.bf16.msra.mxu0 0
  %1437 = vmatprep.subr.bf16.mxu0 0
  %1438 = vmatpush1.bf16.msra.mxu0 0
  %1439 = vmatprep.subr.bf16.mxu0 0
  %1440 = vmatpush1.bf16.msra.mxu0 0
  %1441 = vmatprep.subr.bf16.mxu0 0
  %1442 = vmatpush1.bf16.msra.mxu0 0
  %1443 = vmatprep.mubr.bf16.mxu0 0
  %1444 = vmatmul.mubr.bf16.gmra.mrb[0].mxu0 %v1400
  %v1445 = vpop.f32.mrb[0].mxu0
  %v1446 = vadd.f32 0.0, %v1445
  %v1447 = vpop.f32.mrb[0].mxu0
  %v1448 = vpop.f32.mrb[0].mxu0
  %v1449 = vadd.f32 0.0, %v1448
  %v1450 = vpop.f32.mrb[0].mxu0
  %1451 = vmatprep.mubr.bf16.mxu0 0
  %1452 = vmatmul.mubr.bf16.gmra.mrb[0].mxu0 %v1403
  %v1453 = vpop.f32.mrb[0].mxu0
  %v1454 = vadd.f32 0.0, %v1453
  %v1455 = vpop.f32.mrb[0].mxu0
  %v1456 = vpop.f32.mrb[0].mxu0
  %v1457 = vadd.f32 0.0, %v1456
  %v1458 = vpop.f32.mrb[0].mxu0
  %1459 = vmatprep.mubr.bf16.mxu0 0
  %1460 = vmatmul.mubr.bf16.gmra.mrb[0].mxu0 %v1406
  %v1461 = vpop.f32.mrb[0].mxu0
  %v1462 = vadd.f32 0.0, %v1461
  %v1463 = vpop.f32.mrb[0].mxu0
  %v1464 = vpop.f32.mrb[0].mxu0
  %v1465 = vadd.f32 0.0, %v1464
  %v1466 = vpop.f32.mrb[0].mxu0
  %1467 = vmatprep.mubr.bf16.mxu0 0
  %1468 = vmatmul.mubr.bf16.gmra.mrb[0].mxu0 %v1409
  %v1469 = vpop.f32.mrb[0].mxu0
  %v1470 = vadd.f32 0.0, %v1469
  %v1471 = vpop.f32.mrb[0].mxu0
  %v1472 = vpop.f32.mrb[0].mxu0
  %v1473 = vpop.f32.mrb[0].mxu0
  %1474 = vdwg.mxu0
  %v1477 = vunpack.c.l.b16 %v1174
  %v1478 = vunpack.c.l.b16 %v1175
  %v1479 = vpack.c.b16 %v1478, %v1477
  %v1482 = vsel %vm195, %v1170, 0
  %v1485 = vsel %vm195, %v1171, 0
  %v1488 = vsel %vm195, %v1172, 0
  %v1491 = vsel %vm195, %v1173, 0
  %1493 = vmatprep.subr.bf16.mxu0 0
  %1494 = vmatpush1.bf16.msra.mxu0 %v1479
  %1495 = vmatprep.subr.bf16.mxu0 0
  %1496 = vmatpush1.bf16.msra.mxu0 0
  %1497 = vmatprep.subr.bf16.mxu0 0
  %1498 = vmatpush1.bf16.msra.mxu0 0
  %1499 = vmatprep.subr.bf16.mxu0 0
  %1500 = vmatpush1.bf16.msra.mxu0 0
  %1501 = vmatprep.subr.bf16.mxu0 0
  %1502 = vmatpush1.bf16.msra.mxu0 0
  %1503 = vmatprep.subr.bf16.mxu0 0
  %1504 = vmatpush1.bf16.msra.mxu0 0
  %1505 = vmatprep.subr.bf16.mxu0 0
  %1506 = vmatpush1.bf16.msra.mxu0 0
  %1507 = vmatprep.subr.bf16.mxu0 0
  %1508 = vmatpush1.bf16.msra.mxu0 0
  %1509 = vmatprep.subr.bf16.mxu0 0
  %1510 = vmatpush1.bf16.msra.mxu0 0
  %1511 = vmatprep.subr.bf16.mxu0 0
  %1512 = vmatpush1.bf16.msra.mxu0 0
  %1513 = vmatprep.subr.bf16.mxu0 0
  %1514 = vmatpush1.bf16.msra.mxu0 0
  %1515 = vmatprep.subr.bf16.mxu0 0
  %1516 = vmatpush1.bf16.msra.mxu0 0
  %1517 = vmatprep.subr.bf16.mxu0 0
  %1518 = vmatpush1.bf16.msra.mxu0 0
  %1519 = vmatprep.subr.bf16.mxu0 0
  %1520 = vmatpush1.bf16.msra.mxu0 0
  %1521 = vmatprep.subr.bf16.mxu0 0
  %1522 = vmatpush1.bf16.msra.mxu0 0
  %1523 = vmatprep.subr.bf16.mxu0 0
  %1524 = vmatpush1.bf16.msra.mxu0 0
  %1525 = vmatprep.mubr.bf16.mxu0 0
  %1526 = vmatmul.mubr.bf16.gmra.mrb[0].mxu0 %v1482
  %v1527 = vpop.f32.mrb[0].mxu0
  %v1528 = vadd.f32 %v1446, %v1527
  %v1529 = vpop.f32.mrb[0].mxu0
  %v1530 = vpop.f32.mrb[0].mxu0
  %v1531 = vadd.f32 %v1449, %v1530
  %v1532 = vpop.f32.mrb[0].mxu0
  %1533 = vmatprep.mubr.bf16.mxu0 0
  %1534 = vmatmul.mubr.bf16.gmra.mrb[0].mxu0 %v1485
  %v1535 = vpop.f32.mrb[0].mxu0
  %v1536 = vadd.f32 %v1454, %v1535
  %v1537 = vpop.f32.mrb[0].mxu0
  %v1538 = vpop.f32.mrb[0].mxu0
  %v1539 = vadd.f32 %v1457, %v1538
  %v1540 = vpop.f32.mrb[0].mxu0
  %1541 = vmatprep.mubr.bf16.mxu0 0
  %1542 = vmatmul.mubr.bf16.gmra.mrb[0].mxu0 %v1488
  %v1543 = vpop.f32.mrb[0].mxu0
  %v1544 = vadd.f32 %v1462, %v1543
  %v1545 = vpop.f32.mrb[0].mxu0
  %v1546 = vpop.f32.mrb[0].mxu0
  %v1547 = vadd.f32 %v1465, %v1546
  %v1548 = vpop.f32.mrb[0].mxu0
  %1549 = vmatprep.mubr.bf16.mxu0 0
  %1550 = vmatmul.mubr.bf16.gmra.mrb[0].mxu0 %v1491
  %v1551 = vpop.f32.mrb[0].mxu0
  %v1552 = vadd.f32 %v1470, %v1551
  %v1553 = vpop.f32.mrb[0].mxu0
  %v1554 = vpop.f32.mrb[0].mxu0
  %v1555 = vpop.f32.mrb[0].mxu0
  %1556 = vdwg.mxu0
  %s1557 = scalar_lea.vmem %s4, 168
  %v1558 = vld [vmem:[%s1557] sm:$0xff]
  %v1559 = vld [vmem:[%s1557 + $0x8] sm:$0xf]
  %v1560 = vld [vmem:[%s1557 + $0xc] sm:$0xff]
  %v1561 = vld [vmem:[%s1557 + $0x14] sm:$0xf]
  %v1562 = vld [vmem:[%s1557 + $0x18] sm:$0xff]
  %v1563 = vld [vmem:[%s1557 + $0x20] sm:$0xf]
  %v1564 = vld [vmem:[%s1557 + $0x24] sm:$0xff]
  %v1565 = vld [vmem:[%s1557 + $0x2c] sm:$0xf]
  %v1566 = vld [vmem:[%s1557 + $0x30] sm:$0xff]
  %v1567 = vld [vmem:[%s1557 + $0x38] sm:$0xf]
  %v1568 = vld [vmem:[%s1557 + $0x3c] sm:$0xff]
  %v1569 = vld [vmem:[%s1557 + $0x44] sm:$0xf]
  %v1570 = vld [vmem:[%s1557 + $0x48] sm:$0x11]
  %v1571 = vld [vmem:[%s1557 + $0x50] sm:$0x1]
  %v1586 = vunpack.c.l.b16 %v1558
  %v1587 = vunpack.c.h.b16 %v1558
  %v1588 = vunpack.c.l.b16 %v1559
  %v1589 = vunpack.c.l.b16 %v1560
  %v1590 = vunpack.c.h.b16 %v1560
  %v1591 = vunpack.c.l.b16 %v1561
  %v1592 = vunpack.c.l.b16 %v1562
  %v1593 = vunpack.c.h.b16 %v1562
  %v1594 = vunpack.c.l.b16 %v1563
  %v1595 = vunpack.c.l.b16 %v1564
  %v1596 = vunpack.c.h.b16 %v1564
  %v1597 = vunpack.c.l.b16 %v1565
  %v1598 = vunpack.c.l.b16 %v1566
  %v1599 = vunpack.c.h.b16 %v1566
  %v1600 = vunpack.c.l.b16 %v1567
  %v1601 = vunpack.c.l.b16 %v1568
  %v1602 = vunpack.c.h.b16 %v1568
  %v1603 = vunpack.c.l.b16 %v1569
  %v1604 = vunpack.c.l.b16 %v1570
  %v1605 = vunpack.c.h.b16 %v1570
  %v1606 = vunpack.c.l.b16 %v1571
  %v1607 = vpack.c.b16 %v1589, %v1586
  %v1608 = vpack.c.b16 %v1590, %v1587
  %v1609 = vpack.c.b16 %v1591, %v1588
  %v1610 = vpack.c.b16 %v1595, %v1592
  %v1611 = vpack.c.b16 %v1596, %v1593
  %v1612 = vpack.c.b16 %v1597, %v1594
  %v1613 = vpack.c.b16 %v1601, %v1598
  %v1614 = vpack.c.b16 %v1602, %v1599
  %v1615 = vpack.c.b16 %v1603, %v1600
  %v1616 = vpack.c.b16 %v1604, %v1604
  %v1617 = vpack.c.b16 %v1605, %v1605
  %v1618 = vpack.c.b16 %v1606, %v1606
  %v1628 = vsel %vm1025, %v1609, 0
  %v1631 = vsel %vm1025, %v1612, 0
  %v1634 = vsel %vm1025, %v1615, 0
  %v1637 = vsel %vm1025, %v1618, 0
  %1639 = vmatprep.subr.bf16.mxu0 0
  %1640 = vmatpush1.bf16.msra.mxu0 %v934
  %1641 = vmatprep.subr.bf16.mxu0 0
  %1642 = vmatpush1.bf16.msra.mxu0 %v935
  %1643 = vmatprep.subr.bf16.mxu0 0
  %1644 = vmatpush1.bf16.msra.mxu0 %v936
  %1645 = vmatprep.subr.bf16.mxu0 0
  %1646 = vmatpush1.bf16.msra.mxu0 %v937
  %1647 = vmatprep.subr.bf16.mxu0 0
  %1648 = vmatpush1.bf16.msra.mxu0 %v938
  %1649 = vmatprep.subr.bf16.mxu0 0
  %1650 = vmatpush1.bf16.msra.mxu0 %v939
  %1651 = vmatprep.subr.bf16.mxu0 0
  %1652 = vmatpush1.bf16.msra.mxu0 %v940
  %1653 = vmatprep.subr.bf16.mxu0 0
  %1654 = vmatpush1.bf16.msra.mxu0 %v941
  %1655 = vmatprep.subr.bf16.mxu0 0
  %1656 = vmatpush1.bf16.msra.mxu0 %v942
  %1657 = vmatprep.subr.bf16.mxu0 0
  %1658 = vmatpush1.bf16.msra.mxu0 %v943
  %1659 = vmatprep.subr.bf16.mxu0 0
  %1660 = vmatpush1.bf16.msra.mxu0 %v944
  %1661 = vmatprep.subr.bf16.mxu0 0
  %1662 = vmatpush1.bf16.msra.mxu0 %v945
  %1663 = vmatprep.subr.bf16.mxu0 0
  %1664 = vmatpush1.bf16.msra.mxu0 %v946
  %1665 = vmatprep.subr.bf16.mxu0 0
  %1666 = vmatpush1.bf16.msra.mxu0 %v947
  %1667 = vmatprep.subr.bf16.mxu0 0
  %1668 = vmatpush1.bf16.msra.mxu0 %v948
  %1669 = vmatprep.subr.bf16.mxu0 0
  %1670 = vmatpush1.bf16.msra.mxu0 %v949
  %1671 = vmatprep.mubr.bf16.mxu0 %v1608
  %1672 = vmatmul.mubr.bf16.gmra.mrb[0].mxu0 %v1607
  %v1673 = vpop.f32.mrb[0].mxu0
  %v1674 = vadd.f32 0.0, %v1673
  %v1675 = vpop.f32.mrb[0].mxu0
  %v1676 = vpop.f32.mrb[0].mxu0
  %v1677 = vadd.f32 0.0, %v1676
  %v1678 = vpop.f32.mrb[0].mxu0
  %1679 = vmatprep.mubr.bf16.mxu0 %v1611
  %1680 = vmatmul.mubr.bf16.gmra.mrb[0].mxu0 %v1610
  %v1681 = vpop.f32.mrb[0].mxu0
  %v1682 = vadd.f32 0.0, %v1681
  %v1683 = vpop.f32.mrb[0].mxu0
  %v1684 = vpop.f32.mrb[0].mxu0
  %v1685 = vadd.f32 0.0, %v1684
  %v1686 = vpop.f32.mrb[0].mxu0
  %1687 = vmatprep.mubr.bf16.mxu0 %v1614
  %1688 = vmatmul.mubr.bf16.gmra.mrb[0].mxu0 %v1613
  %v1689 = vpop.f32.mrb[0].mxu0
  %v1690 = vadd.f32 0.0, %v1689
  %v1691 = vpop.f32.mrb[0].mxu0
  %v1692 = vpop.f32.mrb[0].mxu0
  %v1693 = vadd.f32 0.0, %v1692
  %v1694 = vpop.f32.mrb[0].mxu0
  %1695 = vmatprep.mubr.bf16.mxu0 %v1617
  %1696 = vmatmul.mubr.bf16.gmra.mrb[0].mxu0 %v1616
  %v1697 = vpop.f32.mrb[0].mxu0
  %v1698 = vadd.f32 0.0, %v1697
  %v1699 = vpop.f32.mrb[0].mxu0
  %v1700 = vpop.f32.mrb[0].mxu0
  %v1701 = vpop.f32.mrb[0].mxu0
  %1702 = vdwg.mxu0
  %1703 = vmatprep.subr.bf16.mxu0 0
  %1704 = vmatpush1.bf16.msra.mxu0 %v950
  %1705 = vmatprep.subr.bf16.mxu0 0
  %1706 = vmatpush1.bf16.msra.mxu0 %v951
  %1707 = vmatprep.subr.bf16.mxu0 0
  %1708 = vmatpush1.bf16.msra.mxu0 %v952
  %1709 = vmatprep.subr.bf16.mxu0 0
  %1710 = vmatpush1.bf16.msra.mxu0 %v953
  %1711 = vmatprep.subr.bf16.mxu0 0
  %1712 = vmatpush1.bf16.msra.mxu0 %v954
  %1713 = vmatprep.subr.bf16.mxu0 0
  %1714 = vmatpush1.bf16.msra.mxu0 %v1040
  %1715 = vmatprep.subr.bf16.mxu0 0
  %1716 = vmatpush1.bf16.msra.mxu0 0
  %1717 = vmatprep.subr.bf16.mxu0 0
  %1718 = vmatpush1.bf16.msra.mxu0 0
  %1719 = vmatprep.subr.bf16.mxu0 0
  %1720 = vmatpush1.bf16.msra.mxu0 0
  %1721 = vmatprep.subr.bf16.mxu0 0
  %1722 = vmatpush1.bf16.msra.mxu0 0
  %1723 = vmatprep.subr.bf16.mxu0 0
  %1724 = vmatpush1.bf16.msra.mxu0 0
  %1725 = vmatprep.subr.bf16.mxu0 0
  %1726 = vmatpush1.bf16.msra.mxu0 0
  %1727 = vmatprep.subr.bf16.mxu0 0
  %1728 = vmatpush1.bf16.msra.mxu0 0
  %1729 = vmatprep.subr.bf16.mxu0 0
  %1730 = vmatpush1.bf16.msra.mxu0 0
  %1731 = vmatprep.subr.bf16.mxu0 0
  %1732 = vmatpush1.bf16.msra.mxu0 0
  %1733 = vmatprep.subr.bf16.mxu0 0
  %1734 = vmatpush1.bf16.msra.mxu0 0
  %1735 = vmatprep.mubr.bf16.mxu0 0
  %1736 = vmatmul.mubr.bf16.gmra.mrb[0].mxu0 %v1628
  %v1737 = vpop.f32.mrb[0].mxu0
  %v1738 = vadd.f32 %v1674, %v1737
  %v1739 = vpop.f32.mrb[0].mxu0
  %v1740 = vpop.f32.mrb[0].mxu0
  %v1741 = vadd.f32 %v1677, %v1740
  %v1742 = vpop.f32.mrb[0].mxu0
  %1743 = vmatprep.mubr.bf16.mxu0 0
  %1744 = vmatmul.mubr.bf16.gmra.mrb[0].mxu0 %v1631
  %v1745 = vpop.f32.mrb[0].mxu0
  %v1746 = vadd.f32 %v1682, %v1745
  %v1747 = vpop.f32.mrb[0].mxu0
  %v1748 = vpop.f32.mrb[0].mxu0
  %v1749 = vadd.f32 %v1685, %v1748
  %v1750 = vpop.f32.mrb[0].mxu0
  %1751 = vmatprep.mubr.bf16.mxu0 0
  %1752 = vmatmul.mubr.bf16.gmra.mrb[0].mxu0 %v1634
  %v1753 = vpop.f32.mrb[0].mxu0
  %v1754 = vadd.f32 %v1690, %v1753
  %v1755 = vpop.f32.mrb[0].mxu0
  %v1756 = vpop.f32.mrb[0].mxu0
  %v1757 = vadd.f32 %v1693, %v1756
  %v1758 = vpop.f32.mrb[0].mxu0
  %1759 = vmatprep.mubr.bf16.mxu0 0
  %1760 = vmatmul.mubr.bf16.gmra.mrb[0].mxu0 %v1637
  %v1761 = vpop.f32.mrb[0].mxu0
  %v1762 = vadd.f32 %v1698, %v1761
  %v1763 = vpop.f32.mrb[0].mxu0
  %v1764 = vpop.f32.mrb[0].mxu0
  %v1765 = vpop.f32.mrb[0].mxu0
  %1766 = vdwg.mxu0
  %v1767 = vpack.c.bf16 %v1741, %v1738
  %v1768 = vpack.c.bf16 %v1749, %v1746
  %v1769 = vpack.c.bf16 %v1757, %v1754
  %v1770 = vpack.c.bf16 %v1762, %v1762
  %s1771 = scalar_lea.vmem %s5, 16
  %v1772 = vld [vmem:[%s1771] sm:$0xf]
  %v1773 = vld [vmem:[%s1771 + $0x4] sm:$0xf]
  %v1776 = vunpack.c.l.b16 %v1772
  %v1777 = vunpack.c.l.b16 %v1773
  %v1778 = vpack.c.b16 %v1777, %v1776
  %v1781 = vsel %vm195, %v1767, 0
  %v1784 = vsel %vm195, %v1768, 0
  %v1787 = vsel %vm195, %v1769, 0
  %v1790 = vsel %vm195, %v1770, 0
  %1792 = vmatprep.subr.bf16.mxu0 0
  %1793 = vmatpush1.bf16.msra.mxu0 %v1778
  %1794 = vmatprep.subr.bf16.mxu0 0
  %1795 = vmatpush1.bf16.msra.mxu0 0
  %1796 = vmatprep.subr.bf16.mxu0 0
  %1797 = vmatpush1.bf16.msra.mxu0 0
  %1798 = vmatprep.subr.bf16.mxu0 0
  %1799 = vmatpush1.bf16.msra.mxu0 0
  %1800 = vmatprep.subr.bf16.mxu0 0
  %1801 = vmatpush1.bf16.msra.mxu0 0
  %1802 = vmatprep.subr.bf16.mxu0 0
  %1803 = vmatpush1.bf16.msra.mxu0 0
  %1804 = vmatprep.subr.bf16.mxu0 0
  %1805 = vmatpush1.bf16.msra.mxu0 0
  %1806 = vmatprep.subr.bf16.mxu0 0
  %1807 = vmatpush1.bf16.msra.mxu0 0
  %1808 = vmatprep.subr.bf16.mxu0 0
  %1809 = vmatpush1.bf16.msra.mxu0 0
  %1810 = vmatprep.subr.bf16.mxu0 0
  %1811 = vmatpush1.bf16.msra.mxu0 0
  %1812 = vmatprep.subr.bf16.mxu0 0
  %1813 = vmatpush1.bf16.msra.mxu0 0
  %1814 = vmatprep.subr.bf16.mxu0 0
  %1815 = vmatpush1.bf16.msra.mxu0 0
  %1816 = vmatprep.subr.bf16.mxu0 0
  %1817 = vmatpush1.bf16.msra.mxu0 0
  %1818 = vmatprep.subr.bf16.mxu0 0
  %1819 = vmatpush1.bf16.msra.mxu0 0
  %1820 = vmatprep.subr.bf16.mxu0 0
  %1821 = vmatpush1.bf16.msra.mxu0 0
  %1822 = vmatprep.subr.bf16.mxu0 0
  %1823 = vmatpush1.bf16.msra.mxu0 0
  %1824 = vmatprep.mubr.bf16.mxu0 0
  %1825 = vmatmul.mubr.bf16.gmra.mrb[0].mxu0 %v1781
  %v1826 = vpop.f32.mrb[0].mxu0
  %v1827 = vadd.f32 0.0, %v1826
  %v1828 = vpop.f32.mrb[0].mxu0
  %v1829 = vpop.f32.mrb[0].mxu0
  %v1830 = vadd.f32 0.0, %v1829
  %v1831 = vpop.f32.mrb[0].mxu0
  %1832 = vmatprep.mubr.bf16.mxu0 0
  %1833 = vmatmul.mubr.bf16.gmra.mrb[0].mxu0 %v1784
  %v1834 = vpop.f32.mrb[0].mxu0
  %v1835 = vadd.f32 0.0, %v1834
  %v1836 = vpop.f32.mrb[0].mxu0
  %v1837 = vpop.f32.mrb[0].mxu0
  %v1838 = vadd.f32 0.0, %v1837
  %v1839 = vpop.f32.mrb[0].mxu0
  %1840 = vmatprep.mubr.bf16.mxu0 0
  %1841 = vmatmul.mubr.bf16.gmra.mrb[0].mxu0 %v1787
  %v1842 = vpop.f32.mrb[0].mxu0
  %v1843 = vadd.f32 0.0, %v1842
  %v1844 = vpop.f32.mrb[0].mxu0
  %v1845 = vpop.f32.mrb[0].mxu0
  %v1846 = vadd.f32 0.0, %v1845
  %v1847 = vpop.f32.mrb[0].mxu0
  %1848 = vmatprep.mubr.bf16.mxu0 0
  %1849 = vmatmul.mubr.bf16.gmra.mrb[0].mxu0 %v1790
  %v1850 = vpop.f32.mrb[0].mxu0
  %v1851 = vadd.f32 0.0, %v1850
  %v1852 = vpop.f32.mrb[0].mxu0
  %v1853 = vpop.f32.mrb[0].mxu0
  %v1854 = vpop.f32.mrb[0].mxu0
  %1855 = vdwg.mxu0
  %v1856 = vadd.f32 %v1528, %v1827
  %v1857 = vadd.f32 %v1531, %v1830
  %v1858 = vadd.f32 %v1536, %v1835
  %v1859 = vadd.f32 %v1539, %v1838
  %v1860 = vadd.f32 %v1544, %v1843
  %v1861 = vadd.f32 %v1547, %v1846
  %v1862 = vadd.f32 %v1552, %v1851
  %s1863 = scalar_lea.vmem %s4, 252
  %v1864 = vld [vmem:[%s1863] sm:$0xff]
  %v1865 = vld [vmem:[%s1863 + $0x8] sm:$0xf]
  %v1866 = vld [vmem:[%s1863 + $0xc] sm:$0xff]
  %v1867 = vld [vmem:[%s1863 + $0x14] sm:$0xf]
  %v1868 = vld [vmem:[%s1863 + $0x18] sm:$0xff]
  %v1869 = vld [vmem:[%s1863 + $0x20] sm:$0xf]
  %v1870 = vld [vmem:[%s1863 + $0x24] sm:$0xff]
  %v1871 = vld [vmem:[%s1863 + $0x2c] sm:$0xf]
  %v1872 = vld [vmem:[%s1863 + $0x30] sm:$0xff]
  %v1873 = vld [vmem:[%s1863 + $0x38] sm:$0xf]
  %v1874 = vld [vmem:[%s1863 + $0x3c] sm:$0xff]
  %v1875 = vld [vmem:[%s1863 + $0x44] sm:$0xf]
  %v1876 = vld [vmem:[%s1863 + $0x48] sm:$0x11]
  %v1877 = vld [vmem:[%s1863 + $0x50] sm:$0x1]
  %v1892 = vunpack.c.l.b16 %v1864
  %v1893 = vunpack.c.h.b16 %v1864
  %v1894 = vunpack.c.l.b16 %v1865
  %v1895 = vunpack.c.l.b16 %v1866
  %v1896 = vunpack.c.h.b16 %v1866
  %v1897 = vunpack.c.l.b16 %v1867
  %v1898 = vunpack.c.l.b16 %v1868
  %v1899 = vunpack.c.h.b16 %v1868
  %v1900 = vunpack.c.l.b16 %v1869
  %v1901 = vunpack.c.l.b16 %v1870
  %v1902 = vunpack.c.h.b16 %v1870
  %v1903 = vunpack.c.l.b16 %v1871
  %v1904 = vunpack.c.l.b16 %v1872
  %v1905 = vunpack.c.h.b16 %v1872
  %v1906 = vunpack.c.l.b16 %v1873
  %v1907 = vunpack.c.l.b16 %v1874
  %v1908 = vunpack.c.h.b16 %v1874
  %v1909 = vunpack.c.l.b16 %v1875
  %v1910 = vunpack.c.l.b16 %v1876
  %v1911 = vunpack.c.h.b16 %v1876
  %v1912 = vunpack.c.l.b16 %v1877
  %v1913 = vpack.c.b16 %v1895, %v1892
  %v1914 = vpack.c.b16 %v1896, %v1893
  %v1915 = vpack.c.b16 %v1897, %v1894
  %v1916 = vpack.c.b16 %v1901, %v1898
  %v1917 = vpack.c.b16 %v1902, %v1899
  %v1918 = vpack.c.b16 %v1903, %v1900
  %v1919 = vpack.c.b16 %v1907, %v1904
  %v1920 = vpack.c.b16 %v1908, %v1905
  %v1921 = vpack.c.b16 %v1909, %v1906
  %v1922 = vpack.c.b16 %v1910, %v1910
  %v1923 = vpack.c.b16 %v1911, %v1911
  %v1924 = vpack.c.b16 %v1912, %v1912
  %v1934 = vsel %vm1025, %v1915, 0
  %v1937 = vsel %vm1025, %v1918, 0
  %v1940 = vsel %vm1025, %v1921, 0
  %v1943 = vsel %vm1025, %v1924, 0
  %1945 = vmatprep.subr.bf16.mxu0 0
  %1946 = vmatpush1.bf16.msra.mxu0 %v934
  %1947 = vmatprep.subr.bf16.mxu0 0
  %1948 = vmatpush1.bf16.msra.mxu0 %v935
  %1949 = vmatprep.subr.bf16.mxu0 0
  %1950 = vmatpush1.bf16.msra.mxu0 %v936
  %1951 = vmatprep.subr.bf16.mxu0 0
  %1952 = vmatpush1.bf16.msra.mxu0 %v937
  %1953 = vmatprep.subr.bf16.mxu0 0
  %1954 = vmatpush1.bf16.msra.mxu0 %v938
  %1955 = vmatprep.subr.bf16.mxu0 0
  %1956 = vmatpush1.bf16.msra.mxu0 %v939
  %1957 = vmatprep.subr.bf16.mxu0 0
  %1958 = vmatpush1.bf16.msra.mxu0 %v940
  %1959 = vmatprep.subr.bf16.mxu0 0
  %1960 = vmatpush1.bf16.msra.mxu0 %v941
  %1961 = vmatprep.subr.bf16.mxu0 0
  %1962 = vmatpush1.bf16.msra.mxu0 %v942
  %1963 = vmatprep.subr.bf16.mxu0 0
  %1964 = vmatpush1.bf16.msra.mxu0 %v943
  %1965 = vmatprep.subr.bf16.mxu0 0
  %1966 = vmatpush1.bf16.msra.mxu0 %v944
  %1967 = vmatprep.subr.bf16.mxu0 0
  %1968 = vmatpush1.bf16.msra.mxu0 %v945
  %1969 = vmatprep.subr.bf16.mxu0 0
  %1970 = vmatpush1.bf16.msra.mxu0 %v946
  %1971 = vmatprep.subr.bf16.mxu0 0
  %1972 = vmatpush1.bf16.msra.mxu0 %v947
  %1973 = vmatprep.subr.bf16.mxu0 0
  %1974 = vmatpush1.bf16.msra.mxu0 %v948
  %1975 = vmatprep.subr.bf16.mxu0 0
  %1976 = vmatpush1.bf16.msra.mxu0 %v949
  %1977 = vmatprep.mubr.bf16.mxu0 %v1914
  %1978 = vmatmul.mubr.bf16.gmra.mrb[0].mxu0 %v1913
  %v1979 = vpop.f32.mrb[0].mxu0
  %v1980 = vadd.f32 0.0, %v1979
  %v1981 = vpop.f32.mrb[0].mxu0
  %v1982 = vpop.f32.mrb[0].mxu0
  %v1983 = vadd.f32 0.0, %v1982
  %v1984 = vpop.f32.mrb[0].mxu0
  %1985 = vmatprep.mubr.bf16.mxu0 %v1917
  %1986 = vmatmul.mubr.bf16.gmra.mrb[0].mxu0 %v1916
  %v1987 = vpop.f32.mrb[0].mxu0
  %v1988 = vadd.f32 0.0, %v1987
  %v1989 = vpop.f32.mrb[0].mxu0
  %v1990 = vpop.f32.mrb[0].mxu0
  %v1991 = vadd.f32 0.0, %v1990
  %v1992 = vpop.f32.mrb[0].mxu0
  %1993 = vmatprep.mubr.bf16.mxu0 %v1920
  %1994 = vmatmul.mubr.bf16.gmra.mrb[0].mxu0 %v1919
  %v1995 = vpop.f32.mrb[0].mxu0
  %v1996 = vadd.f32 0.0, %v1995
  %v1997 = vpop.f32.mrb[0].mxu0
  %v1998 = vpop.f32.mrb[0].mxu0
  %v1999 = vadd.f32 0.0, %v1998
  %v2000 = vpop.f32.mrb[0].mxu0
  %2001 = vmatprep.mubr.bf16.mxu0 %v1923
  %2002 = vmatmul.mubr.bf16.gmra.mrb[0].mxu0 %v1922
  %v2003 = vpop.f32.mrb[0].mxu0
  %v2004 = vadd.f32 0.0, %v2003
  %v2005 = vpop.f32.mrb[0].mxu0
  %v2006 = vpop.f32.mrb[0].mxu0
  %v2007 = vpop.f32.mrb[0].mxu0
  %2008 = vdwg.mxu0
  %2009 = vmatprep.subr.bf16.mxu0 0
  %2010 = vmatpush1.bf16.msra.mxu0 %v950
  %2011 = vmatprep.subr.bf16.mxu0 0
  %2012 = vmatpush1.bf16.msra.mxu0 %v951
  %2013 = vmatprep.subr.bf16.mxu0 0
  %2014 = vmatpush1.bf16.msra.mxu0 %v952
  %2015 = vmatprep.subr.bf16.mxu0 0
  %2016 = vmatpush1.bf16.msra.mxu0 %v953
  %2017 = vmatprep.subr.bf16.mxu0 0
  %2018 = vmatpush1.bf16.msra.mxu0 %v954
  %2019 = vmatprep.subr.bf16.mxu0 0
  %2020 = vmatpush1.bf16.msra.mxu0 %v1040
  %2021 = vmatprep.subr.bf16.mxu0 0
  %2022 = vmatpush1.bf16.msra.mxu0 0
  %2023 = vmatprep.subr.bf16.mxu0 0
  %2024 = vmatpush1.bf16.msra.mxu0 0
  %2025 = vmatprep.subr.bf16.mxu0 0
  %2026 = vmatpush1.bf16.msra.mxu0 0
  %2027 = vmatprep.subr.bf16.mxu0 0
  %2028 = vmatpush1.bf16.msra.mxu0 0
  %2029 = vmatprep.subr.bf16.mxu0 0
  %2030 = vmatpush1.bf16.msra.mxu0 0
  %2031 = vmatprep.subr.bf16.mxu0 0
  %2032 = vmatpush1.bf16.msra.mxu0 0
  %2033 = vmatprep.subr.bf16.mxu0 0
  %2034 = vmatpush1.bf16.msra.mxu0 0
  %2035 = vmatprep.subr.bf16.mxu0 0
  %2036 = vmatpush1.bf16.msra.mxu0 0
  %2037 = vmatprep.subr.bf16.mxu0 0
  %2038 = vmatpush1.bf16.msra.mxu0 0
  %2039 = vmatprep.subr.bf16.mxu0 0
  %2040 = vmatpush1.bf16.msra.mxu0 0
  %2041 = vmatprep.mubr.bf16.mxu0 0
  %2042 = vmatmul.mubr.bf16.gmra.mrb[0].mxu0 %v1934
  %v2043 = vpop.f32.mrb[0].mxu0
  %v2044 = vadd.f32 %v1980, %v2043
  %v2045 = vpop.f32.mrb[0].mxu0
  %v2046 = vpop.f32.mrb[0].mxu0
  %v2047 = vadd.f32 %v1983, %v2046
  %v2048 = vpop.f32.mrb[0].mxu0
  %2049 = vmatprep.mubr.bf16.mxu0 0
  %2050 = vmatmul.mubr.bf16.gmra.mrb[0].mxu0 %v1937
  %v2051 = vpop.f32.mrb[0].mxu0
  %v2052 = vadd.f32 %v1988, %v2051
  %v2053 = vpop.f32.mrb[0].mxu0
  %v2054 = vpop.f32.mrb[0].mxu0
  %v2055 = vadd.f32 %v1991, %v2054
  %v2056 = vpop.f32.mrb[0].mxu0
  %2057 = vmatprep.mubr.bf16.mxu0 0
  %2058 = vmatmul.mubr.bf16.gmra.mrb[0].mxu0 %v1940
  %v2059 = vpop.f32.mrb[0].mxu0
  %v2060 = vadd.f32 %v1996, %v2059
  %v2061 = vpop.f32.mrb[0].mxu0
  %v2062 = vpop.f32.mrb[0].mxu0
  %v2063 = vadd.f32 %v1999, %v2062
  %v2064 = vpop.f32.mrb[0].mxu0
  %2065 = vmatprep.mubr.bf16.mxu0 0
  %2066 = vmatmul.mubr.bf16.gmra.mrb[0].mxu0 %v1943
  %v2067 = vpop.f32.mrb[0].mxu0
  %v2068 = vadd.f32 %v2004, %v2067
  %v2069 = vpop.f32.mrb[0].mxu0
  %v2070 = vpop.f32.mrb[0].mxu0
  %v2071 = vpop.f32.mrb[0].mxu0
  %2072 = vdwg.mxu0
  %v2073 = vpack.c.bf16 %v2047, %v2044
  %v2074 = vpack.c.bf16 %v2055, %v2052
  %v2075 = vpack.c.bf16 %v2063, %v2060
  %v2076 = vpack.c.bf16 %v2068, %v2068
  %s2077 = scalar_lea.vmem %s5, 24
  %v2078 = vld [vmem:[%s2077] sm:$0xf]
  %v2079 = vld [vmem:[%s2077 + $0x4] sm:$0xf]
  %v2082 = vunpack.c.l.b16 %v2078
  %v2083 = vunpack.c.l.b16 %v2079
  %v2084 = vpack.c.b16 %v2083, %v2082
  %v2087 = vsel %vm195, %v2073, 0
  %v2090 = vsel %vm195, %v2074, 0
  %v2093 = vsel %vm195, %v2075, 0
  %v2096 = vsel %vm195, %v2076, 0
  %2098 = vmatprep.subr.bf16.mxu0 0
  %2099 = vmatpush1.bf16.msra.mxu0 %v2084
  %2100 = vmatprep.subr.bf16.mxu0 0
  %2101 = vmatpush1.bf16.msra.mxu0 0
  %2102 = vmatprep.subr.bf16.mxu0 0
  %2103 = vmatpush1.bf16.msra.mxu0 0
  %2104 = vmatprep.subr.bf16.mxu0 0
  %2105 = vmatpush1.bf16.msra.mxu0 0
  %2106 = vmatprep.subr.bf16.mxu0 0
  %2107 = vmatpush1.bf16.msra.mxu0 0
  %2108 = vmatprep.subr.bf16.mxu0 0
  %2109 = vmatpush1.bf16.msra.mxu0 0
  %2110 = vmatprep.subr.bf16.mxu0 0
  %2111 = vmatpush1.bf16.msra.mxu0 0
  %2112 = vmatprep.subr.bf16.mxu0 0
  %2113 = vmatpush1.bf16.msra.mxu0 0
  %2114 = vmatprep.subr.bf16.mxu0 0
  %2115 = vmatpush1.bf16.msra.mxu0 0
  %2116 = vmatprep.subr.bf16.mxu0 0
  %2117 = vmatpush1.bf16.msra.mxu0 0
  %2118 = vmatprep.subr.bf16.mxu0 0
  %2119 = vmatpush1.bf16.msra.mxu0 0
  %2120 = vmatprep.subr.bf16.mxu0 0
  %2121 = vmatpush1.bf16.msra.mxu0 0
  %2122 = vmatprep.subr.bf16.mxu0 0
  %2123 = vmatpush1.bf16.msra.mxu0 0
  %2124 = vmatprep.subr.bf16.mxu0 0
  %2125 = vmatpush1.bf16.msra.mxu0 0
  %2126 = vmatprep.subr.bf16.mxu0 0
  %2127 = vmatpush1.bf16.msra.mxu0 0
  %2128 = vmatprep.subr.bf16.mxu0 0
  %2129 = vmatpush1.bf16.msra.mxu0 0
  %2130 = vmatprep.mubr.bf16.mxu0 0
  %2131 = vmatmul.mubr.bf16.gmra.mrb[0].mxu0 %v2087
  %v2132 = vpop.f32.mrb[0].mxu0
  %v2133 = vadd.f32 0.0, %v2132
  %v2134 = vpop.f32.mrb[0].mxu0
  %v2135 = vpop.f32.mrb[0].mxu0
  %v2136 = vadd.f32 0.0, %v2135
  %v2137 = vpop.f32.mrb[0].mxu0
  %2138 = vmatprep.mubr.bf16.mxu0 0
  %2139 = vmatmul.mubr.bf16.gmra.mrb[0].mxu0 %v2090
  %v2140 = vpop.f32.mrb[0].mxu0
  %v2141 = vadd.f32 0.0, %v2140
  %v2142 = vpop.f32.mrb[0].mxu0
  %v2143 = vpop.f32.mrb[0].mxu0
  %v2144 = vadd.f32 0.0, %v2143
  %v2145 = vpop.f32.mrb[0].mxu0
  %2146 = vmatprep.mubr.bf16.mxu0 0
  %2147 = vmatmul.mubr.bf16.gmra.mrb[0].mxu0 %v2093
  %v2148 = vpop.f32.mrb[0].mxu0
  %v2149 = vadd.f32 0.0, %v2148
  %v2150 = vpop.f32.mrb[0].mxu0
  %v2151 = vpop.f32.mrb[0].mxu0
  %v2152 = vadd.f32 0.0, %v2151
  %v2153 = vpop.f32.mrb[0].mxu0
  %2154 = vmatprep.mubr.bf16.mxu0 0
  %2155 = vmatmul.mubr.bf16.gmra.mrb[0].mxu0 %v2096
  %v2156 = vpop.f32.mrb[0].mxu0
  %v2157 = vadd.f32 0.0, %v2156
  %v2158 = vpop.f32.mrb[0].mxu0
  %v2159 = vpop.f32.mrb[0].mxu0
  %v2160 = vpop.f32.mrb[0].mxu0
  %2161 = vdwg.mxu0
  %v2162 = vadd.f32 %v1856, %v2133
  %v2163 = vadd.f32 %v1857, %v2136
  %v2164 = vadd.f32 %v1858, %v2141
  %v2165 = vadd.f32 %v1859, %v2144
  %v2166 = vadd.f32 %v1860, %v2149
  %v2167 = vadd.f32 %v1861, %v2152
  %v2168 = vadd.f32 %v1862, %v2157
  %s2169 = scalar_lea.vmem %s4, 336
  %v2170 = vld [vmem:[%s2169] sm:$0xff]
  %v2171 = vld [vmem:[%s2169 + $0x8] sm:$0xf]
  %v2172 = vld [vmem:[%s2169 + $0xc] sm:$0xff]
  %v2173 = vld [vmem:[%s2169 + $0x14] sm:$0xf]
  %v2174 = vld [vmem:[%s2169 + $0x18] sm:$0xff]
  %v2175 = vld [vmem:[%s2169 + $0x20] sm:$0xf]
  %v2176 = vld [vmem:[%s2169 + $0x24] sm:$0xff]
  %v2177 = vld [vmem:[%s2169 + $0x2c] sm:$0xf]
  %v2178 = vld [vmem:[%s2169 + $0x30] sm:$0xff]
  %v2179 = vld [vmem:[%s2169 + $0x38] sm:$0xf]
  %v2180 = vld [vmem:[%s2169 + $0x3c] sm:$0xff]
  %v2181 = vld [vmem:[%s2169 + $0x44] sm:$0xf]
  %v2182 = vld [vmem:[%s2169 + $0x48] sm:$0x11]
  %v2183 = vld [vmem:[%s2169 + $0x50] sm:$0x1]
  %v2198 = vunpack.c.l.b16 %v2170
  %v2199 = vunpack.c.h.b16 %v2170
  %v2200 = vunpack.c.l.b16 %v2171
  %v2201 = vunpack.c.l.b16 %v2172
  %v2202 = vunpack.c.h.b16 %v2172
  %v2203 = vunpack.c.l.b16 %v2173
  %v2204 = vunpack.c.l.b16 %v2174
  %v2205 = vunpack.c.h.b16 %v2174
  %v2206 = vunpack.c.l.b16 %v2175
  %v2207 = vunpack.c.l.b16 %v2176
  %v2208 = vunpack.c.h.b16 %v2176
  %v2209 = vunpack.c.l.b16 %v2177
  %v2210 = vunpack.c.l.b16 %v2178
  %v2211 = vunpack.c.h.b16 %v2178
  %v2212 = vunpack.c.l.b16 %v2179
  %v2213 = vunpack.c.l.b16 %v2180
  %v2214 = vunpack.c.h.b16 %v2180
  %v2215 = vunpack.c.l.b16 %v2181
  %v2216 = vunpack.c.l.b16 %v2182
  %v2217 = vunpack.c.h.b16 %v2182
  %v2218 = vunpack.c.l.b16 %v2183
  %v2219 = vpack.c.b16 %v2201, %v2198
  %v2220 = vpack.c.b16 %v2202, %v2199
  %v2221 = vpack.c.b16 %v2203, %v2200
  %v2222 = vpack.c.b16 %v2207, %v2204
  %v2223 = vpack.c.b16 %v2208, %v2205
  %v2224 = vpack.c.b16 %v2209, %v2206
  %v2225 = vpack.c.b16 %v2213, %v2210
  %v2226 = vpack.c.b16 %v2214, %v2211
  %v2227 = vpack.c.b16 %v2215, %v2212
  %v2228 = vpack.c.b16 %v2216, %v2216
  %v2229 = vpack.c.b16 %v2217, %v2217
  %v2230 = vpack.c.b16 %v2218, %v2218
  %v2240 = vsel %vm1025, %v2221, 0
  %v2243 = vsel %vm1025, %v2224, 0
  %v2246 = vsel %vm1025, %v2227, 0
  %v2249 = vsel %vm1025, %v2230, 0
  %2251 = vmatprep.subr.bf16.mxu0 0
  %2252 = vmatpush1.bf16.msra.mxu0 %v934
  %2253 = vmatprep.subr.bf16.mxu0 0
  %2254 = vmatpush1.bf16.msra.mxu0 %v935
  %2255 = vmatprep.subr.bf16.mxu0 0
  %2256 = vmatpush1.bf16.msra.mxu0 %v936
  %2257 = vmatprep.subr.bf16.mxu0 0
  %2258 = vmatpush1.bf16.msra.mxu0 %v937
  %2259 = vmatprep.subr.bf16.mxu0 0
  %2260 = vmatpush1.bf16.msra.mxu0 %v938
  %2261 = vmatprep.subr.bf16.mxu0 0
  %2262 = vmatpush1.bf16.msra.mxu0 %v939
  %2263 = vmatprep.subr.bf16.mxu0 0
  %2264 = vmatpush1.bf16.msra.mxu0 %v940
  %2265 = vmatprep.subr.bf16.mxu0 0
  %2266 = vmatpush1.bf16.msra.mxu0 %v941
  %2267 = vmatprep.subr.bf16.mxu0 0
  %2268 = vmatpush1.bf16.msra.mxu0 %v942
  %2269 = vmatprep.subr.bf16.mxu0 0
  %2270 = vmatpush1.bf16.msra.mxu0 %v943
  %2271 = vmatprep.subr.bf16.mxu0 0
  %2272 = vmatpush1.bf16.msra.mxu0 %v944
  %2273 = vmatprep.subr.bf16.mxu0 0
  %2274 = vmatpush1.bf16.msra.mxu0 %v945
  %2275 = vmatprep.subr.bf16.mxu0 0
  %2276 = vmatpush1.bf16.msra.mxu0 %v946
  %2277 = vmatprep.subr.bf16.mxu0 0
  %2278 = vmatpush1.bf16.msra.mxu0 %v947
  %2279 = vmatprep.subr.bf16.mxu0 0
  %2280 = vmatpush1.bf16.msra.mxu0 %v948
  %2281 = vmatprep.subr.bf16.mxu0 0
  %2282 = vmatpush1.bf16.msra.mxu0 %v949
  %2283 = vmatprep.mubr.bf16.mxu0 %v2220
  %2284 = vmatmul.mubr.bf16.gmra.mrb[0].mxu0 %v2219
  %v2285 = vpop.f32.mrb[0].mxu0
  %v2286 = vadd.f32 0.0, %v2285
  %v2287 = vpop.f32.mrb[0].mxu0
  %v2288 = vpop.f32.mrb[0].mxu0
  %v2289 = vadd.f32 0.0, %v2288
  %v2290 = vpop.f32.mrb[0].mxu0
  %2291 = vmatprep.mubr.bf16.mxu0 %v2223
  %2292 = vmatmul.mubr.bf16.gmra.mrb[0].mxu0 %v2222
  %v2293 = vpop.f32.mrb[0].mxu0
  %v2294 = vadd.f32 0.0, %v2293
  %v2295 = vpop.f32.mrb[0].mxu0
  %v2296 = vpop.f32.mrb[0].mxu0
  %v2297 = vadd.f32 0.0, %v2296
  %v2298 = vpop.f32.mrb[0].mxu0
  %2299 = vmatprep.mubr.bf16.mxu0 %v2226
  %2300 = vmatmul.mubr.bf16.gmra.mrb[0].mxu0 %v2225
  %v2301 = vpop.f32.mrb[0].mxu0
  %v2302 = vadd.f32 0.0, %v2301
  %v2303 = vpop.f32.mrb[0].mxu0
  %v2304 = vpop.f32.mrb[0].mxu0
  %v2305 = vadd.f32 0.0, %v2304
  %v2306 = vpop.f32.mrb[0].mxu0
  %2307 = vmatprep.mubr.bf16.mxu0 %v2229
  %2308 = vmatmul.mubr.bf16.gmra.mrb[0].mxu0 %v2228
  %v2309 = vpop.f32.mrb[0].mxu0
  %v2310 = vadd.f32 0.0, %v2309
  %v2311 = vpop.f32.mrb[0].mxu0
  %v2312 = vpop.f32.mrb[0].mxu0
  %v2313 = vpop.f32.mrb[0].mxu0
  %2314 = vdwg.mxu0
  %2315 = vmatprep.subr.bf16.mxu0 0
  %2316 = vmatpush1.bf16.msra.mxu0 %v950
  %2317 = vmatprep.subr.bf16.mxu0 0
  %2318 = vmatpush1.bf16.msra.mxu0 %v951
  %2319 = vmatprep.subr.bf16.mxu0 0
  %2320 = vmatpush1.bf16.msra.mxu0 %v952
  %2321 = vmatprep.subr.bf16.mxu0 0
  %2322 = vmatpush1.bf16.msra.mxu0 %v953
  %2323 = vmatprep.subr.bf16.mxu0 0
  %2324 = vmatpush1.bf16.msra.mxu0 %v954
  %2325 = vmatprep.subr.bf16.mxu0 0
  %2326 = vmatpush1.bf16.msra.mxu0 %v1040
  %2327 = vmatprep.subr.bf16.mxu0 0
  %2328 = vmatpush1.bf16.msra.mxu0 0
  %2329 = vmatprep.subr.bf16.mxu0 0
  %2330 = vmatpush1.bf16.msra.mxu0 0
  %2331 = vmatprep.subr.bf16.mxu0 0
  %2332 = vmatpush1.bf16.msra.mxu0 0
  %2333 = vmatprep.subr.bf16.mxu0 0
  %2334 = vmatpush1.bf16.msra.mxu0 0
  %2335 = vmatprep.subr.bf16.mxu0 0
  %2336 = vmatpush1.bf16.msra.mxu0 0
  %2337 = vmatprep.subr.bf16.mxu0 0
  %2338 = vmatpush1.bf16.msra.mxu0 0
  %2339 = vmatprep.subr.bf16.mxu0 0
  %2340 = vmatpush1.bf16.msra.mxu0 0
  %2341 = vmatprep.subr.bf16.mxu0 0
  %2342 = vmatpush1.bf16.msra.mxu0 0
  %2343 = vmatprep.subr.bf16.mxu0 0
  %2344 = vmatpush1.bf16.msra.mxu0 0
  %2345 = vmatprep.subr.bf16.mxu0 0
  %2346 = vmatpush1.bf16.msra.mxu0 0
  %2347 = vmatprep.mubr.bf16.mxu0 0
  %2348 = vmatmul.mubr.bf16.gmra.mrb[0].mxu0 %v2240
  %v2349 = vpop.f32.mrb[0].mxu0
  %v2350 = vadd.f32 %v2286, %v2349
  %v2351 = vpop.f32.mrb[0].mxu0
  %v2352 = vpop.f32.mrb[0].mxu0
  %v2353 = vadd.f32 %v2289, %v2352
  %v2354 = vpop.f32.mrb[0].mxu0
  %2355 = vmatprep.mubr.bf16.mxu0 0
  %2356 = vmatmul.mubr.bf16.gmra.mrb[0].mxu0 %v2243
  %v2357 = vpop.f32.mrb[0].mxu0
  %v2358 = vadd.f32 %v2294, %v2357
  %v2359 = vpop.f32.mrb[0].mxu0
  %v2360 = vpop.f32.mrb[0].mxu0
  %v2361 = vadd.f32 %v2297, %v2360
  %v2362 = vpop.f32.mrb[0].mxu0
  %2363 = vmatprep.mubr.bf16.mxu0 0
  %2364 = vmatmul.mubr.bf16.gmra.mrb[0].mxu0 %v2246
  %v2365 = vpop.f32.mrb[0].mxu0
  %v2366 = vadd.f32 %v2302, %v2365
  %v2367 = vpop.f32.mrb[0].mxu0
  %v2368 = vpop.f32.mrb[0].mxu0
  %v2369 = vadd.f32 %v2305, %v2368
  %v2370 = vpop.f32.mrb[0].mxu0
  %2371 = vmatprep.mubr.bf16.mxu0 0
  %2372 = vmatmul.mubr.bf16.gmra.mrb[0].mxu0 %v2249
  %v2373 = vpop.f32.mrb[0].mxu0
  %v2374 = vadd.f32 %v2310, %v2373
  %v2375 = vpop.f32.mrb[0].mxu0
  %v2376 = vpop.f32.mrb[0].mxu0
  %v2377 = vpop.f32.mrb[0].mxu0
  %2378 = vdwg.mxu0
  %v2379 = vpack.c.bf16 %v2353, %v2350
  %v2380 = vpack.c.bf16 %v2361, %v2358
  %v2381 = vpack.c.bf16 %v2369, %v2366
  %v2382 = vpack.c.bf16 %v2374, %v2374
  %s2383 = scalar_lea.vmem %s5, 32
  %v2384 = vld [vmem:[%s2383] sm:$0xf]
  %v2385 = vld [vmem:[%s2383 + $0x4] sm:$0xf]
  %v2388 = vunpack.c.l.b16 %v2384
  %v2389 = vunpack.c.l.b16 %v2385
  %v2390 = vpack.c.b16 %v2389, %v2388
  %v2393 = vsel %vm195, %v2379, 0
  %v2396 = vsel %vm195, %v2380, 0
  %v2399 = vsel %vm195, %v2381, 0
  %v2402 = vsel %vm195, %v2382, 0
  %2404 = vmatprep.subr.bf16.mxu0 0
  %2405 = vmatpush1.bf16.msra.mxu0 %v2390
  %2406 = vmatprep.subr.bf16.mxu0 0
  %2407 = vmatpush1.bf16.msra.mxu0 0
  %2408 = vmatprep.subr.bf16.mxu0 0
  %2409 = vmatpush1.bf16.msra.mxu0 0
  %2410 = vmatprep.subr.bf16.mxu0 0
  %2411 = vmatpush1.bf16.msra.mxu0 0
  %2412 = vmatprep.subr.bf16.mxu0 0
  %2413 = vmatpush1.bf16.msra.mxu0 0
  %2414 = vmatprep.subr.bf16.mxu0 0
  %2415 = vmatpush1.bf16.msra.mxu0 0
  %2416 = vmatprep.subr.bf16.mxu0 0
  %2417 = vmatpush1.bf16.msra.mxu0 0
  %2418 = vmatprep.subr.bf16.mxu0 0
  %2419 = vmatpush1.bf16.msra.mxu0 0
  %2420 = vmatprep.subr.bf16.mxu0 0
  %2421 = vmatpush1.bf16.msra.mxu0 0
  %2422 = vmatprep.subr.bf16.mxu0 0
  %2423 = vmatpush1.bf16.msra.mxu0 0
  %2424 = vmatprep.subr.bf16.mxu0 0
  %2425 = vmatpush1.bf16.msra.mxu0 0
  %2426 = vmatprep.subr.bf16.mxu0 0
  %2427 = vmatpush1.bf16.msra.mxu0 0
  %2428 = vmatprep.subr.bf16.mxu0 0
  %2429 = vmatpush1.bf16.msra.mxu0 0
  %2430 = vmatprep.subr.bf16.mxu0 0
  %2431 = vmatpush1.bf16.msra.mxu0 0
  %2432 = vmatprep.subr.bf16.mxu0 0
  %2433 = vmatpush1.bf16.msra.mxu0 0
  %2434 = vmatprep.subr.bf16.mxu0 0
  %2435 = vmatpush1.bf16.msra.mxu0 0
  %2436 = vmatprep.mubr.bf16.mxu0 0
  %2437 = vmatmul.mubr.bf16.gmra.mrb[0].mxu0 %v2393
  %v2438 = vpop.f32.mrb[0].mxu0
  %v2439 = vadd.f32 0.0, %v2438
  %v2440 = vpop.f32.mrb[0].mxu0
  %v2441 = vpop.f32.mrb[0].mxu0
  %v2442 = vadd.f32 0.0, %v2441
  %v2443 = vpop.f32.mrb[0].mxu0
  %2444 = vmatprep.mubr.bf16.mxu0 0
  %2445 = vmatmul.mubr.bf16.gmra.mrb[0].mxu0 %v2396
  %v2446 = vpop.f32.mrb[0].mxu0
  %v2447 = vadd.f32 0.0, %v2446
  %v2448 = vpop.f32.mrb[0].mxu0
  %v2449 = vpop.f32.mrb[0].mxu0
  %v2450 = vadd.f32 0.0, %v2449
  %v2451 = vpop.f32.mrb[0].mxu0
  %2452 = vmatprep.mubr.bf16.mxu0 0
  %2453 = vmatmul.mubr.bf16.gmra.mrb[0].mxu0 %v2399
  %v2454 = vpop.f32.mrb[0].mxu0
  %v2455 = vadd.f32 0.0, %v2454
  %v2456 = vpop.f32.mrb[0].mxu0
  %v2457 = vpop.f32.mrb[0].mxu0
  %v2458 = vadd.f32 0.0, %v2457
  %v2459 = vpop.f32.mrb[0].mxu0
  %2460 = vmatprep.mubr.bf16.mxu0 0
  %2461 = vmatmul.mubr.bf16.gmra.mrb[0].mxu0 %v2402
  %v2462 = vpop.f32.mrb[0].mxu0
  %v2463 = vadd.f32 0.0, %v2462
  %v2464 = vpop.f32.mrb[0].mxu0
  %v2465 = vpop.f32.mrb[0].mxu0
  %v2466 = vpop.f32.mrb[0].mxu0
  %2467 = vdwg.mxu0
  %v2468 = vadd.f32 %v2162, %v2439
  %v2469 = vadd.f32 %v2163, %v2442
  %v2470 = vadd.f32 %v2164, %v2447
  %v2471 = vadd.f32 %v2165, %v2450
  %v2472 = vadd.f32 %v2166, %v2455
  %v2473 = vadd.f32 %v2167, %v2458
  %v2474 = vadd.f32 %v2168, %v2463
  %s2475 = scalar_lea.vmem %s4, 420
  %v2476 = vld [vmem:[%s2475] sm:$0xff]
  %v2477 = vld [vmem:[%s2475 + $0x8] sm:$0xf]
  %v2478 = vld [vmem:[%s2475 + $0xc] sm:$0xff]
  %v2479 = vld [vmem:[%s2475 + $0x14] sm:$0xf]
  %v2480 = vld [vmem:[%s2475 + $0x18] sm:$0xff]
  %v2481 = vld [vmem:[%s2475 + $0x20] sm:$0xf]
  %v2482 = vld [vmem:[%s2475 + $0x24] sm:$0xff]
  %v2483 = vld [vmem:[%s2475 + $0x2c] sm:$0xf]
  %v2484 = vld [vmem:[%s2475 + $0x30] sm:$0xff]
  %v2485 = vld [vmem:[%s2475 + $0x38] sm:$0xf]
  %v2486 = vld [vmem:[%s2475 + $0x3c] sm:$0xff]
  %v2487 = vld [vmem:[%s2475 + $0x44] sm:$0xf]
  %v2488 = vld [vmem:[%s2475 + $0x48] sm:$0x11]
  %v2489 = vld [vmem:[%s2475 + $0x50] sm:$0x1]
  %v2504 = vunpack.c.l.b16 %v2476
  %v2505 = vunpack.c.h.b16 %v2476
  %v2506 = vunpack.c.l.b16 %v2477
  %v2507 = vunpack.c.l.b16 %v2478
  %v2508 = vunpack.c.h.b16 %v2478
  %v2509 = vunpack.c.l.b16 %v2479
  %v2510 = vunpack.c.l.b16 %v2480
  %v2511 = vunpack.c.h.b16 %v2480
  %v2512 = vunpack.c.l.b16 %v2481
  %v2513 = vunpack.c.l.b16 %v2482
  %v2514 = vunpack.c.h.b16 %v2482
  %v2515 = vunpack.c.l.b16 %v2483
  %v2516 = vunpack.c.l.b16 %v2484
  %v2517 = vunpack.c.h.b16 %v2484
  %v2518 = vunpack.c.l.b16 %v2485
  %v2519 = vunpack.c.l.b16 %v2486
  %v2520 = vunpack.c.h.b16 %v2486
  %v2521 = vunpack.c.l.b16 %v2487
  %v2522 = vunpack.c.l.b16 %v2488
  %v2523 = vunpack.c.h.b16 %v2488
  %v2524 = vunpack.c.l.b16 %v2489
  %v2525 = vpack.c.b16 %v2507, %v2504
  %v2526 = vpack.c.b16 %v2508, %v2505
  %v2527 = vpack.c.b16 %v2509, %v2506
  %v2528 = vpack.c.b16 %v2513, %v2510
  %v2529 = vpack.c.b16 %v2514, %v2511
  %v2530 = vpack.c.b16 %v2515, %v2512
  %v2531 = vpack.c.b16 %v2519, %v2516
  %v2532 = vpack.c.b16 %v2520, %v2517
  %v2533 = vpack.c.b16 %v2521, %v2518
  %v2534 = vpack.c.b16 %v2522, %v2522
  %v2535 = vpack.c.b16 %v2523, %v2523
  %v2536 = vpack.c.b16 %v2524, %v2524
  %v2546 = vsel %vm1025, %v2527, 0
  %v2549 = vsel %vm1025, %v2530, 0
  %v2552 = vsel %vm1025, %v2533, 0
  %v2555 = vsel %vm1025, %v2536, 0
  %2557 = vmatprep.subr.bf16.mxu0 0
  %2558 = vmatpush1.bf16.msra.mxu0 %v934
  %2559 = vmatprep.subr.bf16.mxu0 0
  %2560 = vmatpush1.bf16.msra.mxu0 %v935
  %2561 = vmatprep.subr.bf16.mxu0 0
  %2562 = vmatpush1.bf16.msra.mxu0 %v936
  %2563 = vmatprep.subr.bf16.mxu0 0
  %2564 = vmatpush1.bf16.msra.mxu0 %v937
  %2565 = vmatprep.subr.bf16.mxu0 0
  %2566 = vmatpush1.bf16.msra.mxu0 %v938
  %2567 = vmatprep.subr.bf16.mxu0 0
  %2568 = vmatpush1.bf16.msra.mxu0 %v939
  %2569 = vmatprep.subr.bf16.mxu0 0
  %2570 = vmatpush1.bf16.msra.mxu0 %v940
  %2571 = vmatprep.subr.bf16.mxu0 0
  %2572 = vmatpush1.bf16.msra.mxu0 %v941
  %2573 = vmatprep.subr.bf16.mxu0 0
  %2574 = vmatpush1.bf16.msra.mxu0 %v942
  %2575 = vmatprep.subr.bf16.mxu0 0
  %2576 = vmatpush1.bf16.msra.mxu0 %v943
  %2577 = vmatprep.subr.bf16.mxu0 0
  %2578 = vmatpush1.bf16.msra.mxu0 %v944
  %2579 = vmatprep.subr.bf16.mxu0 0
  %2580 = vmatpush1.bf16.msra.mxu0 %v945
  %2581 = vmatprep.subr.bf16.mxu0 0
  %2582 = vmatpush1.bf16.msra.mxu0 %v946
  %2583 = vmatprep.subr.bf16.mxu0 0
  %2584 = vmatpush1.bf16.msra.mxu0 %v947
  %2585 = vmatprep.subr.bf16.mxu0 0
  %2586 = vmatpush1.bf16.msra.mxu0 %v948
  %2587 = vmatprep.subr.bf16.mxu0 0
  %2588 = vmatpush1.bf16.msra.mxu0 %v949
  %2589 = vmatprep.mubr.bf16.mxu0 %v2526
  %2590 = vmatmul.mubr.bf16.gmra.mrb[0].mxu0 %v2525
  %v2591 = vpop.f32.mrb[0].mxu0
  %v2592 = vadd.f32 0.0, %v2591
  %v2593 = vpop.f32.mrb[0].mxu0
  %v2594 = vpop.f32.mrb[0].mxu0
  %v2595 = vadd.f32 0.0, %v2594
  %v2596 = vpop.f32.mrb[0].mxu0
  %2597 = vmatprep.mubr.bf16.mxu0 %v2529
  %2598 = vmatmul.mubr.bf16.gmra.mrb[0].mxu0 %v2528
  %v2599 = vpop.f32.mrb[0].mxu0
  %v2600 = vadd.f32 0.0, %v2599
  %v2601 = vpop.f32.mrb[0].mxu0
  %v2602 = vpop.f32.mrb[0].mxu0
  %v2603 = vadd.f32 0.0, %v2602
  %v2604 = vpop.f32.mrb[0].mxu0
  %2605 = vmatprep.mubr.bf16.mxu0 %v2532
  %2606 = vmatmul.mubr.bf16.gmra.mrb[0].mxu0 %v2531
  %v2607 = vpop.f32.mrb[0].mxu0
  %v2608 = vadd.f32 0.0, %v2607
  %v2609 = vpop.f32.mrb[0].mxu0
  %v2610 = vpop.f32.mrb[0].mxu0
  %v2611 = vadd.f32 0.0, %v2610
  %v2612 = vpop.f32.mrb[0].mxu0
  %2613 = vmatprep.mubr.bf16.mxu0 %v2535
  %2614 = vmatmul.mubr.bf16.gmra.mrb[0].mxu0 %v2534
  %v2615 = vpop.f32.mrb[0].mxu0
  %v2616 = vadd.f32 0.0, %v2615
  %v2617 = vpop.f32.mrb[0].mxu0
  %v2618 = vpop.f32.mrb[0].mxu0
  %v2619 = vpop.f32.mrb[0].mxu0
  %2620 = vdwg.mxu0
  %2621 = vmatprep.subr.bf16.mxu0 0
  %2622 = vmatpush1.bf16.msra.mxu0 %v950
  %2623 = vmatprep.subr.bf16.mxu0 0
  %2624 = vmatpush1.bf16.msra.mxu0 %v951
  %2625 = vmatprep.subr.bf16.mxu0 0
  %2626 = vmatpush1.bf16.msra.mxu0 %v952
  %2627 = vmatprep.subr.bf16.mxu0 0
  %2628 = vmatpush1.bf16.msra.mxu0 %v953
  %2629 = vmatprep.subr.bf16.mxu0 0
  %2630 = vmatpush1.bf16.msra.mxu0 %v954
  %2631 = vmatprep.subr.bf16.mxu0 0
  %2632 = vmatpush1.bf16.msra.mxu0 %v1040
  %2633 = vmatprep.subr.bf16.mxu0 0
  %2634 = vmatpush1.bf16.msra.mxu0 0
  %2635 = vmatprep.subr.bf16.mxu0 0
  %2636 = vmatpush1.bf16.msra.mxu0 0
  %2637 = vmatprep.subr.bf16.mxu0 0
  %2638 = vmatpush1.bf16.msra.mxu0 0
  %2639 = vmatprep.subr.bf16.mxu0 0
  %2640 = vmatpush1.bf16.msra.mxu0 0
  %2641 = vmatprep.subr.bf16.mxu0 0
  %2642 = vmatpush1.bf16.msra.mxu0 0
  %2643 = vmatprep.subr.bf16.mxu0 0
  %2644 = vmatpush1.bf16.msra.mxu0 0
  %2645 = vmatprep.subr.bf16.mxu0 0
  %2646 = vmatpush1.bf16.msra.mxu0 0
  %2647 = vmatprep.subr.bf16.mxu0 0
  %2648 = vmatpush1.bf16.msra.mxu0 0
  %2649 = vmatprep.subr.bf16.mxu0 0
  %2650 = vmatpush1.bf16.msra.mxu0 0
  %2651 = vmatprep.subr.bf16.mxu0 0
  %2652 = vmatpush1.bf16.msra.mxu0 0
  %2653 = vmatprep.mubr.bf16.mxu0 0
  %2654 = vmatmul.mubr.bf16.gmra.mrb[0].mxu0 %v2546
  %v2655 = vpop.f32.mrb[0].mxu0
  %v2656 = vadd.f32 %v2592, %v2655
  %v2657 = vpop.f32.mrb[0].mxu0
  %v2658 = vpop.f32.mrb[0].mxu0
  %v2659 = vadd.f32 %v2595, %v2658
  %v2660 = vpop.f32.mrb[0].mxu0
  %2661 = vmatprep.mubr.bf16.mxu0 0
  %2662 = vmatmul.mubr.bf16.gmra.mrb[0].mxu0 %v2549
  %v2663 = vpop.f32.mrb[0].mxu0
  %v2664 = vadd.f32 %v2600, %v2663
  %v2665 = vpop.f32.mrb[0].mxu0
  %v2666 = vpop.f32.mrb[0].mxu0
  %v2667 = vadd.f32 %v2603, %v2666
  %v2668 = vpop.f32.mrb[0].mxu0
  %2669 = vmatprep.mubr.bf16.mxu0 0
  %2670 = vmatmul.mubr.bf16.gmra.mrb[0].mxu0 %v2552
  %v2671 = vpop.f32.mrb[0].mxu0
  %v2672 = vadd.f32 %v2608, %v2671
  %v2673 = vpop.f32.mrb[0].mxu0
  %v2674 = vpop.f32.mrb[0].mxu0
  %v2675 = vadd.f32 %v2611, %v2674
  %v2676 = vpop.f32.mrb[0].mxu0
  %2677 = vmatprep.mubr.bf16.mxu0 0
  %2678 = vmatmul.mubr.bf16.gmra.mrb[0].mxu0 %v2555
  %v2679 = vpop.f32.mrb[0].mxu0
  %v2680 = vadd.f32 %v2616, %v2679
  %v2681 = vpop.f32.mrb[0].mxu0
  %v2682 = vpop.f32.mrb[0].mxu0
  %v2683 = vpop.f32.mrb[0].mxu0
  %2684 = vdwg.mxu0
  %v2685 = vpack.c.bf16 %v2659, %v2656
  %v2686 = vpack.c.bf16 %v2667, %v2664
  %v2687 = vpack.c.bf16 %v2675, %v2672
  %v2688 = vpack.c.bf16 %v2680, %v2680
  %s2689 = scalar_lea.vmem %s5, 40
  %v2690 = vld [vmem:[%s2689] sm:$0xf]
  %v2691 = vld [vmem:[%s2689 + $0x4] sm:$0xf]
  %v2694 = vunpack.c.l.b16 %v2690
  %v2695 = vunpack.c.l.b16 %v2691
  %v2696 = vpack.c.b16 %v2695, %v2694
  %v2699 = vsel %vm195, %v2685, 0
  %v2702 = vsel %vm195, %v2686, 0
  %v2705 = vsel %vm195, %v2687, 0
  %v2708 = vsel %vm195, %v2688, 0
  %2710 = vmatprep.subr.bf16.mxu0 0
  %2711 = vmatpush1.bf16.msra.mxu0 %v2696
  %2712 = vmatprep.subr.bf16.mxu0 0
  %2713 = vmatpush1.bf16.msra.mxu0 0
  %2714 = vmatprep.subr.bf16.mxu0 0
  %2715 = vmatpush1.bf16.msra.mxu0 0
  %2716 = vmatprep.subr.bf16.mxu0 0
  %2717 = vmatpush1.bf16.msra.mxu0 0
  %2718 = vmatprep.subr.bf16.mxu0 0
  %2719 = vmatpush1.bf16.msra.mxu0 0
  %2720 = vmatprep.subr.bf16.mxu0 0
  %2721 = vmatpush1.bf16.msra.mxu0 0
  %2722 = vmatprep.subr.bf16.mxu0 0
  %2723 = vmatpush1.bf16.msra.mxu0 0
  %2724 = vmatprep.subr.bf16.mxu0 0
  %2725 = vmatpush1.bf16.msra.mxu0 0
  %2726 = vmatprep.subr.bf16.mxu0 0
  %2727 = vmatpush1.bf16.msra.mxu0 0
  %2728 = vmatprep.subr.bf16.mxu0 0
  %2729 = vmatpush1.bf16.msra.mxu0 0
  %2730 = vmatprep.subr.bf16.mxu0 0
  %2731 = vmatpush1.bf16.msra.mxu0 0
  %2732 = vmatprep.subr.bf16.mxu0 0
  %2733 = vmatpush1.bf16.msra.mxu0 0
  %2734 = vmatprep.subr.bf16.mxu0 0
  %2735 = vmatpush1.bf16.msra.mxu0 0
  %2736 = vmatprep.subr.bf16.mxu0 0
  %2737 = vmatpush1.bf16.msra.mxu0 0
  %2738 = vmatprep.subr.bf16.mxu0 0
  %2739 = vmatpush1.bf16.msra.mxu0 0
  %2740 = vmatprep.subr.bf16.mxu0 0
  %2741 = vmatpush1.bf16.msra.mxu0 0
  %2742 = vmatprep.mubr.bf16.mxu0 0
  %2743 = vmatmul.mubr.bf16.gmra.mrb[0].mxu0 %v2699
  %v2744 = vpop.f32.mrb[0].mxu0
  %v2745 = vadd.f32 0.0, %v2744
  %v2746 = vpop.f32.mrb[0].mxu0
  %v2747 = vpop.f32.mrb[0].mxu0
  %v2748 = vadd.f32 0.0, %v2747
  %v2749 = vpop.f32.mrb[0].mxu0
  %2750 = vmatprep.mubr.bf16.mxu0 0
  %2751 = vmatmul.mubr.bf16.gmra.mrb[0].mxu0 %v2702
  %v2752 = vpop.f32.mrb[0].mxu0
  %v2753 = vadd.f32 0.0, %v2752
  %v2754 = vpop.f32.mrb[0].mxu0
  %v2755 = vpop.f32.mrb[0].mxu0
  %v2756 = vadd.f32 0.0, %v2755
  %v2757 = vpop.f32.mrb[0].mxu0
  %2758 = vmatprep.mubr.bf16.mxu0 0
  %2759 = vmatmul.mubr.bf16.gmra.mrb[0].mxu0 %v2705
  %v2760 = vpop.f32.mrb[0].mxu0
  %v2761 = vadd.f32 0.0, %v2760
  %v2762 = vpop.f32.mrb[0].mxu0
  %v2763 = vpop.f32.mrb[0].mxu0
  %v2764 = vadd.f32 0.0, %v2763
  %v2765 = vpop.f32.mrb[0].mxu0
  %2766 = vmatprep.mubr.bf16.mxu0 0
  %2767 = vmatmul.mubr.bf16.gmra.mrb[0].mxu0 %v2708
  %v2768 = vpop.f32.mrb[0].mxu0
  %v2769 = vadd.f32 0.0, %v2768
  %v2770 = vpop.f32.mrb[0].mxu0
  %v2771 = vpop.f32.mrb[0].mxu0
  %v2772 = vpop.f32.mrb[0].mxu0
  %2773 = vdwg.mxu0
  %v2774 = vadd.f32 %v2468, %v2745
  %v2775 = vadd.f32 %v2469, %v2748
  %v2776 = vadd.f32 %v2470, %v2753
  %v2777 = vadd.f32 %v2471, %v2756
  %v2778 = vadd.f32 %v2472, %v2761
  %v2779 = vadd.f32 %v2473, %v2764
  %v2780 = vadd.f32 %v2474, %v2769
  %s2781 = scalar_lea.vmem %s4, 504
  %v2782 = vld [vmem:[%s2781] sm:$0xff]
  %v2783 = vld [vmem:[%s2781 + $0x8] sm:$0xf]
  %v2784 = vld [vmem:[%s2781 + $0xc] sm:$0xff]
  %v2785 = vld [vmem:[%s2781 + $0x14] sm:$0xf]
  %v2786 = vld [vmem:[%s2781 + $0x18] sm:$0xff]
  %v2787 = vld [vmem:[%s2781 + $0x20] sm:$0xf]
  %v2788 = vld [vmem:[%s2781 + $0x24] sm:$0xff]
  %v2789 = vld [vmem:[%s2781 + $0x2c] sm:$0xf]
  %v2790 = vld [vmem:[%s2781 + $0x30] sm:$0xff]
  %v2791 = vld [vmem:[%s2781 + $0x38] sm:$0xf]
  %v2792 = vld [vmem:[%s2781 + $0x3c] sm:$0xff]
  %v2793 = vld [vmem:[%s2781 + $0x44] sm:$0xf]
  %v2794 = vld [vmem:[%s2781 + $0x48] sm:$0x11]
  %v2795 = vld [vmem:[%s2781 + $0x50] sm:$0x1]
  %v2810 = vunpack.c.l.b16 %v2782
  %v2811 = vunpack.c.h.b16 %v2782
  %v2812 = vunpack.c.l.b16 %v2783
  %v2813 = vunpack.c.l.b16 %v2784
  %v2814 = vunpack.c.h.b16 %v2784
  %v2815 = vunpack.c.l.b16 %v2785
  %v2816 = vunpack.c.l.b16 %v2786
  %v2817 = vunpack.c.h.b16 %v2786
  %v2818 = vunpack.c.l.b16 %v2787
  %v2819 = vunpack.c.l.b16 %v2788
  %v2820 = vunpack.c.h.b16 %v2788
  %v2821 = vunpack.c.l.b16 %v2789
  %v2822 = vunpack.c.l.b16 %v2790
  %v2823 = vunpack.c.h.b16 %v2790
  %v2824 = vunpack.c.l.b16 %v2791
  %v2825 = vunpack.c.l.b16 %v2792
  %v2826 = vunpack.c.h.b16 %v2792
  %v2827 = vunpack.c.l.b16 %v2793
  %v2828 = vunpack.c.l.b16 %v2794
  %v2829 = vunpack.c.h.b16 %v2794
  %v2830 = vunpack.c.l.b16 %v2795
  %v2831 = vpack.c.b16 %v2813, %v2810
  %v2832 = vpack.c.b16 %v2814, %v2811
  %v2833 = vpack.c.b16 %v2815, %v2812
  %v2834 = vpack.c.b16 %v2819, %v2816
  %v2835 = vpack.c.b16 %v2820, %v2817
  %v2836 = vpack.c.b16 %v2821, %v2818
  %v2837 = vpack.c.b16 %v2825, %v2822
  %v2838 = vpack.c.b16 %v2826, %v2823
  %v2839 = vpack.c.b16 %v2827, %v2824
  %v2840 = vpack.c.b16 %v2828, %v2828
  %v2841 = vpack.c.b16 %v2829, %v2829
  %v2842 = vpack.c.b16 %v2830, %v2830
  %v2852 = vsel %vm1025, %v2833, 0
  %v2855 = vsel %vm1025, %v2836, 0
  %v2858 = vsel %vm1025, %v2839, 0
  %v2861 = vsel %vm1025, %v2842, 0
  %2863 = vmatprep.subr.bf16.mxu0 0
  %2864 = vmatpush1.bf16.msra.mxu0 %v934
  %2865 = vmatprep.subr.bf16.mxu0 0
  %2866 = vmatpush1.bf16.msra.mxu0 %v935
  %2867 = vmatprep.subr.bf16.mxu0 0
  %2868 = vmatpush1.bf16.msra.mxu0 %v936
  %2869 = vmatprep.subr.bf16.mxu0 0
  %2870 = vmatpush1.bf16.msra.mxu0 %v937
  %2871 = vmatprep.subr.bf16.mxu0 0
  %2872 = vmatpush1.bf16.msra.mxu0 %v938
  %2873 = vmatprep.subr.bf16.mxu0 0
  %2874 = vmatpush1.bf16.msra.mxu0 %v939
  %2875 = vmatprep.subr.bf16.mxu0 0
  %2876 = vmatpush1.bf16.msra.mxu0 %v940
  %2877 = vmatprep.subr.bf16.mxu0 0
  %2878 = vmatpush1.bf16.msra.mxu0 %v941
  %2879 = vmatprep.subr.bf16.mxu0 0
  %2880 = vmatpush1.bf16.msra.mxu0 %v942
  %2881 = vmatprep.subr.bf16.mxu0 0
  %2882 = vmatpush1.bf16.msra.mxu0 %v943
  %2883 = vmatprep.subr.bf16.mxu0 0
  %2884 = vmatpush1.bf16.msra.mxu0 %v944
  %2885 = vmatprep.subr.bf16.mxu0 0
  %2886 = vmatpush1.bf16.msra.mxu0 %v945
  %2887 = vmatprep.subr.bf16.mxu0 0
  %2888 = vmatpush1.bf16.msra.mxu0 %v946
  %2889 = vmatprep.subr.bf16.mxu0 0
  %2890 = vmatpush1.bf16.msra.mxu0 %v947
  %2891 = vmatprep.subr.bf16.mxu0 0
  %2892 = vmatpush1.bf16.msra.mxu0 %v948
  %2893 = vmatprep.subr.bf16.mxu0 0
  %2894 = vmatpush1.bf16.msra.mxu0 %v949
  %2895 = vmatprep.mubr.bf16.mxu0 %v2832
  %2896 = vmatmul.mubr.bf16.gmra.mrb[0].mxu0 %v2831
  %v2897 = vpop.f32.mrb[0].mxu0
  %v2898 = vadd.f32 0.0, %v2897
  %v2899 = vpop.f32.mrb[0].mxu0
  %v2900 = vpop.f32.mrb[0].mxu0
  %v2901 = vadd.f32 0.0, %v2900
  %v2902 = vpop.f32.mrb[0].mxu0
  %2903 = vmatprep.mubr.bf16.mxu0 %v2835
  %2904 = vmatmul.mubr.bf16.gmra.mrb[0].mxu0 %v2834
  %v2905 = vpop.f32.mrb[0].mxu0
  %v2906 = vadd.f32 0.0, %v2905
  %v2907 = vpop.f32.mrb[0].mxu0
  %v2908 = vpop.f32.mrb[0].mxu0
  %v2909 = vadd.f32 0.0, %v2908
  %v2910 = vpop.f32.mrb[0].mxu0
  %2911 = vmatprep.mubr.bf16.mxu0 %v2838
  %2912 = vmatmul.mubr.bf16.gmra.mrb[0].mxu0 %v2837
  %v2913 = vpop.f32.mrb[0].mxu0
  %v2914 = vadd.f32 0.0, %v2913
  %v2915 = vpop.f32.mrb[0].mxu0
  %v2916 = vpop.f32.mrb[0].mxu0
  %v2917 = vadd.f32 0.0, %v2916
  %v2918 = vpop.f32.mrb[0].mxu0
  %2919 = vmatprep.mubr.bf16.mxu0 %v2841
  %2920 = vmatmul.mubr.bf16.gmra.mrb[0].mxu0 %v2840
  %v2921 = vpop.f32.mrb[0].mxu0
  %v2922 = vadd.f32 0.0, %v2921
  %v2923 = vpop.f32.mrb[0].mxu0
  %v2924 = vpop.f32.mrb[0].mxu0
  %v2925 = vpop.f32.mrb[0].mxu0
  %2926 = vdwg.mxu0
  %2927 = vmatprep.subr.bf16.mxu0 0
  %2928 = vmatpush1.bf16.msra.mxu0 %v950
  %2929 = vmatprep.subr.bf16.mxu0 0
  %2930 = vmatpush1.bf16.msra.mxu0 %v951
  %2931 = vmatprep.subr.bf16.mxu0 0
  %2932 = vmatpush1.bf16.msra.mxu0 %v952
  %2933 = vmatprep.subr.bf16.mxu0 0
  %2934 = vmatpush1.bf16.msra.mxu0 %v953
  %2935 = vmatprep.subr.bf16.mxu0 0
  %2936 = vmatpush1.bf16.msra.mxu0 %v954
  %2937 = vmatprep.subr.bf16.mxu0 0
  %2938 = vmatpush1.bf16.msra.mxu0 %v1040
  %2939 = vmatprep.subr.bf16.mxu0 0
  %2940 = vmatpush1.bf16.msra.mxu0 0
  %2941 = vmatprep.subr.bf16.mxu0 0
  %2942 = vmatpush1.bf16.msra.mxu0 0
  %2943 = vmatprep.subr.bf16.mxu0 0
  %2944 = vmatpush1.bf16.msra.mxu0 0
  %2945 = vmatprep.subr.bf16.mxu0 0
  %2946 = vmatpush1.bf16.msra.mxu0 0
  %2947 = vmatprep.subr.bf16.mxu0 0
  %2948 = vmatpush1.bf16.msra.mxu0 0
  %2949 = vmatprep.subr.bf16.mxu0 0
  %2950 = vmatpush1.bf16.msra.mxu0 0
  %2951 = vmatprep.subr.bf16.mxu0 0
  %2952 = vmatpush1.bf16.msra.mxu0 0
  %2953 = vmatprep.subr.bf16.mxu0 0
  %2954 = vmatpush1.bf16.msra.mxu0 0
  %2955 = vmatprep.subr.bf16.mxu0 0
  %2956 = vmatpush1.bf16.msra.mxu0 0
  %2957 = vmatprep.subr.bf16.mxu0 0
  %2958 = vmatpush1.bf16.msra.mxu0 0
  %2959 = vmatprep.mubr.bf16.mxu0 0
  %2960 = vmatmul.mubr.bf16.gmra.mrb[0].mxu0 %v2852
  %v2961 = vpop.f32.mrb[0].mxu0
  %v2962 = vadd.f32 %v2898, %v2961
  %v2963 = vpop.f32.mrb[0].mxu0
  %v2964 = vpop.f32.mrb[0].mxu0
  %v2965 = vadd.f32 %v2901, %v2964
  %v2966 = vpop.f32.mrb[0].mxu0
  %2967 = vmatprep.mubr.bf16.mxu0 0
  %2968 = vmatmul.mubr.bf16.gmra.mrb[0].mxu0 %v2855
  %v2969 = vpop.f32.mrb[0].mxu0
  %v2970 = vadd.f32 %v2906, %v2969
  %v2971 = vpop.f32.mrb[0].mxu0
  %v2972 = vpop.f32.mrb[0].mxu0
  %v2973 = vadd.f32 %v2909, %v2972
  %v2974 = vpop.f32.mrb[0].mxu0
  %2975 = vmatprep.mubr.bf16.mxu0 0
  %2976 = vmatmul.mubr.bf16.gmra.mrb[0].mxu0 %v2858
  %v2977 = vpop.f32.mrb[0].mxu0
  %v2978 = vadd.f32 %v2914, %v2977
  %v2979 = vpop.f32.mrb[0].mxu0
  %v2980 = vpop.f32.mrb[0].mxu0
  %v2981 = vadd.f32 %v2917, %v2980
  %v2982 = vpop.f32.mrb[0].mxu0
  %2983 = vmatprep.mubr.bf16.mxu0 0
  %2984 = vmatmul.mubr.bf16.gmra.mrb[0].mxu0 %v2861
  %v2985 = vpop.f32.mrb[0].mxu0
  %v2986 = vadd.f32 %v2922, %v2985
  %v2987 = vpop.f32.mrb[0].mxu0
  %v2988 = vpop.f32.mrb[0].mxu0
  %v2989 = vpop.f32.mrb[0].mxu0
  %2990 = vdwg.mxu0
  %v2991 = vpack.c.bf16 %v2965, %v2962
  %v2992 = vpack.c.bf16 %v2973, %v2970
  %v2993 = vpack.c.bf16 %v2981, %v2978
  %v2994 = vpack.c.bf16 %v2986, %v2986
  %s2995 = scalar_lea.vmem %s5, 48
  %v2996 = vld [vmem:[%s2995] sm:$0xf]
  %v2997 = vld [vmem:[%s2995 + $0x4] sm:$0xf]
  %v3000 = vunpack.c.l.b16 %v2996
  %v3001 = vunpack.c.l.b16 %v2997
  %v3002 = vpack.c.b16 %v3001, %v3000
  %v3005 = vsel %vm195, %v2991, 0
  %v3008 = vsel %vm195, %v2992, 0
  %v3011 = vsel %vm195, %v2993, 0
  %v3014 = vsel %vm195, %v2994, 0
  %3016 = vmatprep.subr.bf16.mxu0 0
  %3017 = vmatpush1.bf16.msra.mxu0 %v3002
  %3018 = vmatprep.subr.bf16.mxu0 0
  %3019 = vmatpush1.bf16.msra.mxu0 0
  %3020 = vmatprep.subr.bf16.mxu0 0
  %3021 = vmatpush1.bf16.msra.mxu0 0
  %3022 = vmatprep.subr.bf16.mxu0 0
  %3023 = vmatpush1.bf16.msra.mxu0 0
  %3024 = vmatprep.subr.bf16.mxu0 0
  %3025 = vmatpush1.bf16.msra.mxu0 0
  %3026 = vmatprep.subr.bf16.mxu0 0
  %3027 = vmatpush1.bf16.msra.mxu0 0
  %3028 = vmatprep.subr.bf16.mxu0 0
  %3029 = vmatpush1.bf16.msra.mxu0 0
  %3030 = vmatprep.subr.bf16.mxu0 0
  %3031 = vmatpush1.bf16.msra.mxu0 0
  %3032 = vmatprep.subr.bf16.mxu0 0
  %3033 = vmatpush1.bf16.msra.mxu0 0
  %3034 = vmatprep.subr.bf16.mxu0 0
  %3035 = vmatpush1.bf16.msra.mxu0 0
  %3036 = vmatprep.subr.bf16.mxu0 0
  %3037 = vmatpush1.bf16.msra.mxu0 0
  %3038 = vmatprep.subr.bf16.mxu0 0
  %3039 = vmatpush1.bf16.msra.mxu0 0
  %3040 = vmatprep.subr.bf16.mxu0 0
  %3041 = vmatpush1.bf16.msra.mxu0 0
  %3042 = vmatprep.subr.bf16.mxu0 0
  %3043 = vmatpush1.bf16.msra.mxu0 0
  %3044 = vmatprep.subr.bf16.mxu0 0
  %3045 = vmatpush1.bf16.msra.mxu0 0
  %3046 = vmatprep.subr.bf16.mxu0 0
  %3047 = vmatpush1.bf16.msra.mxu0 0
  %3048 = vmatprep.mubr.bf16.mxu0 0
  %3049 = vmatmul.mubr.bf16.gmra.mrb[0].mxu0 %v3005
  %v3050 = vpop.f32.mrb[0].mxu0
  %v3051 = vadd.f32 0.0, %v3050
  %v3052 = vpop.f32.mrb[0].mxu0
  %v3053 = vpop.f32.mrb[0].mxu0
  %v3054 = vadd.f32 0.0, %v3053
  %v3055 = vpop.f32.mrb[0].mxu0
  %3056 = vmatprep.mubr.bf16.mxu0 0
  %3057 = vmatmul.mubr.bf16.gmra.mrb[0].mxu0 %v3008
  %v3058 = vpop.f32.mrb[0].mxu0
  %v3059 = vadd.f32 0.0, %v3058
  %v3060 = vpop.f32.mrb[0].mxu0
  %v3061 = vpop.f32.mrb[0].mxu0
  %v3062 = vadd.f32 0.0, %v3061
  %v3063 = vpop.f32.mrb[0].mxu0
  %3064 = vmatprep.mubr.bf16.mxu0 0
  %3065 = vmatmul.mubr.bf16.gmra.mrb[0].mxu0 %v3011
  %v3066 = vpop.f32.mrb[0].mxu0
  %v3067 = vadd.f32 0.0, %v3066
  %v3068 = vpop.f32.mrb[0].mxu0
  %v3069 = vpop.f32.mrb[0].mxu0
  %v3070 = vadd.f32 0.0, %v3069
  %v3071 = vpop.f32.mrb[0].mxu0
  %3072 = vmatprep.mubr.bf16.mxu0 0
  %3073 = vmatmul.mubr.bf16.gmra.mrb[0].mxu0 %v3014
  %v3074 = vpop.f32.mrb[0].mxu0
  %v3075 = vadd.f32 0.0, %v3074
  %v3076 = vpop.f32.mrb[0].mxu0
  %v3077 = vpop.f32.mrb[0].mxu0
  %v3078 = vpop.f32.mrb[0].mxu0
  %3079 = vdwg.mxu0
  %v3080 = vadd.f32 %v2774, %v3051
  %v3081 = vadd.f32 %v2775, %v3054
  %v3082 = vadd.f32 %v2776, %v3059
  %v3083 = vadd.f32 %v2777, %v3062
  %v3084 = vadd.f32 %v2778, %v3067
  %v3085 = vadd.f32 %v2779, %v3070
  %v3086 = vadd.f32 %v2780, %v3075
  %s3087 = scalar_lea.vmem %s4, 588
  %v3088 = vld [vmem:[%s3087] sm:$0xff]
  %v3089 = vld [vmem:[%s3087 + $0x8] sm:$0xf]
  %v3090 = vld [vmem:[%s3087 + $0xc] sm:$0xff]
  %v3091 = vld [vmem:[%s3087 + $0x14] sm:$0xf]
  %v3092 = vld [vmem:[%s3087 + $0x18] sm:$0xff]
  %v3093 = vld [vmem:[%s3087 + $0x20] sm:$0xf]
  %v3094 = vld [vmem:[%s3087 + $0x24] sm:$0xff]
  %v3095 = vld [vmem:[%s3087 + $0x2c] sm:$0xf]
  %v3096 = vld [vmem:[%s3087 + $0x30] sm:$0xff]
  %v3097 = vld [vmem:[%s3087 + $0x38] sm:$0xf]
  %v3098 = vld [vmem:[%s3087 + $0x3c] sm:$0xff]
  %v3099 = vld [vmem:[%s3087 + $0x44] sm:$0xf]
  %v3100 = vld [vmem:[%s3087 + $0x48] sm:$0x11]
  %v3101 = vld [vmem:[%s3087 + $0x50] sm:$0x1]
  %v3116 = vunpack.c.l.b16 %v3088
  %v3117 = vunpack.c.h.b16 %v3088
  %v3118 = vunpack.c.l.b16 %v3089
  %v3119 = vunpack.c.l.b16 %v3090
  %v3120 = vunpack.c.h.b16 %v3090
  %v3121 = vunpack.c.l.b16 %v3091
  %v3122 = vunpack.c.l.b16 %v3092
  %v3123 = vunpack.c.h.b16 %v3092
  %v3124 = vunpack.c.l.b16 %v3093
  %v3125 = vunpack.c.l.b16 %v3094
  %v3126 = vunpack.c.h.b16 %v3094
  %v3127 = vunpack.c.l.b16 %v3095
  %v3128 = vunpack.c.l.b16 %v3096
  %v3129 = vunpack.c.h.b16 %v3096
  %v3130 = vunpack.c.l.b16 %v3097
  %v3131 = vunpack.c.l.b16 %v3098
  %v3132 = vunpack.c.h.b16 %v3098
  %v3133 = vunpack.c.l.b16 %v3099
  %v3134 = vunpack.c.l.b16 %v3100
  %v3135 = vunpack.c.h.b16 %v3100
  %v3136 = vunpack.c.l.b16 %v3101
  %v3137 = vpack.c.b16 %v3119, %v3116
  %v3138 = vpack.c.b16 %v3120, %v3117
  %v3139 = vpack.c.b16 %v3121, %v3118
  %v3140 = vpack.c.b16 %v3125, %v3122
  %v3141 = vpack.c.b16 %v3126, %v3123
  %v3142 = vpack.c.b16 %v3127, %v3124
  %v3143 = vpack.c.b16 %v3131, %v3128
  %v3144 = vpack.c.b16 %v3132, %v3129
  %v3145 = vpack.c.b16 %v3133, %v3130
  %v3146 = vpack.c.b16 %v3134, %v3134
  %v3147 = vpack.c.b16 %v3135, %v3135
  %v3148 = vpack.c.b16 %v3136, %v3136
  %v3158 = vsel %vm1025, %v3139, 0
  %v3161 = vsel %vm1025, %v3142, 0
  %v3164 = vsel %vm1025, %v3145, 0
  %v3167 = vsel %vm1025, %v3148, 0
  %3169 = vmatprep.subr.bf16.mxu0 0
  %3170 = vmatpush1.bf16.msra.mxu0 %v934
  %3171 = vmatprep.subr.bf16.mxu0 0
  %3172 = vmatpush1.bf16.msra.mxu0 %v935
  %3173 = vmatprep.subr.bf16.mxu0 0
  %3174 = vmatpush1.bf16.msra.mxu0 %v936
  %3175 = vmatprep.subr.bf16.mxu0 0
  %3176 = vmatpush1.bf16.msra.mxu0 %v937
  %3177 = vmatprep.subr.bf16.mxu0 0
  %3178 = vmatpush1.bf16.msra.mxu0 %v938
  %3179 = vmatprep.subr.bf16.mxu0 0
  %3180 = vmatpush1.bf16.msra.mxu0 %v939
  %3181 = vmatprep.subr.bf16.mxu0 0
  %3182 = vmatpush1.bf16.msra.mxu0 %v940
  %3183 = vmatprep.subr.bf16.mxu0 0
  %3184 = vmatpush1.bf16.msra.mxu0 %v941
  %3185 = vmatprep.subr.bf16.mxu0 0
  %3186 = vmatpush1.bf16.msra.mxu0 %v942
  %3187 = vmatprep.subr.bf16.mxu0 0
  %3188 = vmatpush1.bf16.msra.mxu0 %v943
  %3189 = vmatprep.subr.bf16.mxu0 0
  %3190 = vmatpush1.bf16.msra.mxu0 %v944
  %3191 = vmatprep.subr.bf16.mxu0 0
  %3192 = vmatpush1.bf16.msra.mxu0 %v945
  %3193 = vmatprep.subr.bf16.mxu0 0
  %3194 = vmatpush1.bf16.msra.mxu0 %v946
  %3195 = vmatprep.subr.bf16.mxu0 0
  %3196 = vmatpush1.bf16.msra.mxu0 %v947
  %3197 = vmatprep.subr.bf16.mxu0 0
  %3198 = vmatpush1.bf16.msra.mxu0 %v948
  %3199 = vmatprep.subr.bf16.mxu0 0
  %3200 = vmatpush1.bf16.msra.mxu0 %v949
  %3201 = vmatprep.mubr.bf16.mxu0 %v3138
  %3202 = vmatmul.mubr.bf16.gmra.mrb[0].mxu0 %v3137
  %v3203 = vpop.f32.mrb[0].mxu0
  %v3204 = vadd.f32 0.0, %v3203
  %v3205 = vpop.f32.mrb[0].mxu0
  %v3206 = vpop.f32.mrb[0].mxu0
  %v3207 = vadd.f32 0.0, %v3206
  %v3208 = vpop.f32.mrb[0].mxu0
  %3209 = vmatprep.mubr.bf16.mxu0 %v3141
  %3210 = vmatmul.mubr.bf16.gmra.mrb[0].mxu0 %v3140
  %v3211 = vpop.f32.mrb[0].mxu0
  %v3212 = vadd.f32 0.0, %v3211
  %v3213 = vpop.f32.mrb[0].mxu0
  %v3214 = vpop.f32.mrb[0].mxu0
  %v3215 = vadd.f32 0.0, %v3214
  %v3216 = vpop.f32.mrb[0].mxu0
  %3217 = vmatprep.mubr.bf16.mxu0 %v3144
  %3218 = vmatmul.mubr.bf16.gmra.mrb[0].mxu0 %v3143
  %v3219 = vpop.f32.mrb[0].mxu0
  %v3220 = vadd.f32 0.0, %v3219
  %v3221 = vpop.f32.mrb[0].mxu0
  %v3222 = vpop.f32.mrb[0].mxu0
  %v3223 = vadd.f32 0.0, %v3222
  %v3224 = vpop.f32.mrb[0].mxu0
  %3225 = vmatprep.mubr.bf16.mxu0 %v3147
  %3226 = vmatmul.mubr.bf16.gmra.mrb[0].mxu0 %v3146
  %v3227 = vpop.f32.mrb[0].mxu0
  %v3228 = vadd.f32 0.0, %v3227
  %v3229 = vpop.f32.mrb[0].mxu0
  %v3230 = vpop.f32.mrb[0].mxu0
  %v3231 = vpop.f32.mrb[0].mxu0
  %3232 = vdwg.mxu0
  %3233 = vmatprep.subr.bf16.mxu0 0
  %3234 = vmatpush1.bf16.msra.mxu0 %v950
  %3235 = vmatprep.subr.bf16.mxu0 0
  %3236 = vmatpush1.bf16.msra.mxu0 %v951
  %3237 = vmatprep.subr.bf16.mxu0 0
  %3238 = vmatpush1.bf16.msra.mxu0 %v952
  %3239 = vmatprep.subr.bf16.mxu0 0
  %3240 = vmatpush1.bf16.msra.mxu0 %v953
  %3241 = vmatprep.subr.bf16.mxu0 0
  %3242 = vmatpush1.bf16.msra.mxu0 %v954
  %3243 = vmatprep.subr.bf16.mxu0 0
  %3244 = vmatpush1.bf16.msra.mxu0 %v1040
  %3245 = vmatprep.subr.bf16.mxu0 0
  %3246 = vmatpush1.bf16.msra.mxu0 0
  %3247 = vmatprep.subr.bf16.mxu0 0
  %3248 = vmatpush1.bf16.msra.mxu0 0
  %3249 = vmatprep.subr.bf16.mxu0 0
  %3250 = vmatpush1.bf16.msra.mxu0 0
  %3251 = vmatprep.subr.bf16.mxu0 0
  %3252 = vmatpush1.bf16.msra.mxu0 0
  %3253 = vmatprep.subr.bf16.mxu0 0
  %3254 = vmatpush1.bf16.msra.mxu0 0
  %3255 = vmatprep.subr.bf16.mxu0 0
  %3256 = vmatpush1.bf16.msra.mxu0 0
  %3257 = vmatprep.subr.bf16.mxu0 0
  %3258 = vmatpush1.bf16.msra.mxu0 0
  %3259 = vmatprep.subr.bf16.mxu0 0
  %3260 = vmatpush1.bf16.msra.mxu0 0
  %3261 = vmatprep.subr.bf16.mxu0 0
  %3262 = vmatpush1.bf16.msra.mxu0 0
  %3263 = vmatprep.subr.bf16.mxu0 0
  %3264 = vmatpush1.bf16.msra.mxu0 0
  %3265 = vmatprep.mubr.bf16.mxu0 0
  %3266 = vmatmul.mubr.bf16.gmra.mrb[0].mxu0 %v3158
  %v3267 = vpop.f32.mrb[0].mxu0
  %v3268 = vadd.f32 %v3204, %v3267
  %v3269 = vpop.f32.mrb[0].mxu0
  %v3270 = vpop.f32.mrb[0].mxu0
  %v3271 = vadd.f32 %v3207, %v3270
  %v3272 = vpop.f32.mrb[0].mxu0
  %3273 = vmatprep.mubr.bf16.mxu0 0
  %3274 = vmatmul.mubr.bf16.gmra.mrb[0].mxu0 %v3161
  %v3275 = vpop.f32.mrb[0].mxu0
  %v3276 = vadd.f32 %v3212, %v3275
  %v3277 = vpop.f32.mrb[0].mxu0
  %v3278 = vpop.f32.mrb[0].mxu0
  %v3279 = vadd.f32 %v3215, %v3278
  %v3280 = vpop.f32.mrb[0].mxu0
  %3281 = vmatprep.mubr.bf16.mxu0 0
  %3282 = vmatmul.mubr.bf16.gmra.mrb[0].mxu0 %v3164
  %v3283 = vpop.f32.mrb[0].mxu0
  %v3284 = vadd.f32 %v3220, %v3283
  %v3285 = vpop.f32.mrb[0].mxu0
  %v3286 = vpop.f32.mrb[0].mxu0
  %v3287 = vadd.f32 %v3223, %v3286
  %v3288 = vpop.f32.mrb[0].mxu0
  %3289 = vmatprep.mubr.bf16.mxu0 0
  %3290 = vmatmul.mubr.bf16.gmra.mrb[0].mxu0 %v3167
  %v3291 = vpop.f32.mrb[0].mxu0
  %v3292 = vadd.f32 %v3228, %v3291
  %v3293 = vpop.f32.mrb[0].mxu0
  %v3294 = vpop.f32.mrb[0].mxu0
  %v3295 = vpop.f32.mrb[0].mxu0
  %3296 = vdwg.mxu0
  %v3297 = vpack.c.bf16 %v3271, %v3268
  %v3298 = vpack.c.bf16 %v3279, %v3276
  %v3299 = vpack.c.bf16 %v3287, %v3284
  %v3300 = vpack.c.bf16 %v3292, %v3292
  %s3301 = scalar_lea.vmem %s5, 56
  %v3302 = vld [vmem:[%s3301] sm:$0xf]
  %v3303 = vld [vmem:[%s3301 + $0x4] sm:$0xf]
  %v3306 = vunpack.c.l.b16 %v3302
  %v3307 = vunpack.c.l.b16 %v3303
  %v3308 = vpack.c.b16 %v3307, %v3306
  %v3311 = vsel %vm195, %v3297, 0
  %v3314 = vsel %vm195, %v3298, 0
  %v3317 = vsel %vm195, %v3299, 0
  %v3320 = vsel %vm195, %v3300, 0
  %3322 = vmatprep.subr.bf16.mxu0 0
  %3323 = vmatpush1.bf16.msra.mxu0 %v3308
  %3324 = vmatprep.subr.bf16.mxu0 0
  %3325 = vmatpush1.bf16.msra.mxu0 0
  %3326 = vmatprep.subr.bf16.mxu0 0
  %3327 = vmatpush1.bf16.msra.mxu0 0
  %3328 = vmatprep.subr.bf16.mxu0 0
  %3329 = vmatpush1.bf16.msra.mxu0 0
  %3330 = vmatprep.subr.bf16.mxu0 0
  %3331 = vmatpush1.bf16.msra.mxu0 0
  %3332 = vmatprep.subr.bf16.mxu0 0
  %3333 = vmatpush1.bf16.msra.mxu0 0
  %3334 = vmatprep.subr.bf16.mxu0 0
  %3335 = vmatpush1.bf16.msra.mxu0 0
  %3336 = vmatprep.subr.bf16.mxu0 0
  %3337 = vmatpush1.bf16.msra.mxu0 0
  %3338 = vmatprep.subr.bf16.mxu0 0
  %3339 = vmatpush1.bf16.msra.mxu0 0
  %3340 = vmatprep.subr.bf16.mxu0 0
  %3341 = vmatpush1.bf16.msra.mxu0 0
  %3342 = vmatprep.subr.bf16.mxu0 0
  %3343 = vmatpush1.bf16.msra.mxu0 0
  %3344 = vmatprep.subr.bf16.mxu0 0
  %3345 = vmatpush1.bf16.msra.mxu0 0
  %3346 = vmatprep.subr.bf16.mxu0 0
  %3347 = vmatpush1.bf16.msra.mxu0 0
  %3348 = vmatprep.subr.bf16.mxu0 0
  %3349 = vmatpush1.bf16.msra.mxu0 0
  %3350 = vmatprep.subr.bf16.mxu0 0
  %3351 = vmatpush1.bf16.msra.mxu0 0
  %3352 = vmatprep.subr.bf16.mxu0 0
  %3353 = vmatpush1.bf16.msra.mxu0 0
  %3354 = vmatprep.mubr.bf16.mxu0 0
  %3355 = vmatmul.mubr.bf16.gmra.mrb[0].mxu0 %v3311
  %v3356 = vpop.f32.mrb[0].mxu0
  %v3357 = vadd.f32 0.0, %v3356
  %v3358 = vpop.f32.mrb[0].mxu0
  %v3359 = vpop.f32.mrb[0].mxu0
  %v3360 = vadd.f32 0.0, %v3359
  %v3361 = vpop.f32.mrb[0].mxu0
  %3362 = vmatprep.mubr.bf16.mxu0 0
  %3363 = vmatmul.mubr.bf16.gmra.mrb[0].mxu0 %v3314
  %v3364 = vpop.f32.mrb[0].mxu0
  %v3365 = vadd.f32 0.0, %v3364
  %v3366 = vpop.f32.mrb[0].mxu0
  %v3367 = vpop.f32.mrb[0].mxu0
  %v3368 = vadd.f32 0.0, %v3367
  %v3369 = vpop.f32.mrb[0].mxu0
  %3370 = vmatprep.mubr.bf16.mxu0 0
  %3371 = vmatmul.mubr.bf16.gmra.mrb[0].mxu0 %v3317
  %v3372 = vpop.f32.mrb[0].mxu0
  %v3373 = vadd.f32 0.0, %v3372
  %v3374 = vpop.f32.mrb[0].mxu0
  %v3375 = vpop.f32.mrb[0].mxu0
  %v3376 = vadd.f32 0.0, %v3375
  %v3377 = vpop.f32.mrb[0].mxu0
  %3378 = vmatprep.mubr.bf16.mxu0 0
  %3379 = vmatmul.mubr.bf16.gmra.mrb[0].mxu0 %v3320
  %v3380 = vpop.f32.mrb[0].mxu0
  %v3381 = vadd.f32 0.0, %v3380
  %v3382 = vpop.f32.mrb[0].mxu0
  %v3383 = vpop.f32.mrb[0].mxu0
  %v3384 = vpop.f32.mrb[0].mxu0
  %3385 = vdwg.mxu0
  %v3386 = vadd.f32 %v3080, %v3357
  %v3387 = vadd.f32 %v3081, %v3360
  %v3388 = vadd.f32 %v3082, %v3365
  %v3389 = vadd.f32 %v3083, %v3368
  %v3390 = vadd.f32 %v3084, %v3373
  %v3391 = vadd.f32 %v3085, %v3376
  %v3392 = vadd.f32 %v3086, %v3381
  %s3393 = scalar_lea.vmem %s4, 672
  %v3394 = vld [vmem:[%s3393] sm:$0xff]
  %v3395 = vld [vmem:[%s3393 + $0x8] sm:$0xf]
  %v3396 = vld [vmem:[%s3393 + $0xc] sm:$0xff]
  %v3397 = vld [vmem:[%s3393 + $0x14] sm:$0xf]
  %v3398 = vld [vmem:[%s3393 + $0x18] sm:$0xff]
  %v3399 = vld [vmem:[%s3393 + $0x20] sm:$0xf]
  %v3400 = vld [vmem:[%s3393 + $0x24] sm:$0xff]
  %v3401 = vld [vmem:[%s3393 + $0x2c] sm:$0xf]
  %v3402 = vld [vmem:[%s3393 + $0x30] sm:$0xff]
  %v3403 = vld [vmem:[%s3393 + $0x38] sm:$0xf]
  %v3404 = vld [vmem:[%s3393 + $0x3c] sm:$0xff]
  %v3405 = vld [vmem:[%s3393 + $0x44] sm:$0xf]
  %v3406 = vld [vmem:[%s3393 + $0x48] sm:$0x11]
  %v3407 = vld [vmem:[%s3393 + $0x50] sm:$0x1]
  %v3422 = vunpack.c.l.b16 %v3394
  %v3423 = vunpack.c.h.b16 %v3394
  %v3424 = vunpack.c.l.b16 %v3395
  %v3425 = vunpack.c.l.b16 %v3396
  %v3426 = vunpack.c.h.b16 %v3396
  %v3427 = vunpack.c.l.b16 %v3397
  %v3428 = vunpack.c.l.b16 %v3398
  %v3429 = vunpack.c.h.b16 %v3398
  %v3430 = vunpack.c.l.b16 %v3399
  %v3431 = vunpack.c.l.b16 %v3400
  %v3432 = vunpack.c.h.b16 %v3400
  %v3433 = vunpack.c.l.b16 %v3401
  %v3434 = vunpack.c.l.b16 %v3402
  %v3435 = vunpack.c.h.b16 %v3402
  %v3436 = vunpack.c.l.b16 %v3403
  %v3437 = vunpack.c.l.b16 %v3404
  %v3438 = vunpack.c.h.b16 %v3404
  %v3439 = vunpack.c.l.b16 %v3405
  %v3440 = vunpack.c.l.b16 %v3406
  %v3441 = vunpack.c.h.b16 %v3406
  %v3442 = vunpack.c.l.b16 %v3407
  %v3443 = vpack.c.b16 %v3425, %v3422
  %v3444 = vpack.c.b16 %v3426, %v3423
  %v3445 = vpack.c.b16 %v3427, %v3424
  %v3446 = vpack.c.b16 %v3431, %v3428
  %v3447 = vpack.c.b16 %v3432, %v3429
  %v3448 = vpack.c.b16 %v3433, %v3430
  %v3449 = vpack.c.b16 %v3437, %v3434
  %v3450 = vpack.c.b16 %v3438, %v3435
  %v3451 = vpack.c.b16 %v3439, %v3436
  %v3452 = vpack.c.b16 %v3440, %v3440
  %v3453 = vpack.c.b16 %v3441, %v3441
  %v3454 = vpack.c.b16 %v3442, %v3442
  %v3464 = vsel %vm1025, %v3445, 0
  %v3467 = vsel %vm1025, %v3448, 0
  %v3470 = vsel %vm1025, %v3451, 0
  %v3473 = vsel %vm1025, %v3454, 0
  %3475 = vmatprep.subr.bf16.mxu0 0
  %3476 = vmatpush1.bf16.msra.mxu0 %v934
  %3477 = vmatprep.subr.bf16.mxu0 0
  %3478 = vmatpush1.bf16.msra.mxu0 %v935
  %3479 = vmatprep.subr.bf16.mxu0 0
  %3480 = vmatpush1.bf16.msra.mxu0 %v936
  %3481 = vmatprep.subr.bf16.mxu0 0
  %3482 = vmatpush1.bf16.msra.mxu0 %v937
  %3483 = vmatprep.subr.bf16.mxu0 0
  %3484 = vmatpush1.bf16.msra.mxu0 %v938
  %3485 = vmatprep.subr.bf16.mxu0 0
  %3486 = vmatpush1.bf16.msra.mxu0 %v939
  %3487 = vmatprep.subr.bf16.mxu0 0
  %3488 = vmatpush1.bf16.msra.mxu0 %v940
  %3489 = vmatprep.subr.bf16.mxu0 0
  %3490 = vmatpush1.bf16.msra.mxu0 %v941
  %3491 = vmatprep.subr.bf16.mxu0 0
  %3492 = vmatpush1.bf16.msra.mxu0 %v942
  %3493 = vmatprep.subr.bf16.mxu0 0
  %3494 = vmatpush1.bf16.msra.mxu0 %v943
  %3495 = vmatprep.subr.bf16.mxu0 0
  %3496 = vmatpush1.bf16.msra.mxu0 %v944
  %3497 = vmatprep.subr.bf16.mxu0 0
  %3498 = vmatpush1.bf16.msra.mxu0 %v945
  %3499 = vmatprep.subr.bf16.mxu0 0
  %3500 = vmatpush1.bf16.msra.mxu0 %v946
  %3501 = vmatprep.subr.bf16.mxu0 0
  %3502 = vmatpush1.bf16.msra.mxu0 %v947
  %3503 = vmatprep.subr.bf16.mxu0 0
  %3504 = vmatpush1.bf16.msra.mxu0 %v948
  %3505 = vmatprep.subr.bf16.mxu0 0
  %3506 = vmatpush1.bf16.msra.mxu0 %v949
  %3507 = vmatprep.mubr.bf16.mxu0 %v3444
  %3508 = vmatmul.mubr.bf16.gmra.mrb[0].mxu0 %v3443
  %v3509 = vpop.f32.mrb[0].mxu0
  %v3510 = vadd.f32 0.0, %v3509
  %v3511 = vpop.f32.mrb[0].mxu0
  %v3512 = vpop.f32.mrb[0].mxu0
  %v3513 = vadd.f32 0.0, %v3512
  %v3514 = vpop.f32.mrb[0].mxu0
  %3515 = vmatprep.mubr.bf16.mxu0 %v3447
  %3516 = vmatmul.mubr.bf16.gmra.mrb[0].mxu0 %v3446
  %v3517 = vpop.f32.mrb[0].mxu0
  %v3518 = vadd.f32 0.0, %v3517
  %v3519 = vpop.f32.mrb[0].mxu0
  %v3520 = vpop.f32.mrb[0].mxu0
  %v3521 = vadd.f32 0.0, %v3520
  %v3522 = vpop.f32.mrb[0].mxu0
  %3523 = vmatprep.mubr.bf16.mxu0 %v3450
  %3524 = vmatmul.mubr.bf16.gmra.mrb[0].mxu0 %v3449
  %v3525 = vpop.f32.mrb[0].mxu0
  %v3526 = vadd.f32 0.0, %v3525
  %v3527 = vpop.f32.mrb[0].mxu0
  %v3528 = vpop.f32.mrb[0].mxu0
  %v3529 = vadd.f32 0.0, %v3528
  %v3530 = vpop.f32.mrb[0].mxu0
  %3531 = vmatprep.mubr.bf16.mxu0 %v3453
  %3532 = vmatmul.mubr.bf16.gmra.mrb[0].mxu0 %v3452
  %v3533 = vpop.f32.mrb[0].mxu0
  %v3534 = vadd.f32 0.0, %v3533
  %v3535 = vpop.f32.mrb[0].mxu0
  %v3536 = vpop.f32.mrb[0].mxu0
  %v3537 = vpop.f32.mrb[0].mxu0
  %3538 = vdwg.mxu0
  %3539 = vmatprep.subr.bf16.mxu0 0
  %3540 = vmatpush1.bf16.msra.mxu0 %v950
  %3541 = vmatprep.subr.bf16.mxu0 0
  %3542 = vmatpush1.bf16.msra.mxu0 %v951
  %3543 = vmatprep.subr.bf16.mxu0 0
  %3544 = vmatpush1.bf16.msra.mxu0 %v952
  %3545 = vmatprep.subr.bf16.mxu0 0
  %3546 = vmatpush1.bf16.msra.mxu0 %v953
  %3547 = vmatprep.subr.bf16.mxu0 0
  %3548 = vmatpush1.bf16.msra.mxu0 %v954
  %3549 = vmatprep.subr.bf16.mxu0 0
  %3550 = vmatpush1.bf16.msra.mxu0 %v1040
  %3551 = vmatprep.subr.bf16.mxu0 0
  %3552 = vmatpush1.bf16.msra.mxu0 0
  %3553 = vmatprep.subr.bf16.mxu0 0
  %3554 = vmatpush1.bf16.msra.mxu0 0
  %3555 = vmatprep.subr.bf16.mxu0 0
  %3556 = vmatpush1.bf16.msra.mxu0 0
  %3557 = vmatprep.subr.bf16.mxu0 0
  %3558 = vmatpush1.bf16.msra.mxu0 0
  %3559 = vmatprep.subr.bf16.mxu0 0
  %3560 = vmatpush1.bf16.msra.mxu0 0
  %3561 = vmatprep.subr.bf16.mxu0 0
  %3562 = vmatpush1.bf16.msra.mxu0 0
  %3563 = vmatprep.subr.bf16.mxu0 0
  %3564 = vmatpush1.bf16.msra.mxu0 0
  %3565 = vmatprep.subr.bf16.mxu0 0
  %3566 = vmatpush1.bf16.msra.mxu0 0
  %3567 = vmatprep.subr.bf16.mxu0 0
  %3568 = vmatpush1.bf16.msra.mxu0 0
  %3569 = vmatprep.subr.bf16.mxu0 0
  %3570 = vmatpush1.bf16.msra.mxu0 0
  %3571 = vmatprep.mubr.bf16.mxu0 0
  %3572 = vmatmul.mubr.bf16.gmra.mrb[0].mxu0 %v3464
  %v3573 = vpop.f32.mrb[0].mxu0
  %v3574 = vadd.f32 %v3510, %v3573
  %v3575 = vpop.f32.mrb[0].mxu0
  %v3576 = vpop.f32.mrb[0].mxu0
  %v3577 = vadd.f32 %v3513, %v3576
  %v3578 = vpop.f32.mrb[0].mxu0
  %3579 = vmatprep.mubr.bf16.mxu0 0
  %3580 = vmatmul.mubr.bf16.gmra.mrb[0].mxu0 %v3467
  %v3581 = vpop.f32.mrb[0].mxu0
  %v3582 = vadd.f32 %v3518, %v3581
  %v3583 = vpop.f32.mrb[0].mxu0
  %v3584 = vpop.f32.mrb[0].mxu0
  %v3585 = vadd.f32 %v3521, %v3584
  %v3586 = vpop.f32.mrb[0].mxu0
  %3587 = vmatprep.mubr.bf16.mxu0 0
  %3588 = vmatmul.mubr.bf16.gmra.mrb[0].mxu0 %v3470
  %v3589 = vpop.f32.mrb[0].mxu0
  %v3590 = vadd.f32 %v3526, %v3589
  %v3591 = vpop.f32.mrb[0].mxu0
  %v3592 = vpop.f32.mrb[0].mxu0
  %v3593 = vadd.f32 %v3529, %v3592
  %v3594 = vpop.f32.mrb[0].mxu0
  %3595 = vmatprep.mubr.bf16.mxu0 0
  %3596 = vmatmul.mubr.bf16.gmra.mrb[0].mxu0 %v3473
  %v3597 = vpop.f32.mrb[0].mxu0
  %v3598 = vadd.f32 %v3534, %v3597
  %v3599 = vpop.f32.mrb[0].mxu0
  %v3600 = vpop.f32.mrb[0].mxu0
  %v3601 = vpop.f32.mrb[0].mxu0
  %3602 = vdwg.mxu0
  %v3603 = vpack.c.bf16 %v3577, %v3574
  %v3604 = vpack.c.bf16 %v3585, %v3582
  %v3605 = vpack.c.bf16 %v3593, %v3590
  %v3606 = vpack.c.bf16 %v3598, %v3598
  %s3607 = scalar_lea.vmem %s5, 64
  %v3608 = vld [vmem:[%s3607] sm:$0xf]
  %v3609 = vld [vmem:[%s3607 + $0x4] sm:$0xf]
  %v3612 = vunpack.c.l.b16 %v3608
  %v3613 = vunpack.c.l.b16 %v3609
  %v3614 = vpack.c.b16 %v3613, %v3612
  %v3617 = vsel %vm195, %v3603, 0
  %v3620 = vsel %vm195, %v3604, 0
  %v3623 = vsel %vm195, %v3605, 0
  %v3626 = vsel %vm195, %v3606, 0
  %3628 = vmatprep.subr.bf16.mxu0 0
  %3629 = vmatpush1.bf16.msra.mxu0 %v3614
  %3630 = vmatprep.subr.bf16.mxu0 0
  %3631 = vmatpush1.bf16.msra.mxu0 0
  %3632 = vmatprep.subr.bf16.mxu0 0
  %3633 = vmatpush1.bf16.msra.mxu0 0
  %3634 = vmatprep.subr.bf16.mxu0 0
  %3635 = vmatpush1.bf16.msra.mxu0 0
  %3636 = vmatprep.subr.bf16.mxu0 0
  %3637 = vmatpush1.bf16.msra.mxu0 0
  %3638 = vmatprep.subr.bf16.mxu0 0
  %3639 = vmatpush1.bf16.msra.mxu0 0
  %3640 = vmatprep.subr.bf16.mxu0 0
  %3641 = vmatpush1.bf16.msra.mxu0 0
  %3642 = vmatprep.subr.bf16.mxu0 0
  %3643 = vmatpush1.bf16.msra.mxu0 0
  %3644 = vmatprep.subr.bf16.mxu0 0
  %3645 = vmatpush1.bf16.msra.mxu0 0
  %3646 = vmatprep.subr.bf16.mxu0 0
  %3647 = vmatpush1.bf16.msra.mxu0 0
  %3648 = vmatprep.subr.bf16.mxu0 0
  %3649 = vmatpush1.bf16.msra.mxu0 0
  %3650 = vmatprep.subr.bf16.mxu0 0
  %3651 = vmatpush1.bf16.msra.mxu0 0
  %3652 = vmatprep.subr.bf16.mxu0 0
  %3653 = vmatpush1.bf16.msra.mxu0 0
  %3654 = vmatprep.subr.bf16.mxu0 0
  %3655 = vmatpush1.bf16.msra.mxu0 0
  %3656 = vmatprep.subr.bf16.mxu0 0
  %3657 = vmatpush1.bf16.msra.mxu0 0
  %3658 = vmatprep.subr.bf16.mxu0 0
  %3659 = vmatpush1.bf16.msra.mxu0 0
  %3660 = vmatprep.mubr.bf16.mxu0 0
  %3661 = vmatmul.mubr.bf16.gmra.mrb[0].mxu0 %v3617
  %v3662 = vpop.f32.mrb[0].mxu0
  %v3663 = vadd.f32 0.0, %v3662
  %v3664 = vpop.f32.mrb[0].mxu0
  %v3665 = vpop.f32.mrb[0].mxu0
  %v3666 = vadd.f32 0.0, %v3665
  %v3667 = vpop.f32.mrb[0].mxu0
  %3668 = vmatprep.mubr.bf16.mxu0 0
  %3669 = vmatmul.mubr.bf16.gmra.mrb[0].mxu0 %v3620
  %v3670 = vpop.f32.mrb[0].mxu0
  %v3671 = vadd.f32 0.0, %v3670
  %v3672 = vpop.f32.mrb[0].mxu0
  %v3673 = vpop.f32.mrb[0].mxu0
  %v3674 = vadd.f32 0.0, %v3673
  %v3675 = vpop.f32.mrb[0].mxu0
  %3676 = vmatprep.mubr.bf16.mxu0 0
  %3677 = vmatmul.mubr.bf16.gmra.mrb[0].mxu0 %v3623
  %v3678 = vpop.f32.mrb[0].mxu0
  %v3679 = vadd.f32 0.0, %v3678
  %v3680 = vpop.f32.mrb[0].mxu0
  %v3681 = vpop.f32.mrb[0].mxu0
  %v3682 = vadd.f32 0.0, %v3681
  %v3683 = vpop.f32.mrb[0].mxu0
  %3684 = vmatprep.mubr.bf16.mxu0 0
  %3685 = vmatmul.mubr.bf16.gmra.mrb[0].mxu0 %v3626
  %v3686 = vpop.f32.mrb[0].mxu0
  %v3687 = vadd.f32 0.0, %v3686
  %v3688 = vpop.f32.mrb[0].mxu0
  %v3689 = vpop.f32.mrb[0].mxu0
  %v3690 = vpop.f32.mrb[0].mxu0
  %3691 = vdwg.mxu0
  %v3692 = vadd.f32 %v3386, %v3663
  %v3693 = vadd.f32 %v3387, %v3666
  %v3694 = vadd.f32 %v3388, %v3671
  %v3695 = vadd.f32 %v3389, %v3674
  %v3696 = vadd.f32 %v3390, %v3679
  %v3697 = vadd.f32 %v3391, %v3682
  %v3698 = vadd.f32 %v3392, %v3687
  %s3699 = scalar_lea.vmem %s4, 756
  %v3700 = vld [vmem:[%s3699] sm:$0xff]
  %v3701 = vld [vmem:[%s3699 + $0x8] sm:$0xf]
  %v3702 = vld [vmem:[%s3699 + $0xc] sm:$0xff]
  %v3703 = vld [vmem:[%s3699 + $0x14] sm:$0xf]
  %v3704 = vld [vmem:[%s3699 + $0x18] sm:$0xff]
  %v3705 = vld [vmem:[%s3699 + $0x20] sm:$0xf]
  %v3706 = vld [vmem:[%s3699 + $0x24] sm:$0xff]
  %v3707 = vld [vmem:[%s3699 + $0x2c] sm:$0xf]
  %v3708 = vld [vmem:[%s3699 + $0x30] sm:$0xff]
  %v3709 = vld [vmem:[%s3699 + $0x38] sm:$0xf]
  %v3710 = vld [vmem:[%s3699 + $0x3c] sm:$0xff]
  %v3711 = vld [vmem:[%s3699 + $0x44] sm:$0xf]
  %v3712 = vld [vmem:[%s3699 + $0x48] sm:$0x11]
  %v3713 = vld [vmem:[%s3699 + $0x50] sm:$0x1]
  %v3728 = vunpack.c.l.b16 %v3700
  %v3729 = vunpack.c.h.b16 %v3700
  %v3730 = vunpack.c.l.b16 %v3701
  %v3731 = vunpack.c.l.b16 %v3702
  %v3732 = vunpack.c.h.b16 %v3702
  %v3733 = vunpack.c.l.b16 %v3703
  %v3734 = vunpack.c.l.b16 %v3704
  %v3735 = vunpack.c.h.b16 %v3704
  %v3736 = vunpack.c.l.b16 %v3705
  %v3737 = vunpack.c.l.b16 %v3706
  %v3738 = vunpack.c.h.b16 %v3706
  %v3739 = vunpack.c.l.b16 %v3707
  %v3740 = vunpack.c.l.b16 %v3708
  %v3741 = vunpack.c.h.b16 %v3708
  %v3742 = vunpack.c.l.b16 %v3709
  %v3743 = vunpack.c.l.b16 %v3710
  %v3744 = vunpack.c.h.b16 %v3710
  %v3745 = vunpack.c.l.b16 %v3711
  %v3746 = vunpack.c.l.b16 %v3712
  %v3747 = vunpack.c.h.b16 %v3712
  %v3748 = vunpack.c.l.b16 %v3713
  %v3749 = vpack.c.b16 %v3731, %v3728
  %v3750 = vpack.c.b16 %v3732, %v3729
  %v3751 = vpack.c.b16 %v3733, %v3730
  %v3752 = vpack.c.b16 %v3737, %v3734
  %v3753 = vpack.c.b16 %v3738, %v3735
  %v3754 = vpack.c.b16 %v3739, %v3736
  %v3755 = vpack.c.b16 %v3743, %v3740
  %v3756 = vpack.c.b16 %v3744, %v3741
  %v3757 = vpack.c.b16 %v3745, %v3742
  %v3758 = vpack.c.b16 %v3746, %v3746
  %v3759 = vpack.c.b16 %v3747, %v3747
  %v3760 = vpack.c.b16 %v3748, %v3748
  %v3770 = vsel %vm1025, %v3751, 0
  %v3773 = vsel %vm1025, %v3754, 0
  %v3776 = vsel %vm1025, %v3757, 0
  %v3779 = vsel %vm1025, %v3760, 0
  %3781 = vmatprep.subr.bf16.mxu0 0
  %3782 = vmatpush1.bf16.msra.mxu0 %v934
  %3783 = vmatprep.subr.bf16.mxu0 0
  %3784 = vmatpush1.bf16.msra.mxu0 %v935
  %3785 = vmatprep.subr.bf16.mxu0 0
  %3786 = vmatpush1.bf16.msra.mxu0 %v936
  %3787 = vmatprep.subr.bf16.mxu0 0
  %3788 = vmatpush1.bf16.msra.mxu0 %v937
  %3789 = vmatprep.subr.bf16.mxu0 0
  %3790 = vmatpush1.bf16.msra.mxu0 %v938
  %3791 = vmatprep.subr.bf16.mxu0 0
  %3792 = vmatpush1.bf16.msra.mxu0 %v939
  %3793 = vmatprep.subr.bf16.mxu0 0
  %3794 = vmatpush1.bf16.msra.mxu0 %v940
  %3795 = vmatprep.subr.bf16.mxu0 0
  %3796 = vmatpush1.bf16.msra.mxu0 %v941
  %3797 = vmatprep.subr.bf16.mxu0 0
  %3798 = vmatpush1.bf16.msra.mxu0 %v942
  %3799 = vmatprep.subr.bf16.mxu0 0
  %3800 = vmatpush1.bf16.msra.mxu0 %v943
  %3801 = vmatprep.subr.bf16.mxu0 0
  %3802 = vmatpush1.bf16.msra.mxu0 %v944
  %3803 = vmatprep.subr.bf16.mxu0 0
  %3804 = vmatpush1.bf16.msra.mxu0 %v945
  %3805 = vmatprep.subr.bf16.mxu0 0
  %3806 = vmatpush1.bf16.msra.mxu0 %v946
  %3807 = vmatprep.subr.bf16.mxu0 0
  %3808 = vmatpush1.bf16.msra.mxu0 %v947
  %3809 = vmatprep.subr.bf16.mxu0 0
  %3810 = vmatpush1.bf16.msra.mxu0 %v948
  %3811 = vmatprep.subr.bf16.mxu0 0
  %3812 = vmatpush1.bf16.msra.mxu0 %v949
  %3813 = vmatprep.mubr.bf16.mxu0 %v3750
  %3814 = vmatmul.mubr.bf16.gmra.mrb[0].mxu0 %v3749
  %v3815 = vpop.f32.mrb[0].mxu0
  %v3816 = vadd.f32 0.0, %v3815
  %v3817 = vpop.f32.mrb[0].mxu0
  %v3818 = vpop.f32.mrb[0].mxu0
  %v3819 = vadd.f32 0.0, %v3818
  %v3820 = vpop.f32.mrb[0].mxu0
  %3821 = vmatprep.mubr.bf16.mxu0 %v3753
  %3822 = vmatmul.mubr.bf16.gmra.mrb[0].mxu0 %v3752
  %v3823 = vpop.f32.mrb[0].mxu0
  %v3824 = vadd.f32 0.0, %v3823
  %v3825 = vpop.f32.mrb[0].mxu0
  %v3826 = vpop.f32.mrb[0].mxu0
  %v3827 = vadd.f32 0.0, %v3826
  %v3828 = vpop.f32.mrb[0].mxu0
  %3829 = vmatprep.mubr.bf16.mxu0 %v3756
  %3830 = vmatmul.mubr.bf16.gmra.mrb[0].mxu0 %v3755
  %v3831 = vpop.f32.mrb[0].mxu0
  %v3832 = vadd.f32 0.0, %v3831
  %v3833 = vpop.f32.mrb[0].mxu0
  %v3834 = vpop.f32.mrb[0].mxu0
  %v3835 = vadd.f32 0.0, %v3834
  %v3836 = vpop.f32.mrb[0].mxu0
  %3837 = vmatprep.mubr.bf16.mxu0 %v3759
  %3838 = vmatmul.mubr.bf16.gmra.mrb[0].mxu0 %v3758
  %v3839 = vpop.f32.mrb[0].mxu0
  %v3840 = vadd.f32 0.0, %v3839
  %v3841 = vpop.f32.mrb[0].mxu0
  %v3842 = vpop.f32.mrb[0].mxu0
  %v3843 = vpop.f32.mrb[0].mxu0
  %3844 = vdwg.mxu0
  %3845 = vmatprep.subr.bf16.mxu0 0
  %3846 = vmatpush1.bf16.msra.mxu0 %v950
  %3847 = vmatprep.subr.bf16.mxu0 0
  %3848 = vmatpush1.bf16.msra.mxu0 %v951
  %3849 = vmatprep.subr.bf16.mxu0 0
  %3850 = vmatpush1.bf16.msra.mxu0 %v952
  %3851 = vmatprep.subr.bf16.mxu0 0
  %3852 = vmatpush1.bf16.msra.mxu0 %v953
  %3853 = vmatprep.subr.bf16.mxu0 0
  %3854 = vmatpush1.bf16.msra.mxu0 %v954
  %3855 = vmatprep.subr.bf16.mxu0 0
  %3856 = vmatpush1.bf16.msra.mxu0 %v1040
  %3857 = vmatprep.subr.bf16.mxu0 0
  %3858 = vmatpush1.bf16.msra.mxu0 0
  %3859 = vmatprep.subr.bf16.mxu0 0
  %3860 = vmatpush1.bf16.msra.mxu0 0
  %3861 = vmatprep.subr.bf16.mxu0 0
  %3862 = vmatpush1.bf16.msra.mxu0 0
  %3863 = vmatprep.subr.bf16.mxu0 0
  %3864 = vmatpush1.bf16.msra.mxu0 0
  %3865 = vmatprep.subr.bf16.mxu0 0
  %3866 = vmatpush1.bf16.msra.mxu0 0
  %3867 = vmatprep.subr.bf16.mxu0 0
  %3868 = vmatpush1.bf16.msra.mxu0 0
  %3869 = vmatprep.subr.bf16.mxu0 0
  %3870 = vmatpush1.bf16.msra.mxu0 0
  %3871 = vmatprep.subr.bf16.mxu0 0
  %3872 = vmatpush1.bf16.msra.mxu0 0
  %3873 = vmatprep.subr.bf16.mxu0 0
  %3874 = vmatpush1.bf16.msra.mxu0 0
  %3875 = vmatprep.subr.bf16.mxu0 0
  %3876 = vmatpush1.bf16.msra.mxu0 0
  %3877 = vmatprep.mubr.bf16.mxu0 0
  %3878 = vmatmul.mubr.bf16.gmra.mrb[0].mxu0 %v3770
  %v3879 = vpop.f32.mrb[0].mxu0
  %v3880 = vadd.f32 %v3816, %v3879
  %v3881 = vpop.f32.mrb[0].mxu0
  %v3882 = vpop.f32.mrb[0].mxu0
  %v3883 = vadd.f32 %v3819, %v3882
  %v3884 = vpop.f32.mrb[0].mxu0
  %3885 = vmatprep.mubr.bf16.mxu0 0
  %3886 = vmatmul.mubr.bf16.gmra.mrb[0].mxu0 %v3773
  %v3887 = vpop.f32.mrb[0].mxu0
  %v3888 = vadd.f32 %v3824, %v3887
  %v3889 = vpop.f32.mrb[0].mxu0
  %v3890 = vpop.f32.mrb[0].mxu0
  %v3891 = vadd.f32 %v3827, %v3890
  %v3892 = vpop.f32.mrb[0].mxu0
  %3893 = vmatprep.mubr.bf16.mxu0 0
  %3894 = vmatmul.mubr.bf16.gmra.mrb[0].mxu0 %v3776
  %v3895 = vpop.f32.mrb[0].mxu0
  %v3896 = vadd.f32 %v3832, %v3895
  %v3897 = vpop.f32.mrb[0].mxu0
  %v3898 = vpop.f32.mrb[0].mxu0
  %v3899 = vadd.f32 %v3835, %v3898
  %v3900 = vpop.f32.mrb[0].mxu0
  %3901 = vmatprep.mubr.bf16.mxu0 0
  %3902 = vmatmul.mubr.bf16.gmra.mrb[0].mxu0 %v3779
  %v3903 = vpop.f32.mrb[0].mxu0
  %v3904 = vadd.f32 %v3840, %v3903
  %v3905 = vpop.f32.mrb[0].mxu0
  %v3906 = vpop.f32.mrb[0].mxu0
  %v3907 = vpop.f32.mrb[0].mxu0
  %3908 = vdwg.mxu0
  %v3909 = vpack.c.bf16 %v3883, %v3880
  %v3910 = vpack.c.bf16 %v3891, %v3888
  %v3911 = vpack.c.bf16 %v3899, %v3896
  %v3912 = vpack.c.bf16 %v3904, %v3904
  %s3913 = scalar_lea.vmem %s5, 72
  %v3914 = vld [vmem:[%s3913] sm:$0xf]
  %v3915 = vld [vmem:[%s3913 + $0x4] sm:$0xf]
  %v3918 = vunpack.c.l.b16 %v3914
  %v3919 = vunpack.c.l.b16 %v3915
  %v3920 = vpack.c.b16 %v3919, %v3918
  %v3923 = vsel %vm195, %v3909, 0
  %v3926 = vsel %vm195, %v3910, 0
  %v3929 = vsel %vm195, %v3911, 0
  %v3932 = vsel %vm195, %v3912, 0
  %3934 = vmatprep.subr.bf16.mxu0 0
  %3935 = vmatpush1.bf16.msra.mxu0 %v3920
  %3936 = vmatprep.subr.bf16.mxu0 0
  %3937 = vmatpush1.bf16.msra.mxu0 0
  %3938 = vmatprep.subr.bf16.mxu0 0
  %3939 = vmatpush1.bf16.msra.mxu0 0
  %3940 = vmatprep.subr.bf16.mxu0 0
  %3941 = vmatpush1.bf16.msra.mxu0 0
  %3942 = vmatprep.subr.bf16.mxu0 0
  %3943 = vmatpush1.bf16.msra.mxu0 0
  %3944 = vmatprep.subr.bf16.mxu0 0
  %3945 = vmatpush1.bf16.msra.mxu0 0
  %3946 = vmatprep.subr.bf16.mxu0 0
  %3947 = vmatpush1.bf16.msra.mxu0 0
  %3948 = vmatprep.subr.bf16.mxu0 0
  %3949 = vmatpush1.bf16.msra.mxu0 0
  %3950 = vmatprep.subr.bf16.mxu0 0
  %3951 = vmatpush1.bf16.msra.mxu0 0
  %3952 = vmatprep.subr.bf16.mxu0 0
  %3953 = vmatpush1.bf16.msra.mxu0 0
  %3954 = vmatprep.subr.bf16.mxu0 0
  %3955 = vmatpush1.bf16.msra.mxu0 0
  %3956 = vmatprep.subr.bf16.mxu0 0
  %3957 = vmatpush1.bf16.msra.mxu0 0
  %3958 = vmatprep.subr.bf16.mxu0 0
  %3959 = vmatpush1.bf16.msra.mxu0 0
  %3960 = vmatprep.subr.bf16.mxu0 0
  %3961 = vmatpush1.bf16.msra.mxu0 0
  %3962 = vmatprep.subr.bf16.mxu0 0
  %3963 = vmatpush1.bf16.msra.mxu0 0
  %3964 = vmatprep.subr.bf16.mxu0 0
  %3965 = vmatpush1.bf16.msra.mxu0 0
  %3966 = vmatprep.mubr.bf16.mxu0 0
  %3967 = vmatmul.mubr.bf16.gmra.mrb[0].mxu0 %v3923
  %v3968 = vpop.f32.mrb[0].mxu0
  %v3969 = vadd.f32 0.0, %v3968
  %v3970 = vpop.f32.mrb[0].mxu0
  %v3971 = vpop.f32.mrb[0].mxu0
  %v3972 = vadd.f32 0.0, %v3971
  %v3973 = vpop.f32.mrb[0].mxu0
  %3974 = vmatprep.mubr.bf16.mxu0 0
  %3975 = vmatmul.mubr.bf16.gmra.mrb[0].mxu0 %v3926
  %v3976 = vpop.f32.mrb[0].mxu0
  %v3977 = vadd.f32 0.0, %v3976
  %v3978 = vpop.f32.mrb[0].mxu0
  %v3979 = vpop.f32.mrb[0].mxu0
  %v3980 = vadd.f32 0.0, %v3979
  %v3981 = vpop.f32.mrb[0].mxu0
  %3982 = vmatprep.mubr.bf16.mxu0 0
  %3983 = vmatmul.mubr.bf16.gmra.mrb[0].mxu0 %v3929
  %v3984 = vpop.f32.mrb[0].mxu0
  %v3985 = vadd.f32 0.0, %v3984
  %v3986 = vpop.f32.mrb[0].mxu0
  %v3987 = vpop.f32.mrb[0].mxu0
  %v3988 = vadd.f32 0.0, %v3987
  %v3989 = vpop.f32.mrb[0].mxu0
  %3990 = vmatprep.mubr.bf16.mxu0 0
  %3991 = vmatmul.mubr.bf16.gmra.mrb[0].mxu0 %v3932
  %v3992 = vpop.f32.mrb[0].mxu0
  %v3993 = vadd.f32 0.0, %v3992
  %v3994 = vpop.f32.mrb[0].mxu0
  %v3995 = vpop.f32.mrb[0].mxu0
  %v3996 = vpop.f32.mrb[0].mxu0
  %3997 = vdwg.mxu0
  %v3998 = vadd.f32 %v3692, %v3969
  %v3999 = vadd.f32 %v3693, %v3972
  %v4000 = vadd.f32 %v3694, %v3977
  %v4001 = vadd.f32 %v3695, %v3980
  %v4002 = vadd.f32 %v3696, %v3985
  %v4003 = vadd.f32 %v3697, %v3988
  %v4004 = vadd.f32 %v3698, %v3993
  %s4005 = scalar_lea.vmem %s4, 840
  %v4006 = vld [vmem:[%s4005] sm:$0xff]
  %v4007 = vld [vmem:[%s4005 + $0x8] sm:$0xf]
  %v4008 = vld [vmem:[%s4005 + $0xc] sm:$0xff]
  %v4009 = vld [vmem:[%s4005 + $0x14] sm:$0xf]
  %v4010 = vld [vmem:[%s4005 + $0x18] sm:$0xff]
  %v4011 = vld [vmem:[%s4005 + $0x20] sm:$0xf]
  %v4012 = vld [vmem:[%s4005 + $0x24] sm:$0xff]
  %v4013 = vld [vmem:[%s4005 + $0x2c] sm:$0xf]
  %v4014 = vld [vmem:[%s4005 + $0x30] sm:$0xff]
  %v4015 = vld [vmem:[%s4005 + $0x38] sm:$0xf]
  %v4016 = vld [vmem:[%s4005 + $0x3c] sm:$0xff]
  %v4017 = vld [vmem:[%s4005 + $0x44] sm:$0xf]
  %v4018 = vld [vmem:[%s4005 + $0x48] sm:$0x11]
  %v4019 = vld [vmem:[%s4005 + $0x50] sm:$0x1]
  %v4034 = vunpack.c.l.b16 %v4006
  %v4035 = vunpack.c.h.b16 %v4006
  %v4036 = vunpack.c.l.b16 %v4007
  %v4037 = vunpack.c.l.b16 %v4008
  %v4038 = vunpack.c.h.b16 %v4008
  %v4039 = vunpack.c.l.b16 %v4009
  %v4040 = vunpack.c.l.b16 %v4010
  %v4041 = vunpack.c.h.b16 %v4010
  %v4042 = vunpack.c.l.b16 %v4011
  %v4043 = vunpack.c.l.b16 %v4012
  %v4044 = vunpack.c.h.b16 %v4012
  %v4045 = vunpack.c.l.b16 %v4013
  %v4046 = vunpack.c.l.b16 %v4014
  %v4047 = vunpack.c.h.b16 %v4014
  %v4048 = vunpack.c.l.b16 %v4015
  %v4049 = vunpack.c.l.b16 %v4016
  %v4050 = vunpack.c.h.b16 %v4016
  %v4051 = vunpack.c.l.b16 %v4017
  %v4052 = vunpack.c.l.b16 %v4018
  %v4053 = vunpack.c.h.b16 %v4018
  %v4054 = vunpack.c.l.b16 %v4019
  %v4055 = vpack.c.b16 %v4037, %v4034
  %v4056 = vpack.c.b16 %v4038, %v4035
  %v4057 = vpack.c.b16 %v4039, %v4036
  %v4058 = vpack.c.b16 %v4043, %v4040
  %v4059 = vpack.c.b16 %v4044, %v4041
  %v4060 = vpack.c.b16 %v4045, %v4042
  %v4061 = vpack.c.b16 %v4049, %v4046
  %v4062 = vpack.c.b16 %v4050, %v4047
  %v4063 = vpack.c.b16 %v4051, %v4048
  %v4064 = vpack.c.b16 %v4052, %v4052
  %v4065 = vpack.c.b16 %v4053, %v4053
  %v4066 = vpack.c.b16 %v4054, %v4054
  %v4076 = vsel %vm1025, %v4057, 0
  %v4079 = vsel %vm1025, %v4060, 0
  %v4082 = vsel %vm1025, %v4063, 0
  %v4085 = vsel %vm1025, %v4066, 0
  %4087 = vmatprep.subr.bf16.mxu0 0
  %4088 = vmatpush1.bf16.msra.mxu0 %v934
  %4089 = vmatprep.subr.bf16.mxu0 0
  %4090 = vmatpush1.bf16.msra.mxu0 %v935
  %4091 = vmatprep.subr.bf16.mxu0 0
  %4092 = vmatpush1.bf16.msra.mxu0 %v936
  %4093 = vmatprep.subr.bf16.mxu0 0
  %4094 = vmatpush1.bf16.msra.mxu0 %v937
  %4095 = vmatprep.subr.bf16.mxu0 0
  %4096 = vmatpush1.bf16.msra.mxu0 %v938
  %4097 = vmatprep.subr.bf16.mxu0 0
  %4098 = vmatpush1.bf16.msra.mxu0 %v939
  %4099 = vmatprep.subr.bf16.mxu0 0
  %4100 = vmatpush1.bf16.msra.mxu0 %v940
  %4101 = vmatprep.subr.bf16.mxu0 0
  %4102 = vmatpush1.bf16.msra.mxu0 %v941
  %4103 = vmatprep.subr.bf16.mxu0 0
  %4104 = vmatpush1.bf16.msra.mxu0 %v942
  %4105 = vmatprep.subr.bf16.mxu0 0
  %4106 = vmatpush1.bf16.msra.mxu0 %v943
  %4107 = vmatprep.subr.bf16.mxu0 0
  %4108 = vmatpush1.bf16.msra.mxu0 %v944
  %4109 = vmatprep.subr.bf16.mxu0 0
  %4110 = vmatpush1.bf16.msra.mxu0 %v945
  %4111 = vmatprep.subr.bf16.mxu0 0
  %4112 = vmatpush1.bf16.msra.mxu0 %v946
  %4113 = vmatprep.subr.bf16.mxu0 0
  %4114 = vmatpush1.bf16.msra.mxu0 %v947
  %4115 = vmatprep.subr.bf16.mxu0 0
  %4116 = vmatpush1.bf16.msra.mxu0 %v948
  %4117 = vmatprep.subr.bf16.mxu0 0
  %4118 = vmatpush1.bf16.msra.mxu0 %v949
  %4119 = vmatprep.mubr.bf16.mxu0 %v4056
  %4120 = vmatmul.mubr.bf16.gmra.mrb[0].mxu0 %v4055
  %v4121 = vpop.f32.mrb[0].mxu0
  %v4122 = vadd.f32 0.0, %v4121
  %v4123 = vpop.f32.mrb[0].mxu0
  %v4124 = vpop.f32.mrb[0].mxu0
  %v4125 = vadd.f32 0.0, %v4124
  %v4126 = vpop.f32.mrb[0].mxu0
  %4127 = vmatprep.mubr.bf16.mxu0 %v4059
  %4128 = vmatmul.mubr.bf16.gmra.mrb[0].mxu0 %v4058
  %v4129 = vpop.f32.mrb[0].mxu0
  %v4130 = vadd.f32 0.0, %v4129
  %v4131 = vpop.f32.mrb[0].mxu0
  %v4132 = vpop.f32.mrb[0].mxu0
  %v4133 = vadd.f32 0.0, %v4132
  %v4134 = vpop.f32.mrb[0].mxu0
  %4135 = vmatprep.mubr.bf16.mxu0 %v4062
  %4136 = vmatmul.mubr.bf16.gmra.mrb[0].mxu0 %v4061
  %v4137 = vpop.f32.mrb[0].mxu0
  %v4138 = vadd.f32 0.0, %v4137
  %v4139 = vpop.f32.mrb[0].mxu0
  %v4140 = vpop.f32.mrb[0].mxu0
  %v4141 = vadd.f32 0.0, %v4140
  %v4142 = vpop.f32.mrb[0].mxu0
  %4143 = vmatprep.mubr.bf16.mxu0 %v4065
  %4144 = vmatmul.mubr.bf16.gmra.mrb[0].mxu0 %v4064
  %v4145 = vpop.f32.mrb[0].mxu0
  %v4146 = vadd.f32 0.0, %v4145
  %v4147 = vpop.f32.mrb[0].mxu0
  %v4148 = vpop.f32.mrb[0].mxu0
  %v4149 = vpop.f32.mrb[0].mxu0
  %4150 = vdwg.mxu0
  %4151 = vmatprep.subr.bf16.mxu0 0
  %4152 = vmatpush1.bf16.msra.mxu0 %v950
  %4153 = vmatprep.subr.bf16.mxu0 0
  %4154 = vmatpush1.bf16.msra.mxu0 %v951
  %4155 = vmatprep.subr.bf16.mxu0 0
  %4156 = vmatpush1.bf16.msra.mxu0 %v952
  %4157 = vmatprep.subr.bf16.mxu0 0
  %4158 = vmatpush1.bf16.msra.mxu0 %v953
  %4159 = vmatprep.subr.bf16.mxu0 0
  %4160 = vmatpush1.bf16.msra.mxu0 %v954
  %4161 = vmatprep.subr.bf16.mxu0 0
  %4162 = vmatpush1.bf16.msra.mxu0 %v1040
  %4163 = vmatprep.subr.bf16.mxu0 0
  %4164 = vmatpush1.bf16.msra.mxu0 0
  %4165 = vmatprep.subr.bf16.mxu0 0
  %4166 = vmatpush1.bf16.msra.mxu0 0
  %4167 = vmatprep.subr.bf16.mxu0 0
  %4168 = vmatpush1.bf16.msra.mxu0 0
  %4169 = vmatprep.subr.bf16.mxu0 0
  %4170 = vmatpush1.bf16.msra.mxu0 0
  %4171 = vmatprep.subr.bf16.mxu0 0
  %4172 = vmatpush1.bf16.msra.mxu0 0
  %4173 = vmatprep.subr.bf16.mxu0 0
  %4174 = vmatpush1.bf16.msra.mxu0 0
  %4175 = vmatprep.subr.bf16.mxu0 0
  %4176 = vmatpush1.bf16.msra.mxu0 0
  %4177 = vmatprep.subr.bf16.mxu0 0
  %4178 = vmatpush1.bf16.msra.mxu0 0
  %4179 = vmatprep.subr.bf16.mxu0 0
  %4180 = vmatpush1.bf16.msra.mxu0 0
  %4181 = vmatprep.subr.bf16.mxu0 0
  %4182 = vmatpush1.bf16.msra.mxu0 0
  %4183 = vmatprep.mubr.bf16.mxu0 0
  %4184 = vmatmul.mubr.bf16.gmra.mrb[0].mxu0 %v4076
  %v4185 = vpop.f32.mrb[0].mxu0
  %v4186 = vadd.f32 %v4122, %v4185
  %v4187 = vpop.f32.mrb[0].mxu0
  %v4188 = vpop.f32.mrb[0].mxu0
  %v4189 = vadd.f32 %v4125, %v4188
  %v4190 = vpop.f32.mrb[0].mxu0
  %4191 = vmatprep.mubr.bf16.mxu0 0
  %4192 = vmatmul.mubr.bf16.gmra.mrb[0].mxu0 %v4079
  %v4193 = vpop.f32.mrb[0].mxu0
  %v4194 = vadd.f32 %v4130, %v4193
  %v4195 = vpop.f32.mrb[0].mxu0
  %v4196 = vpop.f32.mrb[0].mxu0
  %v4197 = vadd.f32 %v4133, %v4196
  %v4198 = vpop.f32.mrb[0].mxu0
  %4199 = vmatprep.mubr.bf16.mxu0 0
  %4200 = vmatmul.mubr.bf16.gmra.mrb[0].mxu0 %v4082
  %v4201 = vpop.f32.mrb[0].mxu0
  %v4202 = vadd.f32 %v4138, %v4201
  %v4203 = vpop.f32.mrb[0].mxu0
  %v4204 = vpop.f32.mrb[0].mxu0
  %v4205 = vadd.f32 %v4141, %v4204
  %v4206 = vpop.f32.mrb[0].mxu0
  %4207 = vmatprep.mubr.bf16.mxu0 0
  %4208 = vmatmul.mubr.bf16.gmra.mrb[0].mxu0 %v4085
  %v4209 = vpop.f32.mrb[0].mxu0
  %v4210 = vadd.f32 %v4146, %v4209
  %v4211 = vpop.f32.mrb[0].mxu0
  %v4212 = vpop.f32.mrb[0].mxu0
  %v4213 = vpop.f32.mrb[0].mxu0
  %4214 = vdwg.mxu0
  %v4215 = vpack.c.bf16 %v4189, %v4186
  %v4216 = vpack.c.bf16 %v4197, %v4194
  %v4217 = vpack.c.bf16 %v4205, %v4202
  %v4218 = vpack.c.bf16 %v4210, %v4210
  %s4219 = scalar_lea.vmem %s5, 80
  %v4220 = vld [vmem:[%s4219] sm:$0xf]
  %v4221 = vld [vmem:[%s4219 + $0x4] sm:$0xf]
  %v4224 = vunpack.c.l.b16 %v4220
  %v4225 = vunpack.c.l.b16 %v4221
  %v4226 = vpack.c.b16 %v4225, %v4224
  %v4229 = vsel %vm195, %v4215, 0
  %v4232 = vsel %vm195, %v4216, 0
  %v4235 = vsel %vm195, %v4217, 0
  %v4238 = vsel %vm195, %v4218, 0
  %4240 = vmatprep.subr.bf16.mxu0 0
  %4241 = vmatpush1.bf16.msra.mxu0 %v4226
  %4242 = vmatprep.subr.bf16.mxu0 0
  %4243 = vmatpush1.bf16.msra.mxu0 0
  %4244 = vmatprep.subr.bf16.mxu0 0
  %4245 = vmatpush1.bf16.msra.mxu0 0
  %4246 = vmatprep.subr.bf16.mxu0 0
  %4247 = vmatpush1.bf16.msra.mxu0 0
  %4248 = vmatprep.subr.bf16.mxu0 0
  %4249 = vmatpush1.bf16.msra.mxu0 0
  %4250 = vmatprep.subr.bf16.mxu0 0
  %4251 = vmatpush1.bf16.msra.mxu0 0
  %4252 = vmatprep.subr.bf16.mxu0 0
  %4253 = vmatpush1.bf16.msra.mxu0 0
  %4254 = vmatprep.subr.bf16.mxu0 0
  %4255 = vmatpush1.bf16.msra.mxu0 0
  %4256 = vmatprep.subr.bf16.mxu0 0
  %4257 = vmatpush1.bf16.msra.mxu0 0
  %4258 = vmatprep.subr.bf16.mxu0 0
  %4259 = vmatpush1.bf16.msra.mxu0 0
  %4260 = vmatprep.subr.bf16.mxu0 0
  %4261 = vmatpush1.bf16.msra.mxu0 0
  %4262 = vmatprep.subr.bf16.mxu0 0
  %4263 = vmatpush1.bf16.msra.mxu0 0
  %4264 = vmatprep.subr.bf16.mxu0 0
  %4265 = vmatpush1.bf16.msra.mxu0 0
  %4266 = vmatprep.subr.bf16.mxu0 0
  %4267 = vmatpush1.bf16.msra.mxu0 0
  %4268 = vmatprep.subr.bf16.mxu0 0
  %4269 = vmatpush1.bf16.msra.mxu0 0
  %4270 = vmatprep.subr.bf16.mxu0 0
  %4271 = vmatpush1.bf16.msra.mxu0 0
  %4272 = vmatprep.mubr.bf16.mxu0 0
  %4273 = vmatmul.mubr.bf16.gmra.mrb[0].mxu0 %v4229
  %v4274 = vpop.f32.mrb[0].mxu0
  %v4275 = vadd.f32 0.0, %v4274
  %v4276 = vpop.f32.mrb[0].mxu0
  %v4277 = vpop.f32.mrb[0].mxu0
  %v4278 = vadd.f32 0.0, %v4277
  %v4279 = vpop.f32.mrb[0].mxu0
  %4280 = vmatprep.mubr.bf16.mxu0 0
  %4281 = vmatmul.mubr.bf16.gmra.mrb[0].mxu0 %v4232
  %v4282 = vpop.f32.mrb[0].mxu0
  %v4283 = vadd.f32 0.0, %v4282
  %v4284 = vpop.f32.mrb[0].mxu0
  %v4285 = vpop.f32.mrb[0].mxu0
  %v4286 = vadd.f32 0.0, %v4285
  %v4287 = vpop.f32.mrb[0].mxu0
  %4288 = vmatprep.mubr.bf16.mxu0 0
  %4289 = vmatmul.mubr.bf16.gmra.mrb[0].mxu0 %v4235
  %v4290 = vpop.f32.mrb[0].mxu0
  %v4291 = vadd.f32 0.0, %v4290
  %v4292 = vpop.f32.mrb[0].mxu0
  %v4293 = vpop.f32.mrb[0].mxu0
  %v4294 = vadd.f32 0.0, %v4293
  %v4295 = vpop.f32.mrb[0].mxu0
  %4296 = vmatprep.mubr.bf16.mxu0 0
  %4297 = vmatmul.mubr.bf16.gmra.mrb[0].mxu0 %v4238
  %v4298 = vpop.f32.mrb[0].mxu0
  %v4299 = vadd.f32 0.0, %v4298
  %v4300 = vpop.f32.mrb[0].mxu0
  %v4301 = vpop.f32.mrb[0].mxu0
  %v4302 = vpop.f32.mrb[0].mxu0
  %4303 = vdwg.mxu0
  %v4304 = vadd.f32 %v3998, %v4275
  %v4305 = vadd.f32 %v3999, %v4278
  %v4306 = vadd.f32 %v4000, %v4283
  %v4307 = vadd.f32 %v4001, %v4286
  %v4308 = vadd.f32 %v4002, %v4291
  %v4309 = vadd.f32 %v4003, %v4294
  %v4310 = vadd.f32 %v4004, %v4299
  %s4311 = scalar_lea.vmem %s4, 924
  %v4312 = vld [vmem:[%s4311] sm:$0xff]
  %v4313 = vld [vmem:[%s4311 + $0x8] sm:$0xf]
  %v4314 = vld [vmem:[%s4311 + $0xc] sm:$0xff]
  %v4315 = vld [vmem:[%s4311 + $0x14] sm:$0xf]
  %v4316 = vld [vmem:[%s4311 + $0x18] sm:$0xff]
  %v4317 = vld [vmem:[%s4311 + $0x20] sm:$0xf]
  %v4318 = vld [vmem:[%s4311 + $0x24] sm:$0xff]
  %v4319 = vld [vmem:[%s4311 + $0x2c] sm:$0xf]
  %v4320 = vld [vmem:[%s4311 + $0x30] sm:$0xff]
  %v4321 = vld [vmem:[%s4311 + $0x38] sm:$0xf]
  %v4322 = vld [vmem:[%s4311 + $0x3c] sm:$0xff]
  %v4323 = vld [vmem:[%s4311 + $0x44] sm:$0xf]
  %v4324 = vld [vmem:[%s4311 + $0x48] sm:$0x11]
  %v4325 = vld [vmem:[%s4311 + $0x50] sm:$0x1]
  %v4340 = vunpack.c.l.b16 %v4312
  %v4341 = vunpack.c.h.b16 %v4312
  %v4342 = vunpack.c.l.b16 %v4313
  %v4343 = vunpack.c.l.b16 %v4314
  %v4344 = vunpack.c.h.b16 %v4314
  %v4345 = vunpack.c.l.b16 %v4315
  %v4346 = vunpack.c.l.b16 %v4316
  %v4347 = vunpack.c.h.b16 %v4316
  %v4348 = vunpack.c.l.b16 %v4317
  %v4349 = vunpack.c.l.b16 %v4318
  %v4350 = vunpack.c.h.b16 %v4318
  %v4351 = vunpack.c.l.b16 %v4319
  %v4352 = vunpack.c.l.b16 %v4320
  %v4353 = vunpack.c.h.b16 %v4320
  %v4354 = vunpack.c.l.b16 %v4321
  %v4355 = vunpack.c.l.b16 %v4322
  %v4356 = vunpack.c.h.b16 %v4322
  %v4357 = vunpack.c.l.b16 %v4323
  %v4358 = vunpack.c.l.b16 %v4324
  %v4359 = vunpack.c.h.b16 %v4324
  %v4360 = vunpack.c.l.b16 %v4325
  %v4361 = vpack.c.b16 %v4343, %v4340
  %v4362 = vpack.c.b16 %v4344, %v4341
  %v4363 = vpack.c.b16 %v4345, %v4342
  %v4364 = vpack.c.b16 %v4349, %v4346
  %v4365 = vpack.c.b16 %v4350, %v4347
  %v4366 = vpack.c.b16 %v4351, %v4348
  %v4367 = vpack.c.b16 %v4355, %v4352
  %v4368 = vpack.c.b16 %v4356, %v4353
  %v4369 = vpack.c.b16 %v4357, %v4354
  %v4370 = vpack.c.b16 %v4358, %v4358
  %v4371 = vpack.c.b16 %v4359, %v4359
  %v4372 = vpack.c.b16 %v4360, %v4360
  %v4382 = vsel %vm1025, %v4363, 0
  %v4385 = vsel %vm1025, %v4366, 0
  %v4388 = vsel %vm1025, %v4369, 0
  %v4391 = vsel %vm1025, %v4372, 0
  %4393 = vmatprep.subr.bf16.mxu0 0
  %4394 = vmatpush1.bf16.msra.mxu0 %v934
  %4395 = vmatprep.subr.bf16.mxu0 0
  %4396 = vmatpush1.bf16.msra.mxu0 %v935
  %4397 = vmatprep.subr.bf16.mxu0 0
  %4398 = vmatpush1.bf16.msra.mxu0 %v936
  %4399 = vmatprep.subr.bf16.mxu0 0
  %4400 = vmatpush1.bf16.msra.mxu0 %v937
  %4401 = vmatprep.subr.bf16.mxu0 0
  %4402 = vmatpush1.bf16.msra.mxu0 %v938
  %4403 = vmatprep.subr.bf16.mxu0 0
  %4404 = vmatpush1.bf16.msra.mxu0 %v939
  %4405 = vmatprep.subr.bf16.mxu0 0
  %4406 = vmatpush1.bf16.msra.mxu0 %v940
  %4407 = vmatprep.subr.bf16.mxu0 0
  %4408 = vmatpush1.bf16.msra.mxu0 %v941
  %4409 = vmatprep.subr.bf16.mxu0 0
  %4410 = vmatpush1.bf16.msra.mxu0 %v942
  %4411 = vmatprep.subr.bf16.mxu0 0
  %4412 = vmatpush1.bf16.msra.mxu0 %v943
  %4413 = vmatprep.subr.bf16.mxu0 0
  %4414 = vmatpush1.bf16.msra.mxu0 %v944
  %4415 = vmatprep.subr.bf16.mxu0 0
  %4416 = vmatpush1.bf16.msra.mxu0 %v945
  %4417 = vmatprep.subr.bf16.mxu0 0
  %4418 = vmatpush1.bf16.msra.mxu0 %v946
  %4419 = vmatprep.subr.bf16.mxu0 0
  %4420 = vmatpush1.bf16.msra.mxu0 %v947
  %4421 = vmatprep.subr.bf16.mxu0 0
  %4422 = vmatpush1.bf16.msra.mxu0 %v948
  %4423 = vmatprep.subr.bf16.mxu0 0
  %4424 = vmatpush1.bf16.msra.mxu0 %v949
  %4425 = vmatprep.mubr.bf16.mxu0 %v4362
  %4426 = vmatmul.mubr.bf16.gmra.mrb[0].mxu0 %v4361
  %v4427 = vpop.f32.mrb[0].mxu0
  %v4428 = vadd.f32 0.0, %v4427
  %v4429 = vpop.f32.mrb[0].mxu0
  %v4430 = vpop.f32.mrb[0].mxu0
  %v4431 = vadd.f32 0.0, %v4430
  %v4432 = vpop.f32.mrb[0].mxu0
  %4433 = vmatprep.mubr.bf16.mxu0 %v4365
  %4434 = vmatmul.mubr.bf16.gmra.mrb[0].mxu0 %v4364
  %v4435 = vpop.f32.mrb[0].mxu0
  %v4436 = vadd.f32 0.0, %v4435
  %v4437 = vpop.f32.mrb[0].mxu0
  %v4438 = vpop.f32.mrb[0].mxu0
  %v4439 = vadd.f32 0.0, %v4438
  %v4440 = vpop.f32.mrb[0].mxu0
  %4441 = vmatprep.mubr.bf16.mxu0 %v4368
  %4442 = vmatmul.mubr.bf16.gmra.mrb[0].mxu0 %v4367
  %v4443 = vpop.f32.mrb[0].mxu0
  %v4444 = vadd.f32 0.0, %v4443
  %v4445 = vpop.f32.mrb[0].mxu0
  %v4446 = vpop.f32.mrb[0].mxu0
  %v4447 = vadd.f32 0.0, %v4446
  %v4448 = vpop.f32.mrb[0].mxu0
  %4449 = vmatprep.mubr.bf16.mxu0 %v4371
  %4450 = vmatmul.mubr.bf16.gmra.mrb[0].mxu0 %v4370
  %v4451 = vpop.f32.mrb[0].mxu0
  %v4452 = vadd.f32 0.0, %v4451
  %v4453 = vpop.f32.mrb[0].mxu0
  %v4454 = vpop.f32.mrb[0].mxu0
  %v4455 = vpop.f32.mrb[0].mxu0
  %4456 = vdwg.mxu0
  %4457 = vmatprep.subr.bf16.mxu0 0
  %4458 = vmatpush1.bf16.msra.mxu0 %v950
  %4459 = vmatprep.subr.bf16.mxu0 0
  %4460 = vmatpush1.bf16.msra.mxu0 %v951
  %4461 = vmatprep.subr.bf16.mxu0 0
  %4462 = vmatpush1.bf16.msra.mxu0 %v952
  %4463 = vmatprep.subr.bf16.mxu0 0
  %4464 = vmatpush1.bf16.msra.mxu0 %v953
  %4465 = vmatprep.subr.bf16.mxu0 0
  %4466 = vmatpush1.bf16.msra.mxu0 %v954
  %4467 = vmatprep.subr.bf16.mxu0 0
  %4468 = vmatpush1.bf16.msra.mxu0 %v1040
  %4469 = vmatprep.subr.bf16.mxu0 0
  %4470 = vmatpush1.bf16.msra.mxu0 0
  %4471 = vmatprep.subr.bf16.mxu0 0
  %4472 = vmatpush1.bf16.msra.mxu0 0
  %4473 = vmatprep.subr.bf16.mxu0 0
  %4474 = vmatpush1.bf16.msra.mxu0 0
  %4475 = vmatprep.subr.bf16.mxu0 0
  %4476 = vmatpush1.bf16.msra.mxu0 0
  %4477 = vmatprep.subr.bf16.mxu0 0
  %4478 = vmatpush1.bf16.msra.mxu0 0
  %4479 = vmatprep.subr.bf16.mxu0 0
  %4480 = vmatpush1.bf16.msra.mxu0 0
  %4481 = vmatprep.subr.bf16.mxu0 0
  %4482 = vmatpush1.bf16.msra.mxu0 0
  %4483 = vmatprep.subr.bf16.mxu0 0
  %4484 = vmatpush1.bf16.msra.mxu0 0
  %4485 = vmatprep.subr.bf16.mxu0 0
  %4486 = vmatpush1.bf16.msra.mxu0 0
  %4487 = vmatprep.subr.bf16.mxu0 0
  %4488 = vmatpush1.bf16.msra.mxu0 0
  %4489 = vmatprep.mubr.bf16.mxu0 0
  %4490 = vmatmul.mubr.bf16.gmra.mrb[0].mxu0 %v4382
  %v4491 = vpop.f32.mrb[0].mxu0
  %v4492 = vadd.f32 %v4428, %v4491
  %v4493 = vpop.f32.mrb[0].mxu0
  %v4494 = vpop.f32.mrb[0].mxu0
  %v4495 = vadd.f32 %v4431, %v4494
  %v4496 = vpop.f32.mrb[0].mxu0
  %4497 = vmatprep.mubr.bf16.mxu0 0
  %4498 = vmatmul.mubr.bf16.gmra.mrb[0].mxu0 %v4385
  %v4499 = vpop.f32.mrb[0].mxu0
  %v4500 = vadd.f32 %v4436, %v4499
  %v4501 = vpop.f32.mrb[0].mxu0
  %v4502 = vpop.f32.mrb[0].mxu0
  %v4503 = vadd.f32 %v4439, %v4502
  %v4504 = vpop.f32.mrb[0].mxu0
  %4505 = vmatprep.mubr.bf16.mxu0 0
  %4506 = vmatmul.mubr.bf16.gmra.mrb[0].mxu0 %v4388
  %v4507 = vpop.f32.mrb[0].mxu0
  %v4508 = vadd.f32 %v4444, %v4507
  %v4509 = vpop.f32.mrb[0].mxu0
  %v4510 = vpop.f32.mrb[0].mxu0
  %v4511 = vadd.f32 %v4447, %v4510
  %v4512 = vpop.f32.mrb[0].mxu0
  %4513 = vmatprep.mubr.bf16.mxu0 0
  %4514 = vmatmul.mubr.bf16.gmra.mrb[0].mxu0 %v4391
  %v4515 = vpop.f32.mrb[0].mxu0
  %v4516 = vadd.f32 %v4452, %v4515
  %v4517 = vpop.f32.mrb[0].mxu0
  %v4518 = vpop.f32.mrb[0].mxu0
  %v4519 = vpop.f32.mrb[0].mxu0
  %4520 = vdwg.mxu0
  %v4521 = vpack.c.bf16 %v4495, %v4492
  %v4522 = vpack.c.bf16 %v4503, %v4500
  %v4523 = vpack.c.bf16 %v4511, %v4508
  %v4524 = vpack.c.bf16 %v4516, %v4516
  %s4525 = scalar_lea.vmem %s5, 88
  %v4526 = vld [vmem:[%s4525] sm:$0xf]
  %v4527 = vld [vmem:[%s4525 + $0x4] sm:$0xf]
  %v4530 = vunpack.c.l.b16 %v4526
  %v4531 = vunpack.c.l.b16 %v4527
  %v4532 = vpack.c.b16 %v4531, %v4530
  %v4535 = vsel %vm195, %v4521, 0
  %v4538 = vsel %vm195, %v4522, 0
  %v4541 = vsel %vm195, %v4523, 0
  %v4544 = vsel %vm195, %v4524, 0
  %4546 = vmatprep.subr.bf16.mxu0 0
  %4547 = vmatpush1.bf16.msra.mxu0 %v4532
  %4548 = vmatprep.subr.bf16.mxu0 0
  %4549 = vmatpush1.bf16.msra.mxu0 0
  %4550 = vmatprep.subr.bf16.mxu0 0
  %4551 = vmatpush1.bf16.msra.mxu0 0
  %4552 = vmatprep.subr.bf16.mxu0 0
  %4553 = vmatpush1.bf16.msra.mxu0 0
  %4554 = vmatprep.subr.bf16.mxu0 0
  %4555 = vmatpush1.bf16.msra.mxu0 0
  %4556 = vmatprep.subr.bf16.mxu0 0
  %4557 = vmatpush1.bf16.msra.mxu0 0
  %4558 = vmatprep.subr.bf16.mxu0 0
  %4559 = vmatpush1.bf16.msra.mxu0 0
  %4560 = vmatprep.subr.bf16.mxu0 0
  %4561 = vmatpush1.bf16.msra.mxu0 0
  %4562 = vmatprep.subr.bf16.mxu0 0
  %4563 = vmatpush1.bf16.msra.mxu0 0
  %4564 = vmatprep.subr.bf16.mxu0 0
  %4565 = vmatpush1.bf16.msra.mxu0 0
  %4566 = vmatprep.subr.bf16.mxu0 0
  %4567 = vmatpush1.bf16.msra.mxu0 0
  %4568 = vmatprep.subr.bf16.mxu0 0
  %4569 = vmatpush1.bf16.msra.mxu0 0
  %4570 = vmatprep.subr.bf16.mxu0 0
  %4571 = vmatpush1.bf16.msra.mxu0 0
  %4572 = vmatprep.subr.bf16.mxu0 0
  %4573 = vmatpush1.bf16.msra.mxu0 0
  %4574 = vmatprep.subr.bf16.mxu0 0
  %4575 = vmatpush1.bf16.msra.mxu0 0
  %4576 = vmatprep.subr.bf16.mxu0 0
  %4577 = vmatpush1.bf16.msra.mxu0 0
  %4578 = vmatprep.mubr.bf16.mxu0 0
  %4579 = vmatmul.mubr.bf16.gmra.mrb[0].mxu0 %v4535
  %v4580 = vpop.f32.mrb[0].mxu0
  %v4581 = vadd.f32 0.0, %v4580
  %v4582 = vpop.f32.mrb[0].mxu0
  %v4583 = vpop.f32.mrb[0].mxu0
  %v4584 = vadd.f32 0.0, %v4583
  %v4585 = vpop.f32.mrb[0].mxu0
  %4586 = vmatprep.mubr.bf16.mxu0 0
  %4587 = vmatmul.mubr.bf16.gmra.mrb[0].mxu0 %v4538
  %v4588 = vpop.f32.mrb[0].mxu0
  %v4589 = vadd.f32 0.0, %v4588
  %v4590 = vpop.f32.mrb[0].mxu0
  %v4591 = vpop.f32.mrb[0].mxu0
  %v4592 = vadd.f32 0.0, %v4591
  %v4593 = vpop.f32.mrb[0].mxu0
  %4594 = vmatprep.mubr.bf16.mxu0 0
  %4595 = vmatmul.mubr.bf16.gmra.mrb[0].mxu0 %v4541
  %v4596 = vpop.f32.mrb[0].mxu0
  %v4597 = vadd.f32 0.0, %v4596
  %v4598 = vpop.f32.mrb[0].mxu0
  %v4599 = vpop.f32.mrb[0].mxu0
  %v4600 = vadd.f32 0.0, %v4599
  %v4601 = vpop.f32.mrb[0].mxu0
  %4602 = vmatprep.mubr.bf16.mxu0 0
  %4603 = vmatmul.mubr.bf16.gmra.mrb[0].mxu0 %v4544
  %v4604 = vpop.f32.mrb[0].mxu0
  %v4605 = vadd.f32 0.0, %v4604
  %v4606 = vpop.f32.mrb[0].mxu0
  %v4607 = vpop.f32.mrb[0].mxu0
  %v4608 = vpop.f32.mrb[0].mxu0
  %4609 = vdwg.mxu0
  %v4610 = vadd.f32 %v4304, %v4581
  %v4611 = vadd.f32 %v4305, %v4584
  %v4612 = vadd.f32 %v4306, %v4589
  %v4613 = vadd.f32 %v4307, %v4592
  %v4614 = vadd.f32 %v4308, %v4597
  %v4615 = vadd.f32 %v4309, %v4600
  %v4616 = vadd.f32 %v4310, %v4605
  %s4617 = scalar_lea.vmem %s4, 1008
  %v4618 = vld [vmem:[%s4617] sm:$0xff]
  %v4619 = vld [vmem:[%s4617 + $0x8] sm:$0xf]
  %v4620 = vld [vmem:[%s4617 + $0xc] sm:$0xff]
  %v4621 = vld [vmem:[%s4617 + $0x14] sm:$0xf]
  %v4622 = vld [vmem:[%s4617 + $0x18] sm:$0xff]
  %v4623 = vld [vmem:[%s4617 + $0x20] sm:$0xf]
  %v4624 = vld [vmem:[%s4617 + $0x24] sm:$0xff]
  %v4625 = vld [vmem:[%s4617 + $0x2c] sm:$0xf]
  %v4626 = vld [vmem:[%s4617 + $0x30] sm:$0xff]
  %v4627 = vld [vmem:[%s4617 + $0x38] sm:$0xf]
  %v4628 = vld [vmem:[%s4617 + $0x3c] sm:$0xff]
  %v4629 = vld [vmem:[%s4617 + $0x44] sm:$0xf]
  %v4630 = vld [vmem:[%s4617 + $0x48] sm:$0x11]
  %v4631 = vld [vmem:[%s4617 + $0x50] sm:$0x1]
  %v4646 = vunpack.c.l.b16 %v4618
  %v4647 = vunpack.c.h.b16 %v4618
  %v4648 = vunpack.c.l.b16 %v4619
  %v4649 = vunpack.c.l.b16 %v4620
  %v4650 = vunpack.c.h.b16 %v4620
  %v4651 = vunpack.c.l.b16 %v4621
  %v4652 = vunpack.c.l.b16 %v4622
  %v4653 = vunpack.c.h.b16 %v4622
  %v4654 = vunpack.c.l.b16 %v4623
  %v4655 = vunpack.c.l.b16 %v4624
  %v4656 = vunpack.c.h.b16 %v4624
  %v4657 = vunpack.c.l.b16 %v4625
  %v4658 = vunpack.c.l.b16 %v4626
  %v4659 = vunpack.c.h.b16 %v4626
  %v4660 = vunpack.c.l.b16 %v4627
  %v4661 = vunpack.c.l.b16 %v4628
  %v4662 = vunpack.c.h.b16 %v4628
  %v4663 = vunpack.c.l.b16 %v4629
  %v4664 = vunpack.c.l.b16 %v4630
  %v4665 = vunpack.c.h.b16 %v4630
  %v4666 = vunpack.c.l.b16 %v4631
  %v4667 = vpack.c.b16 %v4649, %v4646
  %v4668 = vpack.c.b16 %v4650, %v4647
  %v4669 = vpack.c.b16 %v4651, %v4648
  %v4670 = vpack.c.b16 %v4655, %v4652
  %v4671 = vpack.c.b16 %v4656, %v4653
  %v4672 = vpack.c.b16 %v4657, %v4654
  %v4673 = vpack.c.b16 %v4661, %v4658
  %v4674 = vpack.c.b16 %v4662, %v4659
  %v4675 = vpack.c.b16 %v4663, %v4660
  %v4676 = vpack.c.b16 %v4664, %v4664
  %v4677 = vpack.c.b16 %v4665, %v4665
  %v4678 = vpack.c.b16 %v4666, %v4666
  %v4688 = vsel %vm1025, %v4669, 0
  %v4691 = vsel %vm1025, %v4672, 0
  %v4694 = vsel %vm1025, %v4675, 0
  %v4697 = vsel %vm1025, %v4678, 0
  %4699 = vmatprep.subr.bf16.mxu0 0
  %4700 = vmatpush1.bf16.msra.mxu0 %v934
  %4701 = vmatprep.subr.bf16.mxu0 0
  %4702 = vmatpush1.bf16.msra.mxu0 %v935
  %4703 = vmatprep.subr.bf16.mxu0 0
  %4704 = vmatpush1.bf16.msra.mxu0 %v936
  %4705 = vmatprep.subr.bf16.mxu0 0
  %4706 = vmatpush1.bf16.msra.mxu0 %v937
  %4707 = vmatprep.subr.bf16.mxu0 0
  %4708 = vmatpush1.bf16.msra.mxu0 %v938
  %4709 = vmatprep.subr.bf16.mxu0 0
  %4710 = vmatpush1.bf16.msra.mxu0 %v939
  %4711 = vmatprep.subr.bf16.mxu0 0
  %4712 = vmatpush1.bf16.msra.mxu0 %v940
  %4713 = vmatprep.subr.bf16.mxu0 0
  %4714 = vmatpush1.bf16.msra.mxu0 %v941
  %4715 = vmatprep.subr.bf16.mxu0 0
  %4716 = vmatpush1.bf16.msra.mxu0 %v942
  %4717 = vmatprep.subr.bf16.mxu0 0
  %4718 = vmatpush1.bf16.msra.mxu0 %v943
  %4719 = vmatprep.subr.bf16.mxu0 0
  %4720 = vmatpush1.bf16.msra.mxu0 %v944
  %4721 = vmatprep.subr.bf16.mxu0 0
  %4722 = vmatpush1.bf16.msra.mxu0 %v945
  %4723 = vmatprep.subr.bf16.mxu0 0
  %4724 = vmatpush1.bf16.msra.mxu0 %v946
  %4725 = vmatprep.subr.bf16.mxu0 0
  %4726 = vmatpush1.bf16.msra.mxu0 %v947
  %4727 = vmatprep.subr.bf16.mxu0 0
  %4728 = vmatpush1.bf16.msra.mxu0 %v948
  %4729 = vmatprep.subr.bf16.mxu0 0
  %4730 = vmatpush1.bf16.msra.mxu0 %v949
  %4731 = vmatprep.mubr.bf16.mxu0 %v4668
  %4732 = vmatmul.mubr.bf16.gmra.mrb[0].mxu0 %v4667
  %v4733 = vpop.f32.mrb[0].mxu0
  %v4734 = vadd.f32 0.0, %v4733
  %v4735 = vpop.f32.mrb[0].mxu0
  %v4736 = vpop.f32.mrb[0].mxu0
  %v4737 = vadd.f32 0.0, %v4736
  %v4738 = vpop.f32.mrb[0].mxu0
  %4739 = vmatprep.mubr.bf16.mxu0 %v4671
  %4740 = vmatmul.mubr.bf16.gmra.mrb[0].mxu0 %v4670
  %v4741 = vpop.f32.mrb[0].mxu0
  %v4742 = vadd.f32 0.0, %v4741
  %v4743 = vpop.f32.mrb[0].mxu0
  %v4744 = vpop.f32.mrb[0].mxu0
  %v4745 = vadd.f32 0.0, %v4744
  %v4746 = vpop.f32.mrb[0].mxu0
  %4747 = vmatprep.mubr.bf16.mxu0 %v4674
  %4748 = vmatmul.mubr.bf16.gmra.mrb[0].mxu0 %v4673
  %v4749 = vpop.f32.mrb[0].mxu0
  %v4750 = vadd.f32 0.0, %v4749
  %v4751 = vpop.f32.mrb[0].mxu0
  %v4752 = vpop.f32.mrb[0].mxu0
  %v4753 = vadd.f32 0.0, %v4752
  %v4754 = vpop.f32.mrb[0].mxu0
  %4755 = vmatprep.mubr.bf16.mxu0 %v4677
  %4756 = vmatmul.mubr.bf16.gmra.mrb[0].mxu0 %v4676
  %v4757 = vpop.f32.mrb[0].mxu0
  %v4758 = vadd.f32 0.0, %v4757
  %v4759 = vpop.f32.mrb[0].mxu0
  %v4760 = vpop.f32.mrb[0].mxu0
  %v4761 = vpop.f32.mrb[0].mxu0
  %4762 = vdwg.mxu0
  %4763 = vmatprep.subr.bf16.mxu0 0
  %4764 = vmatpush1.bf16.msra.mxu0 %v950
  %4765 = vmatprep.subr.bf16.mxu0 0
  %4766 = vmatpush1.bf16.msra.mxu0 %v951
  %4767 = vmatprep.subr.bf16.mxu0 0
  %4768 = vmatpush1.bf16.msra.mxu0 %v952
  %4769 = vmatprep.subr.bf16.mxu0 0
  %4770 = vmatpush1.bf16.msra.mxu0 %v953
  %4771 = vmatprep.subr.bf16.mxu0 0
  %4772 = vmatpush1.bf16.msra.mxu0 %v954
  %4773 = vmatprep.subr.bf16.mxu0 0
  %4774 = vmatpush1.bf16.msra.mxu0 %v1040
  %4775 = vmatprep.subr.bf16.mxu0 0
  %4776 = vmatpush1.bf16.msra.mxu0 0
  %4777 = vmatprep.subr.bf16.mxu0 0
  %4778 = vmatpush1.bf16.msra.mxu0 0
  %4779 = vmatprep.subr.bf16.mxu0 0
  %4780 = vmatpush1.bf16.msra.mxu0 0
  %4781 = vmatprep.subr.bf16.mxu0 0
  %4782 = vmatpush1.bf16.msra.mxu0 0
  %4783 = vmatprep.subr.bf16.mxu0 0
  %4784 = vmatpush1.bf16.msra.mxu0 0
  %4785 = vmatprep.subr.bf16.mxu0 0
  %4786 = vmatpush1.bf16.msra.mxu0 0
  %4787 = vmatprep.subr.bf16.mxu0 0
  %4788 = vmatpush1.bf16.msra.mxu0 0
  %4789 = vmatprep.subr.bf16.mxu0 0
  %4790 = vmatpush1.bf16.msra.mxu0 0
  %4791 = vmatprep.subr.bf16.mxu0 0
  %4792 = vmatpush1.bf16.msra.mxu0 0
  %4793 = vmatprep.subr.bf16.mxu0 0
  %4794 = vmatpush1.bf16.msra.mxu0 0
  %4795 = vmatprep.mubr.bf16.mxu0 0
  %4796 = vmatmul.mubr.bf16.gmra.mrb[0].mxu0 %v4688
  %v4797 = vpop.f32.mrb[0].mxu0
  %v4798 = vadd.f32 %v4734, %v4797
  %v4799 = vpop.f32.mrb[0].mxu0
  %v4800 = vpop.f32.mrb[0].mxu0
  %v4801 = vadd.f32 %v4737, %v4800
  %v4802 = vpop.f32.mrb[0].mxu0
  %4803 = vmatprep.mubr.bf16.mxu0 0
  %4804 = vmatmul.mubr.bf16.gmra.mrb[0].mxu0 %v4691
  %v4805 = vpop.f32.mrb[0].mxu0
  %v4806 = vadd.f32 %v4742, %v4805
  %v4807 = vpop.f32.mrb[0].mxu0
  %v4808 = vpop.f32.mrb[0].mxu0
  %v4809 = vadd.f32 %v4745, %v4808
  %v4810 = vpop.f32.mrb[0].mxu0
  %4811 = vmatprep.mubr.bf16.mxu0 0
  %4812 = vmatmul.mubr.bf16.gmra.mrb[0].mxu0 %v4694
  %v4813 = vpop.f32.mrb[0].mxu0
  %v4814 = vadd.f32 %v4750, %v4813
  %v4815 = vpop.f32.mrb[0].mxu0
  %v4816 = vpop.f32.mrb[0].mxu0
  %v4817 = vadd.f32 %v4753, %v4816
  %v4818 = vpop.f32.mrb[0].mxu0
  %4819 = vmatprep.mubr.bf16.mxu0 0
  %4820 = vmatmul.mubr.bf16.gmra.mrb[0].mxu0 %v4697
  %v4821 = vpop.f32.mrb[0].mxu0
  %v4822 = vadd.f32 %v4758, %v4821
  %v4823 = vpop.f32.mrb[0].mxu0
  %v4824 = vpop.f32.mrb[0].mxu0
  %v4825 = vpop.f32.mrb[0].mxu0
  %4826 = vdwg.mxu0
  %v4827 = vpack.c.bf16 %v4801, %v4798
  %v4828 = vpack.c.bf16 %v4809, %v4806
  %v4829 = vpack.c.bf16 %v4817, %v4814
  %v4830 = vpack.c.bf16 %v4822, %v4822
  %s4831 = scalar_lea.vmem %s5, 96
  %v4832 = vld [vmem:[%s4831] sm:$0xf]
  %v4833 = vld [vmem:[%s4831 + $0x4] sm:$0xf]
  %v4836 = vunpack.c.l.b16 %v4832
  %v4837 = vunpack.c.l.b16 %v4833
  %v4838 = vpack.c.b16 %v4837, %v4836
  %v4841 = vsel %vm195, %v4827, 0
  %v4844 = vsel %vm195, %v4828, 0
  %v4847 = vsel %vm195, %v4829, 0
  %v4850 = vsel %vm195, %v4830, 0
  %4852 = vmatprep.subr.bf16.mxu0 0
  %4853 = vmatpush1.bf16.msra.mxu0 %v4838
  %4854 = vmatprep.subr.bf16.mxu0 0
  %4855 = vmatpush1.bf16.msra.mxu0 0
  %4856 = vmatprep.subr.bf16.mxu0 0
  %4857 = vmatpush1.bf16.msra.mxu0 0
  %4858 = vmatprep.subr.bf16.mxu0 0
  %4859 = vmatpush1.bf16.msra.mxu0 0
  %4860 = vmatprep.subr.bf16.mxu0 0
  %4861 = vmatpush1.bf16.msra.mxu0 0
  %4862 = vmatprep.subr.bf16.mxu0 0
  %4863 = vmatpush1.bf16.msra.mxu0 0
  %4864 = vmatprep.subr.bf16.mxu0 0
  %4865 = vmatpush1.bf16.msra.mxu0 0
  %4866 = vmatprep.subr.bf16.mxu0 0
  %4867 = vmatpush1.bf16.msra.mxu0 0
  %4868 = vmatprep.subr.bf16.mxu0 0
  %4869 = vmatpush1.bf16.msra.mxu0 0
  %4870 = vmatprep.subr.bf16.mxu0 0
  %4871 = vmatpush1.bf16.msra.mxu0 0
  %4872 = vmatprep.subr.bf16.mxu0 0
  %4873 = vmatpush1.bf16.msra.mxu0 0
  %4874 = vmatprep.subr.bf16.mxu0 0
  %4875 = vmatpush1.bf16.msra.mxu0 0
  %4876 = vmatprep.subr.bf16.mxu0 0
  %4877 = vmatpush1.bf16.msra.mxu0 0
  %4878 = vmatprep.subr.bf16.mxu0 0
  %4879 = vmatpush1.bf16.msra.mxu0 0
  %4880 = vmatprep.subr.bf16.mxu0 0
  %4881 = vmatpush1.bf16.msra.mxu0 0
  %4882 = vmatprep.subr.bf16.mxu0 0
  %4883 = vmatpush1.bf16.msra.mxu0 0
  %4884 = vmatprep.mubr.bf16.mxu0 0
  %4885 = vmatmul.mubr.bf16.gmra.mrb[0].mxu0 %v4841
  %v4886 = vpop.f32.mrb[0].mxu0
  %v4887 = vadd.f32 0.0, %v4886
  %v4888 = vpop.f32.mrb[0].mxu0
  %v4889 = vpop.f32.mrb[0].mxu0
  %v4890 = vadd.f32 0.0, %v4889
  %v4891 = vpop.f32.mrb[0].mxu0
  %4892 = vmatprep.mubr.bf16.mxu0 0
  %4893 = vmatmul.mubr.bf16.gmra.mrb[0].mxu0 %v4844
  %v4894 = vpop.f32.mrb[0].mxu0
  %v4895 = vadd.f32 0.0, %v4894
  %v4896 = vpop.f32.mrb[0].mxu0
  %v4897 = vpop.f32.mrb[0].mxu0
  %v4898 = vadd.f32 0.0, %v4897
  %v4899 = vpop.f32.mrb[0].mxu0
  %4900 = vmatprep.mubr.bf16.mxu0 0
  %4901 = vmatmul.mubr.bf16.gmra.mrb[0].mxu0 %v4847
  %v4902 = vpop.f32.mrb[0].mxu0
  %v4903 = vadd.f32 0.0, %v4902
  %v4904 = vpop.f32.mrb[0].mxu0
  %v4905 = vpop.f32.mrb[0].mxu0
  %v4906 = vadd.f32 0.0, %v4905
  %v4907 = vpop.f32.mrb[0].mxu0
  %4908 = vmatprep.mubr.bf16.mxu0 0
  %4909 = vmatmul.mubr.bf16.gmra.mrb[0].mxu0 %v4850
  %v4910 = vpop.f32.mrb[0].mxu0
  %v4911 = vadd.f32 0.0, %v4910
  %v4912 = vpop.f32.mrb[0].mxu0
  %v4913 = vpop.f32.mrb[0].mxu0
  %v4914 = vpop.f32.mrb[0].mxu0
  %4915 = vdwg.mxu0
  %v4916 = vadd.f32 %v4610, %v4887
  %v4917 = vadd.f32 %v4611, %v4890
  %v4918 = vadd.f32 %v4612, %v4895
  %v4919 = vadd.f32 %v4613, %v4898
  %v4920 = vadd.f32 %v4614, %v4903
  %v4921 = vadd.f32 %v4615, %v4906
  %v4922 = vadd.f32 %v4616, %v4911
  %s4923 = scalar_lea.vmem %s4, 1092
  %v4924 = vld [vmem:[%s4923] sm:$0xff]
  %v4925 = vld [vmem:[%s4923 + $0x8] sm:$0xf]
  %v4926 = vld [vmem:[%s4923 + $0xc] sm:$0xff]
  %v4927 = vld [vmem:[%s4923 + $0x14] sm:$0xf]
  %v4928 = vld [vmem:[%s4923 + $0x18] sm:$0xff]
  %v4929 = vld [vmem:[%s4923 + $0x20] sm:$0xf]
  %v4930 = vld [vmem:[%s4923 + $0x24] sm:$0xff]
  %v4931 = vld [vmem:[%s4923 + $0x2c] sm:$0xf]
  %v4932 = vld [vmem:[%s4923 + $0x30] sm:$0xff]
  %v4933 = vld [vmem:[%s4923 + $0x38] sm:$0xf]
  %v4934 = vld [vmem:[%s4923 + $0x3c] sm:$0xff]
  %v4935 = vld [vmem:[%s4923 + $0x44] sm:$0xf]
  %v4936 = vld [vmem:[%s4923 + $0x48] sm:$0x11]
  %v4937 = vld [vmem:[%s4923 + $0x50] sm:$0x1]
  %v4952 = vunpack.c.l.b16 %v4924
  %v4953 = vunpack.c.h.b16 %v4924
  %v4954 = vunpack.c.l.b16 %v4925
  %v4955 = vunpack.c.l.b16 %v4926
  %v4956 = vunpack.c.h.b16 %v4926
  %v4957 = vunpack.c.l.b16 %v4927
  %v4958 = vunpack.c.l.b16 %v4928
  %v4959 = vunpack.c.h.b16 %v4928
  %v4960 = vunpack.c.l.b16 %v4929
  %v4961 = vunpack.c.l.b16 %v4930
  %v4962 = vunpack.c.h.b16 %v4930
  %v4963 = vunpack.c.l.b16 %v4931
  %v4964 = vunpack.c.l.b16 %v4932
  %v4965 = vunpack.c.h.b16 %v4932
  %v4966 = vunpack.c.l.b16 %v4933
  %v4967 = vunpack.c.l.b16 %v4934
  %v4968 = vunpack.c.h.b16 %v4934
  %v4969 = vunpack.c.l.b16 %v4935
  %v4970 = vunpack.c.l.b16 %v4936
  %v4971 = vunpack.c.h.b16 %v4936
  %v4972 = vunpack.c.l.b16 %v4937
  %v4973 = vpack.c.b16 %v4955, %v4952
  %v4974 = vpack.c.b16 %v4956, %v4953
  %v4975 = vpack.c.b16 %v4957, %v4954
  %v4976 = vpack.c.b16 %v4961, %v4958
  %v4977 = vpack.c.b16 %v4962, %v4959
  %v4978 = vpack.c.b16 %v4963, %v4960
  %v4979 = vpack.c.b16 %v4967, %v4964
  %v4980 = vpack.c.b16 %v4968, %v4965
  %v4981 = vpack.c.b16 %v4969, %v4966
  %v4982 = vpack.c.b16 %v4970, %v4970
  %v4983 = vpack.c.b16 %v4971, %v4971
  %v4984 = vpack.c.b16 %v4972, %v4972
  %v4994 = vsel %vm1025, %v4975, 0
  %v4997 = vsel %vm1025, %v4978, 0
  %v5000 = vsel %vm1025, %v4981, 0
  %v5003 = vsel %vm1025, %v4984, 0
  %5005 = vmatprep.subr.bf16.mxu0 0
  %5006 = vmatpush1.bf16.msra.mxu0 %v934
  %5007 = vmatprep.subr.bf16.mxu0 0
  %5008 = vmatpush1.bf16.msra.mxu0 %v935
  %5009 = vmatprep.subr.bf16.mxu0 0
  %5010 = vmatpush1.bf16.msra.mxu0 %v936
  %5011 = vmatprep.subr.bf16.mxu0 0
  %5012 = vmatpush1.bf16.msra.mxu0 %v937
  %5013 = vmatprep.subr.bf16.mxu0 0
  %5014 = vmatpush1.bf16.msra.mxu0 %v938
  %5015 = vmatprep.subr.bf16.mxu0 0
  %5016 = vmatpush1.bf16.msra.mxu0 %v939
  %5017 = vmatprep.subr.bf16.mxu0 0
  %5018 = vmatpush1.bf16.msra.mxu0 %v940
  %5019 = vmatprep.subr.bf16.mxu0 0
  %5020 = vmatpush1.bf16.msra.mxu0 %v941
  %5021 = vmatprep.subr.bf16.mxu0 0
  %5022 = vmatpush1.bf16.msra.mxu0 %v942
  %5023 = vmatprep.subr.bf16.mxu0 0
  %5024 = vmatpush1.bf16.msra.mxu0 %v943
  %5025 = vmatprep.subr.bf16.mxu0 0
  %5026 = vmatpush1.bf16.msra.mxu0 %v944
  %5027 = vmatprep.subr.bf16.mxu0 0
  %5028 = vmatpush1.bf16.msra.mxu0 %v945
  %5029 = vmatprep.subr.bf16.mxu0 0
  %5030 = vmatpush1.bf16.msra.mxu0 %v946
  %5031 = vmatprep.subr.bf16.mxu0 0
  %5032 = vmatpush1.bf16.msra.mxu0 %v947
  %5033 = vmatprep.subr.bf16.mxu0 0
  %5034 = vmatpush1.bf16.msra.mxu0 %v948
  %5035 = vmatprep.subr.bf16.mxu0 0
  %5036 = vmatpush1.bf16.msra.mxu0 %v949
  %5037 = vmatprep.mubr.bf16.mxu0 %v4974
  %5038 = vmatmul.mubr.bf16.gmra.mrb[0].mxu0 %v4973
  %v5039 = vpop.f32.mrb[0].mxu0
  %v5040 = vadd.f32 0.0, %v5039
  %v5041 = vpop.f32.mrb[0].mxu0
  %v5042 = vpop.f32.mrb[0].mxu0
  %v5043 = vadd.f32 0.0, %v5042
  %v5044 = vpop.f32.mrb[0].mxu0
  %5045 = vmatprep.mubr.bf16.mxu0 %v4977
  %5046 = vmatmul.mubr.bf16.gmra.mrb[0].mxu0 %v4976
  %v5047 = vpop.f32.mrb[0].mxu0
  %v5048 = vadd.f32 0.0, %v5047
  %v5049 = vpop.f32.mrb[0].mxu0
  %v5050 = vpop.f32.mrb[0].mxu0
  %v5051 = vadd.f32 0.0, %v5050
  %v5052 = vpop.f32.mrb[0].mxu0
  %5053 = vmatprep.mubr.bf16.mxu0 %v4980
  %5054 = vmatmul.mubr.bf16.gmra.mrb[0].mxu0 %v4979
  %v5055 = vpop.f32.mrb[0].mxu0
  %v5056 = vadd.f32 0.0, %v5055
  %v5057 = vpop.f32.mrb[0].mxu0
  %v5058 = vpop.f32.mrb[0].mxu0
  %v5059 = vadd.f32 0.0, %v5058
  %v5060 = vpop.f32.mrb[0].mxu0
  %5061 = vmatprep.mubr.bf16.mxu0 %v4983
  %5062 = vmatmul.mubr.bf16.gmra.mrb[0].mxu0 %v4982
  %v5063 = vpop.f32.mrb[0].mxu0
  %v5064 = vadd.f32 0.0, %v5063
  %v5065 = vpop.f32.mrb[0].mxu0
  %v5066 = vpop.f32.mrb[0].mxu0
  %v5067 = vpop.f32.mrb[0].mxu0
  %5068 = vdwg.mxu0
  %5069 = vmatprep.subr.bf16.mxu0 0
  %5070 = vmatpush1.bf16.msra.mxu0 %v950
  %5071 = vmatprep.subr.bf16.mxu0 0
  %5072 = vmatpush1.bf16.msra.mxu0 %v951
  %5073 = vmatprep.subr.bf16.mxu0 0
  %5074 = vmatpush1.bf16.msra.mxu0 %v952
  %5075 = vmatprep.subr.bf16.mxu0 0
  %5076 = vmatpush1.bf16.msra.mxu0 %v953
  %5077 = vmatprep.subr.bf16.mxu0 0
  %5078 = vmatpush1.bf16.msra.mxu0 %v954
  %5079 = vmatprep.subr.bf16.mxu0 0
  %5080 = vmatpush1.bf16.msra.mxu0 %v1040
  %5081 = vmatprep.subr.bf16.mxu0 0
  %5082 = vmatpush1.bf16.msra.mxu0 0
  %5083 = vmatprep.subr.bf16.mxu0 0
  %5084 = vmatpush1.bf16.msra.mxu0 0
  %5085 = vmatprep.subr.bf16.mxu0 0
  %5086 = vmatpush1.bf16.msra.mxu0 0
  %5087 = vmatprep.subr.bf16.mxu0 0
  %5088 = vmatpush1.bf16.msra.mxu0 0
  %5089 = vmatprep.subr.bf16.mxu0 0
  %5090 = vmatpush1.bf16.msra.mxu0 0
  %5091 = vmatprep.subr.bf16.mxu0 0
  %5092 = vmatpush1.bf16.msra.mxu0 0
  %5093 = vmatprep.subr.bf16.mxu0 0
  %5094 = vmatpush1.bf16.msra.mxu0 0
  %5095 = vmatprep.subr.bf16.mxu0 0
  %5096 = vmatpush1.bf16.msra.mxu0 0
  %5097 = vmatprep.subr.bf16.mxu0 0
  %5098 = vmatpush1.bf16.msra.mxu0 0
  %5099 = vmatprep.subr.bf16.mxu0 0
  %5100 = vmatpush1.bf16.msra.mxu0 0
  %5101 = vmatprep.mubr.bf16.mxu0 0
  %5102 = vmatmul.mubr.bf16.gmra.mrb[0].mxu0 %v4994
  %v5103 = vpop.f32.mrb[0].mxu0
  %v5104 = vadd.f32 %v5040, %v5103
  %v5105 = vpop.f32.mrb[0].mxu0
  %v5106 = vpop.f32.mrb[0].mxu0
  %v5107 = vadd.f32 %v5043, %v5106
  %v5108 = vpop.f32.mrb[0].mxu0
  %5109 = vmatprep.mubr.bf16.mxu0 0
  %5110 = vmatmul.mubr.bf16.gmra.mrb[0].mxu0 %v4997
  %v5111 = vpop.f32.mrb[0].mxu0
  %v5112 = vadd.f32 %v5048, %v5111
  %v5113 = vpop.f32.mrb[0].mxu0
  %v5114 = vpop.f32.mrb[0].mxu0
  %v5115 = vadd.f32 %v5051, %v5114
  %v5116 = vpop.f32.mrb[0].mxu0
  %5117 = vmatprep.mubr.bf16.mxu0 0
  %5118 = vmatmul.mubr.bf16.gmra.mrb[0].mxu0 %v5000
  %v5119 = vpop.f32.mrb[0].mxu0
  %v5120 = vadd.f32 %v5056, %v5119
  %v5121 = vpop.f32.mrb[0].mxu0
  %v5122 = vpop.f32.mrb[0].mxu0
  %v5123 = vadd.f32 %v5059, %v5122
  %v5124 = vpop.f32.mrb[0].mxu0
  %5125 = vmatprep.mubr.bf16.mxu0 0
  %5126 = vmatmul.mubr.bf16.gmra.mrb[0].mxu0 %v5003
  %v5127 = vpop.f32.mrb[0].mxu0
  %v5128 = vadd.f32 %v5064, %v5127
  %v5129 = vpop.f32.mrb[0].mxu0
  %v5130 = vpop.f32.mrb[0].mxu0
  %v5131 = vpop.f32.mrb[0].mxu0
  %5132 = vdwg.mxu0
  %v5133 = vpack.c.bf16 %v5107, %v5104
  %v5134 = vpack.c.bf16 %v5115, %v5112
  %v5135 = vpack.c.bf16 %v5123, %v5120
  %v5136 = vpack.c.bf16 %v5128, %v5128
  %s5137 = scalar_lea.vmem %s5, 104
  %v5138 = vld [vmem:[%s5137] sm:$0xf]
  %v5139 = vld [vmem:[%s5137 + $0x4] sm:$0xf]
  %v5142 = vunpack.c.l.b16 %v5138
  %v5143 = vunpack.c.l.b16 %v5139
  %v5144 = vpack.c.b16 %v5143, %v5142
  %v5147 = vsel %vm195, %v5133, 0
  %v5150 = vsel %vm195, %v5134, 0
  %v5153 = vsel %vm195, %v5135, 0
  %v5156 = vsel %vm195, %v5136, 0
  %5158 = vmatprep.subr.bf16.mxu0 0
  %5159 = vmatpush1.bf16.msra.mxu0 %v5144
  %5160 = vmatprep.subr.bf16.mxu0 0
  %5161 = vmatpush1.bf16.msra.mxu0 0
  %5162 = vmatprep.subr.bf16.mxu0 0
  %5163 = vmatpush1.bf16.msra.mxu0 0
  %5164 = vmatprep.subr.bf16.mxu0 0
  %5165 = vmatpush1.bf16.msra.mxu0 0
  %5166 = vmatprep.subr.bf16.mxu0 0
  %5167 = vmatpush1.bf16.msra.mxu0 0
  %5168 = vmatprep.subr.bf16.mxu0 0
  %5169 = vmatpush1.bf16.msra.mxu0 0
  %5170 = vmatprep.subr.bf16.mxu0 0
  %5171 = vmatpush1.bf16.msra.mxu0 0
  %5172 = vmatprep.subr.bf16.mxu0 0
  %5173 = vmatpush1.bf16.msra.mxu0 0
  %5174 = vmatprep.subr.bf16.mxu0 0
  %5175 = vmatpush1.bf16.msra.mxu0 0
  %5176 = vmatprep.subr.bf16.mxu0 0
  %5177 = vmatpush1.bf16.msra.mxu0 0
  %5178 = vmatprep.subr.bf16.mxu0 0
  %5179 = vmatpush1.bf16.msra.mxu0 0
  %5180 = vmatprep.subr.bf16.mxu0 0
  %5181 = vmatpush1.bf16.msra.mxu0 0
  %5182 = vmatprep.subr.bf16.mxu0 0
  %5183 = vmatpush1.bf16.msra.mxu0 0
  %5184 = vmatprep.subr.bf16.mxu0 0
  %5185 = vmatpush1.bf16.msra.mxu0 0
  %5186 = vmatprep.subr.bf16.mxu0 0
  %5187 = vmatpush1.bf16.msra.mxu0 0
  %5188 = vmatprep.subr.bf16.mxu0 0
  %5189 = vmatpush1.bf16.msra.mxu0 0
  %5190 = vmatprep.mubr.bf16.mxu0 0
  %5191 = vmatmul.mubr.bf16.gmra.mrb[0].mxu0 %v5147
  %v5192 = vpop.f32.mrb[0].mxu0
  %v5193 = vadd.f32 0.0, %v5192
  %v5194 = vpop.f32.mrb[0].mxu0
  %v5195 = vpop.f32.mrb[0].mxu0
  %v5196 = vadd.f32 0.0, %v5195
  %v5197 = vpop.f32.mrb[0].mxu0
  %5198 = vmatprep.mubr.bf16.mxu0 0
  %5199 = vmatmul.mubr.bf16.gmra.mrb[0].mxu0 %v5150
  %v5200 = vpop.f32.mrb[0].mxu0
  %v5201 = vadd.f32 0.0, %v5200
  %v5202 = vpop.f32.mrb[0].mxu0
  %v5203 = vpop.f32.mrb[0].mxu0
  %v5204 = vadd.f32 0.0, %v5203
  %v5205 = vpop.f32.mrb[0].mxu0
  %5206 = vmatprep.mubr.bf16.mxu0 0
  %5207 = vmatmul.mubr.bf16.gmra.mrb[0].mxu0 %v5153
  %v5208 = vpop.f32.mrb[0].mxu0
  %v5209 = vadd.f32 0.0, %v5208
  %v5210 = vpop.f32.mrb[0].mxu0
  %v5211 = vpop.f32.mrb[0].mxu0
  %v5212 = vadd.f32 0.0, %v5211
  %v5213 = vpop.f32.mrb[0].mxu0
  %5214 = vmatprep.mubr.bf16.mxu0 0
  %5215 = vmatmul.mubr.bf16.gmra.mrb[0].mxu0 %v5156
  %v5216 = vpop.f32.mrb[0].mxu0
  %v5217 = vadd.f32 0.0, %v5216
  %v5218 = vpop.f32.mrb[0].mxu0
  %v5219 = vpop.f32.mrb[0].mxu0
  %v5220 = vpop.f32.mrb[0].mxu0
  %5221 = vdwg.mxu0
  %v5222 = vadd.f32 %v4916, %v5193
  %v5223 = vadd.f32 %v4917, %v5196
  %v5224 = vadd.f32 %v4918, %v5201
  %v5225 = vadd.f32 %v4919, %v5204
  %v5226 = vadd.f32 %v4920, %v5209
  %v5227 = vadd.f32 %v4921, %v5212
  %v5228 = vadd.f32 %v4922, %v5217
  %s5229 = scalar_lea.vmem %s4, 1176
  %v5230 = vld [vmem:[%s5229] sm:$0xff]
  %v5231 = vld [vmem:[%s5229 + $0x8] sm:$0xf]
  %v5232 = vld [vmem:[%s5229 + $0xc] sm:$0xff]
  %v5233 = vld [vmem:[%s5229 + $0x14] sm:$0xf]
  %v5234 = vld [vmem:[%s5229 + $0x18] sm:$0xff]
  %v5235 = vld [vmem:[%s5229 + $0x20] sm:$0xf]
  %v5236 = vld [vmem:[%s5229 + $0x24] sm:$0xff]
  %v5237 = vld [vmem:[%s5229 + $0x2c] sm:$0xf]
  %v5238 = vld [vmem:[%s5229 + $0x30] sm:$0xff]
  %v5239 = vld [vmem:[%s5229 + $0x38] sm:$0xf]
  %v5240 = vld [vmem:[%s5229 + $0x3c] sm:$0xff]
  %v5241 = vld [vmem:[%s5229 + $0x44] sm:$0xf]
  %v5242 = vld [vmem:[%s5229 + $0x48] sm:$0x11]
  %v5243 = vld [vmem:[%s5229 + $0x50] sm:$0x1]
  %v5258 = vunpack.c.l.b16 %v5230
  %v5259 = vunpack.c.h.b16 %v5230
  %v5260 = vunpack.c.l.b16 %v5231
  %v5261 = vunpack.c.l.b16 %v5232
  %v5262 = vunpack.c.h.b16 %v5232
  %v5263 = vunpack.c.l.b16 %v5233
  %v5264 = vunpack.c.l.b16 %v5234
  %v5265 = vunpack.c.h.b16 %v5234
  %v5266 = vunpack.c.l.b16 %v5235
  %v5267 = vunpack.c.l.b16 %v5236
  %v5268 = vunpack.c.h.b16 %v5236
  %v5269 = vunpack.c.l.b16 %v5237
  %v5270 = vunpack.c.l.b16 %v5238
  %v5271 = vunpack.c.h.b16 %v5238
  %v5272 = vunpack.c.l.b16 %v5239
  %v5273 = vunpack.c.l.b16 %v5240
  %v5274 = vunpack.c.h.b16 %v5240
  %v5275 = vunpack.c.l.b16 %v5241
  %v5276 = vunpack.c.l.b16 %v5242
  %v5277 = vunpack.c.h.b16 %v5242
  %v5278 = vunpack.c.l.b16 %v5243
  %v5279 = vpack.c.b16 %v5261, %v5258
  %v5280 = vpack.c.b16 %v5262, %v5259
  %v5281 = vpack.c.b16 %v5263, %v5260
  %v5282 = vpack.c.b16 %v5267, %v5264
  %v5283 = vpack.c.b16 %v5268, %v5265
  %v5284 = vpack.c.b16 %v5269, %v5266
  %v5285 = vpack.c.b16 %v5273, %v5270
  %v5286 = vpack.c.b16 %v5274, %v5271
  %v5287 = vpack.c.b16 %v5275, %v5272
  %v5288 = vpack.c.b16 %v5276, %v5276
  %v5289 = vpack.c.b16 %v5277, %v5277
  %v5290 = vpack.c.b16 %v5278, %v5278
  %v5300 = vsel %vm1025, %v5281, 0
  %v5303 = vsel %vm1025, %v5284, 0
  %v5306 = vsel %vm1025, %v5287, 0
  %v5309 = vsel %vm1025, %v5290, 0
  %5311 = vmatprep.subr.bf16.mxu0 0
  %5312 = vmatpush1.bf16.msra.mxu0 %v934
  %5313 = vmatprep.subr.bf16.mxu0 0
  %5314 = vmatpush1.bf16.msra.mxu0 %v935
  %5315 = vmatprep.subr.bf16.mxu0 0
  %5316 = vmatpush1.bf16.msra.mxu0 %v936
  %5317 = vmatprep.subr.bf16.mxu0 0
  %5318 = vmatpush1.bf16.msra.mxu0 %v937
  %5319 = vmatprep.subr.bf16.mxu0 0
  %5320 = vmatpush1.bf16.msra.mxu0 %v938
  %5321 = vmatprep.subr.bf16.mxu0 0
  %5322 = vmatpush1.bf16.msra.mxu0 %v939
  %5323 = vmatprep.subr.bf16.mxu0 0
  %5324 = vmatpush1.bf16.msra.mxu0 %v940
  %5325 = vmatprep.subr.bf16.mxu0 0
  %5326 = vmatpush1.bf16.msra.mxu0 %v941
  %5327 = vmatprep.subr.bf16.mxu0 0
  %5328 = vmatpush1.bf16.msra.mxu0 %v942
  %5329 = vmatprep.subr.bf16.mxu0 0
  %5330 = vmatpush1.bf16.msra.mxu0 %v943
  %5331 = vmatprep.subr.bf16.mxu0 0
  %5332 = vmatpush1.bf16.msra.mxu0 %v944
  %5333 = vmatprep.subr.bf16.mxu0 0
  %5334 = vmatpush1.bf16.msra.mxu0 %v945
  %5335 = vmatprep.subr.bf16.mxu0 0
  %5336 = vmatpush1.bf16.msra.mxu0 %v946
  %5337 = vmatprep.subr.bf16.mxu0 0
  %5338 = vmatpush1.bf16.msra.mxu0 %v947
  %5339 = vmatprep.subr.bf16.mxu0 0
  %5340 = vmatpush1.bf16.msra.mxu0 %v948
  %5341 = vmatprep.subr.bf16.mxu0 0
  %5342 = vmatpush1.bf16.msra.mxu0 %v949
  %5343 = vmatprep.mubr.bf16.mxu0 %v5280
  %5344 = vmatmul.mubr.bf16.gmra.mrb[0].mxu0 %v5279
  %v5345 = vpop.f32.mrb[0].mxu0
  %v5346 = vadd.f32 0.0, %v5345
  %v5347 = vpop.f32.mrb[0].mxu0
  %v5348 = vpop.f32.mrb[0].mxu0
  %v5349 = vadd.f32 0.0, %v5348
  %v5350 = vpop.f32.mrb[0].mxu0
  %5351 = vmatprep.mubr.bf16.mxu0 %v5283
  %5352 = vmatmul.mubr.bf16.gmra.mrb[0].mxu0 %v5282
  %v5353 = vpop.f32.mrb[0].mxu0
  %v5354 = vadd.f32 0.0, %v5353
  %v5355 = vpop.f32.mrb[0].mxu0
  %v5356 = vpop.f32.mrb[0].mxu0
  %v5357 = vadd.f32 0.0, %v5356
  %v5358 = vpop.f32.mrb[0].mxu0
  %5359 = vmatprep.mubr.bf16.mxu0 %v5286
  %5360 = vmatmul.mubr.bf16.gmra.mrb[0].mxu0 %v5285
  %v5361 = vpop.f32.mrb[0].mxu0
  %v5362 = vadd.f32 0.0, %v5361
  %v5363 = vpop.f32.mrb[0].mxu0
  %v5364 = vpop.f32.mrb[0].mxu0
  %v5365 = vadd.f32 0.0, %v5364
  %v5366 = vpop.f32.mrb[0].mxu0
  %5367 = vmatprep.mubr.bf16.mxu0 %v5289
  %5368 = vmatmul.mubr.bf16.gmra.mrb[0].mxu0 %v5288
  %v5369 = vpop.f32.mrb[0].mxu0
  %v5370 = vadd.f32 0.0, %v5369
  %v5371 = vpop.f32.mrb[0].mxu0
  %v5372 = vpop.f32.mrb[0].mxu0
  %v5373 = vpop.f32.mrb[0].mxu0
  %5374 = vdwg.mxu0
  %5375 = vmatprep.subr.bf16.mxu0 0
  %5376 = vmatpush1.bf16.msra.mxu0 %v950
  %5377 = vmatprep.subr.bf16.mxu0 0
  %5378 = vmatpush1.bf16.msra.mxu0 %v951
  %5379 = vmatprep.subr.bf16.mxu0 0
  %5380 = vmatpush1.bf16.msra.mxu0 %v952
  %5381 = vmatprep.subr.bf16.mxu0 0
  %5382 = vmatpush1.bf16.msra.mxu0 %v953
  %5383 = vmatprep.subr.bf16.mxu0 0
  %5384 = vmatpush1.bf16.msra.mxu0 %v954
  %5385 = vmatprep.subr.bf16.mxu0 0
  %5386 = vmatpush1.bf16.msra.mxu0 %v1040
  %5387 = vmatprep.subr.bf16.mxu0 0
  %5388 = vmatpush1.bf16.msra.mxu0 0
  %5389 = vmatprep.subr.bf16.mxu0 0
  %5390 = vmatpush1.bf16.msra.mxu0 0
  %5391 = vmatprep.subr.bf16.mxu0 0
  %5392 = vmatpush1.bf16.msra.mxu0 0
  %5393 = vmatprep.subr.bf16.mxu0 0
  %5394 = vmatpush1.bf16.msra.mxu0 0
  %5395 = vmatprep.subr.bf16.mxu0 0
  %5396 = vmatpush1.bf16.msra.mxu0 0
  %5397 = vmatprep.subr.bf16.mxu0 0
  %5398 = vmatpush1.bf16.msra.mxu0 0
  %5399 = vmatprep.subr.bf16.mxu0 0
  %5400 = vmatpush1.bf16.msra.mxu0 0
  %5401 = vmatprep.subr.bf16.mxu0 0
  %5402 = vmatpush1.bf16.msra.mxu0 0
  %5403 = vmatprep.subr.bf16.mxu0 0
  %5404 = vmatpush1.bf16.msra.mxu0 0
  %5405 = vmatprep.subr.bf16.mxu0 0
  %5406 = vmatpush1.bf16.msra.mxu0 0
  %5407 = vmatprep.mubr.bf16.mxu0 0
  %5408 = vmatmul.mubr.bf16.gmra.mrb[0].mxu0 %v5300
  %v5409 = vpop.f32.mrb[0].mxu0
  %v5410 = vadd.f32 %v5346, %v5409
  %v5411 = vpop.f32.mrb[0].mxu0
  %v5412 = vpop.f32.mrb[0].mxu0
  %v5413 = vadd.f32 %v5349, %v5412
  %v5414 = vpop.f32.mrb[0].mxu0
  %5415 = vmatprep.mubr.bf16.mxu0 0
  %5416 = vmatmul.mubr.bf16.gmra.mrb[0].mxu0 %v5303
  %v5417 = vpop.f32.mrb[0].mxu0
  %v5418 = vadd.f32 %v5354, %v5417
  %v5419 = vpop.f32.mrb[0].mxu0
  %v5420 = vpop.f32.mrb[0].mxu0
  %v5421 = vadd.f32 %v5357, %v5420
  %v5422 = vpop.f32.mrb[0].mxu0
  %5423 = vmatprep.mubr.bf16.mxu0 0
  %5424 = vmatmul.mubr.bf16.gmra.mrb[0].mxu0 %v5306
  %v5425 = vpop.f32.mrb[0].mxu0
  %v5426 = vadd.f32 %v5362, %v5425
  %v5427 = vpop.f32.mrb[0].mxu0
  %v5428 = vpop.f32.mrb[0].mxu0
  %v5429 = vadd.f32 %v5365, %v5428
  %v5430 = vpop.f32.mrb[0].mxu0
  %5431 = vmatprep.mubr.bf16.mxu0 0
  %5432 = vmatmul.mubr.bf16.gmra.mrb[0].mxu0 %v5309
  %v5433 = vpop.f32.mrb[0].mxu0
  %v5434 = vadd.f32 %v5370, %v5433
  %v5435 = vpop.f32.mrb[0].mxu0
  %v5436 = vpop.f32.mrb[0].mxu0
  %v5437 = vpop.f32.mrb[0].mxu0
  %5438 = vdwg.mxu0
  %v5439 = vpack.c.bf16 %v5413, %v5410
  %v5440 = vpack.c.bf16 %v5421, %v5418
  %v5441 = vpack.c.bf16 %v5429, %v5426
  %v5442 = vpack.c.bf16 %v5434, %v5434
  %s5443 = scalar_lea.vmem %s5, 112
  %v5444 = vld [vmem:[%s5443] sm:$0xf]
  %v5445 = vld [vmem:[%s5443 + $0x4] sm:$0xf]
  %v5448 = vunpack.c.l.b16 %v5444
  %v5449 = vunpack.c.l.b16 %v5445
  %v5450 = vpack.c.b16 %v5449, %v5448
  %v5453 = vsel %vm195, %v5439, 0
  %v5456 = vsel %vm195, %v5440, 0
  %v5459 = vsel %vm195, %v5441, 0
  %v5462 = vsel %vm195, %v5442, 0
  %5464 = vmatprep.subr.bf16.mxu0 0
  %5465 = vmatpush1.bf16.msra.mxu0 %v5450
  %5466 = vmatprep.subr.bf16.mxu0 0
  %5467 = vmatpush1.bf16.msra.mxu0 0
  %5468 = vmatprep.subr.bf16.mxu0 0
  %5469 = vmatpush1.bf16.msra.mxu0 0
  %5470 = vmatprep.subr.bf16.mxu0 0
  %5471 = vmatpush1.bf16.msra.mxu0 0
  %5472 = vmatprep.subr.bf16.mxu0 0
  %5473 = vmatpush1.bf16.msra.mxu0 0
  %5474 = vmatprep.subr.bf16.mxu0 0
  %5475 = vmatpush1.bf16.msra.mxu0 0
  %5476 = vmatprep.subr.bf16.mxu0 0
  %5477 = vmatpush1.bf16.msra.mxu0 0
  %5478 = vmatprep.subr.bf16.mxu0 0
  %5479 = vmatpush1.bf16.msra.mxu0 0
  %5480 = vmatprep.subr.bf16.mxu0 0
  %5481 = vmatpush1.bf16.msra.mxu0 0
  %5482 = vmatprep.subr.bf16.mxu0 0
  %5483 = vmatpush1.bf16.msra.mxu0 0
  %5484 = vmatprep.subr.bf16.mxu0 0
  %5485 = vmatpush1.bf16.msra.mxu0 0
  %5486 = vmatprep.subr.bf16.mxu0 0
  %5487 = vmatpush1.bf16.msra.mxu0 0
  %5488 = vmatprep.subr.bf16.mxu0 0
  %5489 = vmatpush1.bf16.msra.mxu0 0
  %5490 = vmatprep.subr.bf16.mxu0 0
  %5491 = vmatpush1.bf16.msra.mxu0 0
  %5492 = vmatprep.subr.bf16.mxu0 0
  %5493 = vmatpush1.bf16.msra.mxu0 0
  %5494 = vmatprep.subr.bf16.mxu0 0
  %5495 = vmatpush1.bf16.msra.mxu0 0
  %5496 = vmatprep.mubr.bf16.mxu0 0
  %5497 = vmatmul.mubr.bf16.gmra.mrb[0].mxu0 %v5453
  %v5498 = vpop.f32.mrb[0].mxu0
  %v5499 = vadd.f32 0.0, %v5498
  %v5500 = vpop.f32.mrb[0].mxu0
  %v5501 = vpop.f32.mrb[0].mxu0
  %v5502 = vadd.f32 0.0, %v5501
  %v5503 = vpop.f32.mrb[0].mxu0
  %5504 = vmatprep.mubr.bf16.mxu0 0
  %5505 = vmatmul.mubr.bf16.gmra.mrb[0].mxu0 %v5456
  %v5506 = vpop.f32.mrb[0].mxu0
  %v5507 = vadd.f32 0.0, %v5506
  %v5508 = vpop.f32.mrb[0].mxu0
  %v5509 = vpop.f32.mrb[0].mxu0
  %v5510 = vadd.f32 0.0, %v5509
  %v5511 = vpop.f32.mrb[0].mxu0
  %5512 = vmatprep.mubr.bf16.mxu0 0
  %5513 = vmatmul.mubr.bf16.gmra.mrb[0].mxu0 %v5459
  %v5514 = vpop.f32.mrb[0].mxu0
  %v5515 = vadd.f32 0.0, %v5514
  %v5516 = vpop.f32.mrb[0].mxu0
  %v5517 = vpop.f32.mrb[0].mxu0
  %v5518 = vadd.f32 0.0, %v5517
  %v5519 = vpop.f32.mrb[0].mxu0
  %5520 = vmatprep.mubr.bf16.mxu0 0
  %5521 = vmatmul.mubr.bf16.gmra.mrb[0].mxu0 %v5462
  %v5522 = vpop.f32.mrb[0].mxu0
  %v5523 = vadd.f32 0.0, %v5522
  %v5524 = vpop.f32.mrb[0].mxu0
  %v5525 = vpop.f32.mrb[0].mxu0
  %v5526 = vpop.f32.mrb[0].mxu0
  %5527 = vdwg.mxu0
  %v5528 = vadd.f32 %v5222, %v5499
  %v5529 = vadd.f32 %v5223, %v5502
  %v5530 = vadd.f32 %v5224, %v5507
  %v5531 = vadd.f32 %v5225, %v5510
  %v5532 = vadd.f32 %v5226, %v5515
  %v5533 = vadd.f32 %v5227, %v5518
  %v5534 = vadd.f32 %v5228, %v5523
  %s5535 = scalar_lea.vmem %s4, 1260
  %v5536 = vld [vmem:[%s5535] sm:$0xff]
  %v5537 = vld [vmem:[%s5535 + $0x8] sm:$0xf]
  %v5538 = vld [vmem:[%s5535 + $0xc] sm:$0xff]
  %v5539 = vld [vmem:[%s5535 + $0x14] sm:$0xf]
  %v5540 = vld [vmem:[%s5535 + $0x18] sm:$0xff]
  %v5541 = vld [vmem:[%s5535 + $0x20] sm:$0xf]
  %v5542 = vld [vmem:[%s5535 + $0x24] sm:$0xff]
  %v5543 = vld [vmem:[%s5535 + $0x2c] sm:$0xf]
  %v5544 = vld [vmem:[%s5535 + $0x30] sm:$0xff]
  %v5545 = vld [vmem:[%s5535 + $0x38] sm:$0xf]
  %v5546 = vld [vmem:[%s5535 + $0x3c] sm:$0xff]
  %v5547 = vld [vmem:[%s5535 + $0x44] sm:$0xf]
  %v5548 = vld [vmem:[%s5535 + $0x48] sm:$0x11]
  %v5549 = vld [vmem:[%s5535 + $0x50] sm:$0x1]
  %v5564 = vunpack.c.l.b16 %v5536
  %v5565 = vunpack.c.h.b16 %v5536
  %v5566 = vunpack.c.l.b16 %v5537
  %v5567 = vunpack.c.l.b16 %v5538
  %v5568 = vunpack.c.h.b16 %v5538
  %v5569 = vunpack.c.l.b16 %v5539
  %v5570 = vunpack.c.l.b16 %v5540
  %v5571 = vunpack.c.h.b16 %v5540
  %v5572 = vunpack.c.l.b16 %v5541
  %v5573 = vunpack.c.l.b16 %v5542
  %v5574 = vunpack.c.h.b16 %v5542
  %v5575 = vunpack.c.l.b16 %v5543
  %v5576 = vunpack.c.l.b16 %v5544
  %v5577 = vunpack.c.h.b16 %v5544
  %v5578 = vunpack.c.l.b16 %v5545
  %v5579 = vunpack.c.l.b16 %v5546
  %v5580 = vunpack.c.h.b16 %v5546
  %v5581 = vunpack.c.l.b16 %v5547
  %v5582 = vunpack.c.l.b16 %v5548
  %v5583 = vunpack.c.h.b16 %v5548
  %v5584 = vunpack.c.l.b16 %v5549
  %v5585 = vpack.c.b16 %v5567, %v5564
  %v5586 = vpack.c.b16 %v5568, %v5565
  %v5587 = vpack.c.b16 %v5569, %v5566
  %v5588 = vpack.c.b16 %v5573, %v5570
  %v5589 = vpack.c.b16 %v5574, %v5571
  %v5590 = vpack.c.b16 %v5575, %v5572
  %v5591 = vpack.c.b16 %v5579, %v5576
  %v5592 = vpack.c.b16 %v5580, %v5577
  %v5593 = vpack.c.b16 %v5581, %v5578
  %v5594 = vpack.c.b16 %v5582, %v5582
  %v5595 = vpack.c.b16 %v5583, %v5583
  %v5596 = vpack.c.b16 %v5584, %v5584
  %v5606 = vsel %vm1025, %v5587, 0
  %v5609 = vsel %vm1025, %v5590, 0
  %v5612 = vsel %vm1025, %v5593, 0
  %v5615 = vsel %vm1025, %v5596, 0
  %5617 = vmatprep.subr.bf16.mxu0 0
  %5618 = vmatpush1.bf16.msra.mxu0 %v934
  %5619 = vmatprep.subr.bf16.mxu0 0
  %5620 = vmatpush1.bf16.msra.mxu0 %v935
  %5621 = vmatprep.subr.bf16.mxu0 0
  %5622 = vmatpush1.bf16.msra.mxu0 %v936
  %5623 = vmatprep.subr.bf16.mxu0 0
  %5624 = vmatpush1.bf16.msra.mxu0 %v937
  %5625 = vmatprep.subr.bf16.mxu0 0
  %5626 = vmatpush1.bf16.msra.mxu0 %v938
  %5627 = vmatprep.subr.bf16.mxu0 0
  %5628 = vmatpush1.bf16.msra.mxu0 %v939
  %5629 = vmatprep.subr.bf16.mxu0 0
  %5630 = vmatpush1.bf16.msra.mxu0 %v940
  %5631 = vmatprep.subr.bf16.mxu0 0
  %5632 = vmatpush1.bf16.msra.mxu0 %v941
  %5633 = vmatprep.subr.bf16.mxu0 0
  %5634 = vmatpush1.bf16.msra.mxu0 %v942
  %5635 = vmatprep.subr.bf16.mxu0 0
  %5636 = vmatpush1.bf16.msra.mxu0 %v943
  %5637 = vmatprep.subr.bf16.mxu0 0
  %5638 = vmatpush1.bf16.msra.mxu0 %v944
  %5639 = vmatprep.subr.bf16.mxu0 0
  %5640 = vmatpush1.bf16.msra.mxu0 %v945
  %5641 = vmatprep.subr.bf16.mxu0 0
  %5642 = vmatpush1.bf16.msra.mxu0 %v946
  %5643 = vmatprep.subr.bf16.mxu0 0
  %5644 = vmatpush1.bf16.msra.mxu0 %v947
  %5645 = vmatprep.subr.bf16.mxu0 0
  %5646 = vmatpush1.bf16.msra.mxu0 %v948
  %5647 = vmatprep.subr.bf16.mxu0 0
  %5648 = vmatpush1.bf16.msra.mxu0 %v949
  %5649 = vmatprep.mubr.bf16.mxu0 %v5586
  %5650 = vmatmul.mubr.bf16.gmra.mrb[0].mxu0 %v5585
  %v5651 = vpop.f32.mrb[0].mxu0
  %v5652 = vadd.f32 0.0, %v5651
  %v5653 = vpop.f32.mrb[0].mxu0
  %v5654 = vpop.f32.mrb[0].mxu0
  %v5655 = vadd.f32 0.0, %v5654
  %v5656 = vpop.f32.mrb[0].mxu0
  %5657 = vmatprep.mubr.bf16.mxu0 %v5589
  %5658 = vmatmul.mubr.bf16.gmra.mrb[0].mxu0 %v5588
  %v5659 = vpop.f32.mrb[0].mxu0
  %v5660 = vadd.f32 0.0, %v5659
  %v5661 = vpop.f32.mrb[0].mxu0
  %v5662 = vpop.f32.mrb[0].mxu0
  %v5663 = vadd.f32 0.0, %v5662
  %v5664 = vpop.f32.mrb[0].mxu0
  %5665 = vmatprep.mubr.bf16.mxu0 %v5592
  %5666 = vmatmul.mubr.bf16.gmra.mrb[0].mxu0 %v5591
  %v5667 = vpop.f32.mrb[0].mxu0
  %v5668 = vadd.f32 0.0, %v5667
  %v5669 = vpop.f32.mrb[0].mxu0
  %v5670 = vpop.f32.mrb[0].mxu0
  %v5671 = vadd.f32 0.0, %v5670
  %v5672 = vpop.f32.mrb[0].mxu0
  %5673 = vmatprep.mubr.bf16.mxu0 %v5595
  %5674 = vmatmul.mubr.bf16.gmra.mrb[0].mxu0 %v5594
  %v5675 = vpop.f32.mrb[0].mxu0
  %v5676 = vadd.f32 0.0, %v5675
  %v5677 = vpop.f32.mrb[0].mxu0
  %v5678 = vpop.f32.mrb[0].mxu0
  %v5679 = vpop.f32.mrb[0].mxu0
  %5680 = vdwg.mxu0
  %5681 = vmatprep.subr.bf16.mxu0 0
  %5682 = vmatpush1.bf16.msra.mxu0 %v950
  %5683 = vmatprep.subr.bf16.mxu0 0
  %5684 = vmatpush1.bf16.msra.mxu0 %v951
  %5685 = vmatprep.subr.bf16.mxu0 0
  %5686 = vmatpush1.bf16.msra.mxu0 %v952
  %5687 = vmatprep.subr.bf16.mxu0 0
  %5688 = vmatpush1.bf16.msra.mxu0 %v953
  %5689 = vmatprep.subr.bf16.mxu0 0
  %5690 = vmatpush1.bf16.msra.mxu0 %v954
  %5691 = vmatprep.subr.bf16.mxu0 0
  %5692 = vmatpush1.bf16.msra.mxu0 %v1040
  %5693 = vmatprep.subr.bf16.mxu0 0
  %5694 = vmatpush1.bf16.msra.mxu0 0
  %5695 = vmatprep.subr.bf16.mxu0 0
  %5696 = vmatpush1.bf16.msra.mxu0 0
  %5697 = vmatprep.subr.bf16.mxu0 0
  %5698 = vmatpush1.bf16.msra.mxu0 0
  %5699 = vmatprep.subr.bf16.mxu0 0
  %5700 = vmatpush1.bf16.msra.mxu0 0
  %5701 = vmatprep.subr.bf16.mxu0 0
  %5702 = vmatpush1.bf16.msra.mxu0 0
  %5703 = vmatprep.subr.bf16.mxu0 0
  %5704 = vmatpush1.bf16.msra.mxu0 0
  %5705 = vmatprep.subr.bf16.mxu0 0
  %5706 = vmatpush1.bf16.msra.mxu0 0
  %5707 = vmatprep.subr.bf16.mxu0 0
  %5708 = vmatpush1.bf16.msra.mxu0 0
  %5709 = vmatprep.subr.bf16.mxu0 0
  %5710 = vmatpush1.bf16.msra.mxu0 0
  %5711 = vmatprep.subr.bf16.mxu0 0
  %5712 = vmatpush1.bf16.msra.mxu0 0
  %5713 = vmatprep.mubr.bf16.mxu0 0
  %5714 = vmatmul.mubr.bf16.gmra.mrb[0].mxu0 %v5606
  %v5715 = vpop.f32.mrb[0].mxu0
  %v5716 = vadd.f32 %v5652, %v5715
  %v5717 = vpop.f32.mrb[0].mxu0
  %v5718 = vpop.f32.mrb[0].mxu0
  %v5719 = vadd.f32 %v5655, %v5718
  %v5720 = vpop.f32.mrb[0].mxu0
  %5721 = vmatprep.mubr.bf16.mxu0 0
  %5722 = vmatmul.mubr.bf16.gmra.mrb[0].mxu0 %v5609
  %v5723 = vpop.f32.mrb[0].mxu0
  %v5724 = vadd.f32 %v5660, %v5723
  %v5725 = vpop.f32.mrb[0].mxu0
  %v5726 = vpop.f32.mrb[0].mxu0
  %v5727 = vadd.f32 %v5663, %v5726
  %v5728 = vpop.f32.mrb[0].mxu0
  %5729 = vmatprep.mubr.bf16.mxu0 0
  %5730 = vmatmul.mubr.bf16.gmra.mrb[0].mxu0 %v5612
  %v5731 = vpop.f32.mrb[0].mxu0
  %v5732 = vadd.f32 %v5668, %v5731
  %v5733 = vpop.f32.mrb[0].mxu0
  %v5734 = vpop.f32.mrb[0].mxu0
  %v5735 = vadd.f32 %v5671, %v5734
  %v5736 = vpop.f32.mrb[0].mxu0
  %5737 = vmatprep.mubr.bf16.mxu0 0
  %5738 = vmatmul.mubr.bf16.gmra.mrb[0].mxu0 %v5615
  %v5739 = vpop.f32.mrb[0].mxu0
  %v5740 = vadd.f32 %v5676, %v5739
  %v5741 = vpop.f32.mrb[0].mxu0
  %v5742 = vpop.f32.mrb[0].mxu0
  %v5743 = vpop.f32.mrb[0].mxu0
  %5744 = vdwg.mxu0
  %v5745 = vpack.c.bf16 %v5719, %v5716
  %v5746 = vpack.c.bf16 %v5727, %v5724
  %v5747 = vpack.c.bf16 %v5735, %v5732
  %v5748 = vpack.c.bf16 %v5740, %v5740
  %s5749 = scalar_lea.vmem %s5, 120
  %v5750 = vld [vmem:[%s5749] sm:$0xf]
  %v5751 = vld [vmem:[%s5749 + $0x4] sm:$0xf]
  %v5754 = vunpack.c.l.b16 %v5750
  %v5755 = vunpack.c.l.b16 %v5751
  %v5756 = vpack.c.b16 %v5755, %v5754
  %v5759 = vsel %vm195, %v5745, 0
  %v5762 = vsel %vm195, %v5746, 0
  %v5765 = vsel %vm195, %v5747, 0
  %v5768 = vsel %vm195, %v5748, 0
  %5770 = vmatprep.subr.bf16.mxu0 0
  %5771 = vmatpush1.bf16.msra.mxu0 %v5756
  %5772 = vmatprep.subr.bf16.mxu0 0
  %5773 = vmatpush1.bf16.msra.mxu0 0
  %5774 = vmatprep.subr.bf16.mxu0 0
  %5775 = vmatpush1.bf16.msra.mxu0 0
  %5776 = vmatprep.subr.bf16.mxu0 0
  %5777 = vmatpush1.bf16.msra.mxu0 0
  %5778 = vmatprep.subr.bf16.mxu0 0
  %5779 = vmatpush1.bf16.msra.mxu0 0
  %5780 = vmatprep.subr.bf16.mxu0 0
  %5781 = vmatpush1.bf16.msra.mxu0 0
  %5782 = vmatprep.subr.bf16.mxu0 0
  %5783 = vmatpush1.bf16.msra.mxu0 0
  %5784 = vmatprep.subr.bf16.mxu0 0
  %5785 = vmatpush1.bf16.msra.mxu0 0
  %5786 = vmatprep.subr.bf16.mxu0 0
  %5787 = vmatpush1.bf16.msra.mxu0 0
  %5788 = vmatprep.subr.bf16.mxu0 0
  %5789 = vmatpush1.bf16.msra.mxu0 0
  %5790 = vmatprep.subr.bf16.mxu0 0
  %5791 = vmatpush1.bf16.msra.mxu0 0
  %5792 = vmatprep.subr.bf16.mxu0 0
  %5793 = vmatpush1.bf16.msra.mxu0 0
  %5794 = vmatprep.subr.bf16.mxu0 0
  %5795 = vmatpush1.bf16.msra.mxu0 0
  %5796 = vmatprep.subr.bf16.mxu0 0
  %5797 = vmatpush1.bf16.msra.mxu0 0
  %5798 = vmatprep.subr.bf16.mxu0 0
  %5799 = vmatpush1.bf16.msra.mxu0 0
  %5800 = vmatprep.subr.bf16.mxu0 0
  %5801 = vmatpush1.bf16.msra.mxu0 0
  %5802 = vmatprep.mubr.bf16.mxu0 0
  %5803 = vmatmul.mubr.bf16.gmra.mrb[0].mxu0 %v5759
  %v5804 = vpop.f32.mrb[0].mxu0
  %v5805 = vadd.f32 0.0, %v5804
  %v5806 = vpop.f32.mrb[0].mxu0
  %v5807 = vpop.f32.mrb[0].mxu0
  %v5808 = vadd.f32 0.0, %v5807
  %v5809 = vpop.f32.mrb[0].mxu0
  %5810 = vmatprep.mubr.bf16.mxu0 0
  %5811 = vmatmul.mubr.bf16.gmra.mrb[0].mxu0 %v5762
  %v5812 = vpop.f32.mrb[0].mxu0
  %v5813 = vadd.f32 0.0, %v5812
  %v5814 = vpop.f32.mrb[0].mxu0
  %v5815 = vpop.f32.mrb[0].mxu0
  %v5816 = vadd.f32 0.0, %v5815
  %v5817 = vpop.f32.mrb[0].mxu0
  %5818 = vmatprep.mubr.bf16.mxu0 0
  %5819 = vmatmul.mubr.bf16.gmra.mrb[0].mxu0 %v5765
  %v5820 = vpop.f32.mrb[0].mxu0
  %v5821 = vadd.f32 0.0, %v5820
  %v5822 = vpop.f32.mrb[0].mxu0
  %v5823 = vpop.f32.mrb[0].mxu0
  %v5824 = vadd.f32 0.0, %v5823
  %v5825 = vpop.f32.mrb[0].mxu0
  %5826 = vmatprep.mubr.bf16.mxu0 0
  %5827 = vmatmul.mubr.bf16.gmra.mrb[0].mxu0 %v5768
  %v5828 = vpop.f32.mrb[0].mxu0
  %v5829 = vadd.f32 0.0, %v5828
  %v5830 = vpop.f32.mrb[0].mxu0
  %v5831 = vpop.f32.mrb[0].mxu0
  %v5832 = vpop.f32.mrb[0].mxu0
  %5833 = vdwg.mxu0
  %v5834 = vadd.f32 %v5528, %v5805
  %v5835 = vadd.f32 %v5529, %v5808
  %v5836 = vadd.f32 %v5530, %v5813
  %v5837 = vadd.f32 %v5531, %v5816
  %v5838 = vadd.f32 %v5532, %v5821
  %v5839 = vadd.f32 %v5533, %v5824
  %v5840 = vadd.f32 %v5534, %v5829
  %v5841 = vld [vmem:[%s6] sm:$0x1]
  %v5842 = vld [vmem:[%s7] sm:$0x1]
  %vm5843 = vcmask 261120
  %v5844 = vsel %vm5843, %v5834, 0.0
  %v5845 = vsel %vm5843, %v5835, 0.0
  %v5846 = vadd.f32 %v5844, %v5845
  %v5847 = vsel %vm5843, %v5836, 0.0
  %v5848 = vadd.f32 %v5846, %v5847
  %v5849 = vsel %vm5843, %v5837, 0.0
  %v5850 = vadd.f32 %v5848, %v5849
  %v5851 = vsel %vm5843, %v5838, 0.0
  %v5852 = vadd.f32 %v5850, %v5851
  %v5853 = vsel %vm5843, %v5839, 0.0
  %v5854 = vadd.f32 %v5852, %v5853
  %vm5855 = vcmask 254976
  %v5856 = vsel %vm5855, %v5840, 0.0
  %v5857 = vadd.f32 %v5854, %v5856
  %v5858 = vrot.slane %v5857, 4
  %v5859 = vadd.f32 %v5857, %v5858
  %v5860 = vrot.slane %v5859, 2
  %v5861 = vadd.f32 %v5859, %v5860
  %v5862 = vrot.slane %v5861, 1
  %v5863 = vadd.f32 %v5861, %v5862
  %v5864 = vmul.f32 %v5863, 0.02
  %v5865 = vmul.f32 %v5834, %v5834
  %v5866 = vmul.f32 %v5835, %v5835
  %v5867 = vmul.f32 %v5836, %v5836
  %v5868 = vmul.f32 %v5837, %v5837
  %v5869 = vmul.f32 %v5838, %v5838
  %v5870 = vmul.f32 %v5839, %v5839
  %v5871 = vmul.f32 %v5840, %v5840
  %v5872 = vsel %vm5843, %v5865, 0.0
  %v5873 = vsel %vm5843, %v5866, 0.0
  %v5874 = vadd.f32 %v5872, %v5873
  %v5875 = vsel %vm5843, %v5867, 0.0
  %v5876 = vadd.f32 %v5874, %v5875
  %v5877 = vsel %vm5843, %v5868, 0.0
  %v5878 = vadd.f32 %v5876, %v5877
  %v5879 = vsel %vm5843, %v5869, 0.0
  %v5880 = vadd.f32 %v5878, %v5879
  %v5881 = vsel %vm5843, %v5870, 0.0
  %v5882 = vadd.f32 %v5880, %v5881
  %v5883 = vsel %vm5855, %v5871, 0.0
  %v5884 = vadd.f32 %v5882, %v5883
  %v5885 = vrot.slane %v5884, 4
  %v5886 = vadd.f32 %v5884, %v5885
  %v5887 = vrot.slane %v5886, 2
  %v5888 = vadd.f32 %v5886, %v5887
  %v5889 = vrot.slane %v5888, 1
  %v5890 = vadd.f32 %v5888, %v5889
  %v5891 = vmul.f32 %v5890, 0.02
  %v5892 = vmul.f32 %v5864, %v5864
  %v5893 = vsub.f32 %v5891, %v5892
  %v5894 = vadd.f32 %v5893, 1e-05
  %v5895 = vrsqrt.pop %v5894
  %v5896 = vmul.f32 %v5841, %v5895
  %v5897 = vmul.f32 %v5864, %v5896
  %v5898 = vsub.f32 %v5842, %v5897
  %v5900 = vlaneseq
  %v5901 = vshrl.u32 %v5900, 7
  %v5902 = vsub.s32 0, %v5901
  %v5903 = vrot.slane %v5896, %v5902
  %v5905 = vmul.f32 %v5834, %v5903
  %v5906 = vmul.f32 %v5835, %v5903
  %v5907 = vmul.f32 %v5836, %v5903
  %v5908 = vmul.f32 %v5837, %v5903
  %v5909 = vmul.f32 %v5838, %v5903
  %v5910 = vmul.f32 %v5839, %v5903
  %v5911 = vmul.f32 %v5840, %v5903
  %v5913 = vlaneseq
  %v5914 = vshrl.u32 %v5913, 7
  %v5915 = vsub.s32 0, %v5914
  %v5916 = vrot.slane %v5898, %v5915
  %v5918 = vadd.f32 %v5905, %v5916
  %v5919 = vadd.f32 %v5906, %v5916
  %v5920 = vadd.f32 %v5907, %v5916
  %v5921 = vadd.f32 %v5908, %v5916
  %v5922 = vadd.f32 %v5909, %v5916
  %v5923 = vadd.f32 %v5910, %v5916
  %v5924 = vadd.f32 %v5911, %v5916
  %vm5925 = vcmp.ge.f32.partialorder %v5918, 0.0
  %vm5926 = vcmp.ge.f32.partialorder %v5919, 0.0
  %vm5927 = vcmp.ge.f32.partialorder %v5920, 0.0
  %vm5928 = vcmp.ge.f32.partialorder %v5921, 0.0
  %vm5929 = vcmp.ge.f32.partialorder %v5922, 0.0
  %vm5930 = vcmp.ge.f32.partialorder %v5923, 0.0
  %vm5931 = vcmp.ge.f32.partialorder %v5924, 0.0
  %v5932 = vmul.f32 %v5918, 0.2
  %v5933 = vmul.f32 %v5919, 0.2
  %v5934 = vmul.f32 %v5920, 0.2
  %v5935 = vmul.f32 %v5921, 0.2
  %v5936 = vmul.f32 %v5922, 0.2
  %v5937 = vmul.f32 %v5923, 0.2
  %v5938 = vmul.f32 %v5924, 0.2
  %v5939 = vsel %vm5925, %v5918, %v5932
  %v5940 = vsel %vm5926, %v5919, %v5933
  %v5941 = vsel %vm5927, %v5920, %v5934
  %v5942 = vsel %vm5928, %v5921, %v5935
  %v5943 = vsel %vm5929, %v5922, %v5936
  %v5944 = vsel %vm5930, %v5923, %v5937
  %v5945 = vsel %vm5931, %v5924, %v5938
  %v5946 = vld [vmem:[%s8] sm:$0xff]
  %v5947 = vld [vmem:[%s8 + $0x8] sm:$0xff]
  %v5948 = vld [vmem:[%s8 + $0x10] sm:$0xff]
  %v5949 = vld [vmem:[%s8 + $0x18] sm:$0xff]
  %v5950 = vld [vmem:[%s8 + $0x20] sm:$0xff]
  %v5951 = vld [vmem:[%s8 + $0x28] sm:$0xff]
  %v5952 = vld [vmem:[%s8 + $0x30] sm:$0x3]
  %v5953 = vmul.f32 %v5939, %v5946
  %v5954 = vmul.f32 %v5940, %v5947
  %v5955 = vmul.f32 %v5941, %v5948
  %v5956 = vmul.f32 %v5942, %v5949
  %v5957 = vmul.f32 %v5943, %v5950
  %v5958 = vmul.f32 %v5944, %v5951
  %v5959 = vmul.f32 %v5945, %v5952
  %v5960 = vsel %vm5843, %v5953, 0.0
  %5961 = vadd.xlane.f32.xlu0 %v5960
  %v5962 = vpop.xlane.xlu0 %5961
  %v5963 = vsel %vm5843, %v5954, 0.0
  %5964 = vadd.xlane.f32.xlu0 %v5963
  %v5965 = vpop.xlane.xlu0 %5964
  %v5966 = vsel %vm5843, %v5955, 0.0
  %5967 = vadd.xlane.f32.xlu0 %v5966
  %v5968 = vpop.xlane.xlu0 %5967
  %v5969 = vsel %vm5843, %v5956, 0.0
  %5970 = vadd.xlane.f32.xlu0 %v5969
  %v5971 = vpop.xlane.xlu0 %5970
  %v5972 = vsel %vm5843, %v5957, 0.0
  %5973 = vadd.xlane.f32.xlu0 %v5972
  %v5974 = vpop.xlane.xlu0 %5973
  %v5975 = vsel %vm5843, %v5958, 0.0
  %5976 = vadd.xlane.f32.xlu0 %v5975
  %v5977 = vpop.xlane.xlu0 %5976
  %v5978 = vsel %vm5855, %v5959, 0.0
  %5979 = vadd.xlane.f32.xlu0 %v5978
  %v5980 = vpop.xlane.xlu0 %5979
  %v5981 = vld [vmem:[%s9] sm:$0x3]
  %vm5982 = vcmask 408576
  %v5984 = vsel %vm5982, %v5981, 0
  %vm5986 = vcmask 1041408
  %v5988 = vsel %vm5986, %v5980, 0
  %5990 = vmatprep.subr.mxu0 0.0
  %5991 = vmatpush1.msra.mxu0 %v5962
  %5992 = vmatprep.subr.mxu0 0.0
  %5993 = vmatpush1.msra.mxu0 %v5965
  %5994 = vmatprep.subr.mxu0 0.0
  %5995 = vmatpush1.msra.mxu0 %v5968
  %5996 = vmatprep.subr.mxu0 0.0
  %5997 = vmatpush1.msra.mxu0 %v5971
  %5998 = vmatprep.subr.mxu0 0.0
  %5999 = vmatpush1.msra.mxu0 %v5974
  %6000 = vmatprep.subr.mxu0 0.0
  %6001 = vmatpush1.msra.mxu0 %v5977
  %6002 = vmatprep.subr.mxu0 0.0
  %6003 = vmatpush1.msra.mxu0 %v5988
  %6004 = vmatprep.subr.mxu0 0.0
  %6005 = vmatpush1.msra.mxu0 0.0
  %6006 = vmatprep.subr.mxu0 0.0
  %6007 = vmatpush1.msra.mxu0 0.0
  %6008 = vmatprep.subr.mxu0 0.0
  %6009 = vmatpush1.msra.mxu0 0.0
  %6010 = vmatprep.subr.mxu0 0.0
  %6011 = vmatpush1.msra.mxu0 0.0
  %6012 = vmatprep.subr.mxu0 0.0
  %6013 = vmatpush1.msra.mxu0 0.0
  %6014 = vmatprep.subr.mxu0 0.0
  %6015 = vmatpush1.msra.mxu0 0.0
  %6016 = vmatprep.subr.mxu0 0.0
  %6017 = vmatpush1.msra.mxu0 0.0
  %6018 = vmatprep.subr.mxu0 0.0
  %6019 = vmatpush1.msra.mxu0 0.0
  %6020 = vmatprep.subr.mxu0 0.0
  %6021 = vmatpush1.msra.mxu0 0.0
  %6022 = vmatprep.subr.mxu0 0.0
  %6023 = vmatpush1.msra.mxu0 0.0
  %6024 = vmatprep.subr.mxu0 0.0
  %6025 = vmatpush1.msra.mxu0 0.0
  %6026 = vmatprep.subr.mxu0 0.0
  %6027 = vmatpush1.msra.mxu0 0.0
  %6028 = vmatprep.subr.mxu0 0.0
  %6029 = vmatpush1.msra.mxu0 0.0
  %6030 = vmatprep.subr.mxu0 0.0
  %6031 = vmatpush1.msra.mxu0 0.0
  %6032 = vmatprep.subr.mxu0 0.0
  %6033 = vmatpush1.msra.mxu0 0.0
  %6034 = vmatprep.subr.mxu0 0.0
  %6035 = vmatpush1.msra.mxu0 0.0
  %6036 = vmatprep.subr.mxu0 0.0
  %6037 = vmatpush1.msra.mxu0 0.0
  %6038 = vmatprep.subr.mxu0 0.0
  %6039 = vmatpush1.msra.mxu0 0.0
  %6040 = vmatprep.subr.mxu0 0.0
  %6041 = vmatpush1.msra.mxu0 0.0
  %6042 = vmatprep.subr.mxu0 0.0
  %6043 = vmatpush1.msra.mxu0 0.0
  %6044 = vmatprep.subr.mxu0 0.0
  %6045 = vmatpush1.msra.mxu0 0.0
  %6046 = vmatprep.subr.mxu0 0.0
  %6047 = vmatpush1.msra.mxu0 0.0
  %6048 = vmatprep.subr.mxu0 0.0
  %6049 = vmatpush1.msra.mxu0 0.0
  %6050 = vmatprep.subr.mxu0 0.0
  %6051 = vmatpush1.msra.mxu0 0.0
  %6052 = vmatprep.subr.mxu0 0.0
  %6053 = vmatpush1.msra.mxu0 0.0
  %6054 = vmatprep.mubr.f32.mxu0 0.0
  %6055 = vmatmul.mubr.f32.gmra.mrb[0].mxu0 %v5984
  %v6056 = vpop.f32.mrb[0].mxu0
  %v6057 = vadd.f32 0.0, %v6056
  %v6058 = vpop.f32.mrb[0].mxu0
  %6059 = vdwg.mxu0
  %vm6060 = vcmask 1024
  %6061 = vst.msk [vmem:[%s10] sm:$0x3] %vm6060, %v6057
  // Predicated region
  $region42: #{discriminator_forward.1} parent=0 // pred_check
    _
  $region43: #{discriminator_forward.1} parent=0 // pred_check_branch
    %6063 = sbr.rel (0) target = $region45
  $region44: #{discriminator_forward.1} parent=0 // pred_region
    _
  $region45: #{discriminator_forward.1} parent=0 // pred_fallthru
    _
  // Predicated region
  $region46: #{discriminator_forward.1} parent=0 // pred_check
    _
  $region47: #{discriminator_forward.1} parent=0 // pred_check_branch
    %6065 = sbr.rel (0) target = $region49
  $region48: #{discriminator_forward.1} parent=0 // pred_region
    _
  $region49: #{discriminator_forward.1} parent=0 // pred_fallthru
    _

</llo_original>
